<compile_context>
chip_gen: v7x
topology: tpu7x:2x2x1
jax: 0.10.0
libtpu: 0.0.40
codegen_flags: <defaults>
</compile_context>

<pallas_src>
import functools
import math

import jax
import jax.numpy as jnp
from jax import lax
from jax.experimental import pallas as pl
from jax.experimental.pallas import tpu as pltpu

NUM_HEADS = 4
LN_EPS = 1e-5
MAX_ROWS_PER_STEP = 1024   # block_b * S rows per grid step (MXU-sized M)


def _layernorm(v, w, b):
    mu = jnp.mean(v, axis=-1, keepdims=True)
    d = v - mu
    var = jnp.mean(d * d, axis=-1, keepdims=True)
    return d * lax.rsqrt(var + LN_EPS) * w + b


def _gelu_exact(x):
    # PyTorch nn.GELU() default (erf form, not tanh approximation).
    return 0.5 * x * (1.0 + lax.erf(x * (1.0 / math.sqrt(2.0))))


def self_attention_kernel(
    x_ref,                       # (block_b*S, C)
    ln_w_ref, ln_b_ref,          # (1, C), (1, C)
    in_wT_ref, in_b_ref,         # (C, 3C), (1, 3C)   (q rows pre-scaled)
    out_wT_ref, out_b_ref,       # (C, C), (1, C)
    ff_ln_w_ref, ff_ln_b_ref,    # (1, C), (1, C)
    ff_w1T_ref, ff_b1_ref,       # (C, C), (1, C)
    ff_w2T_ref, ff_b2_ref,       # (C, C), (1, C)
    o_ref,                       # (block_b*S, C)
    *, seq_len, block_b, num_heads, mxu_dtype,
):
    S = seq_len
    x = x_ref[...]                                   # (M, C) f32
    C = x.shape[-1]
    hd = C // num_heads

    def dot(a, w_ref):
        # weights are already pre-transposed (and pre-cast) in the wrapper
        return jnp.dot(a.astype(mxu_dtype), w_ref[...],
                       preferred_element_type=jnp.float32)

    # ---- pre-attention LayerNorm + fused QKV projection ----
    x_ln = _layernorm(x, ln_w_ref[...], ln_b_ref[...])
    qkv = dot(x_ln, in_wT_ref) + in_b_ref[...]       # (M, 3C)

    # ---- head split ONCE for the whole tile (no per-batch Python loop):
    # (M, C) --lane slices/stack--> (H, M, hd) --sublane-aligned reshape-->
    # (H*block_b, S, hd).  S is a multiple of 8 so the reshape only splits the
    # sublane axis / merges leading dims (no extra cross-lane relayout).
    def to_heads(col0):
        t = jnp.stack(
            [qkv[:, col0 + h * hd: col0 + (h + 1) * hd]
             for h in range(num_heads)], axis=0)     # (H, M, hd)
        return t.reshape(num_heads * block_b, S, hd).astype(mxu_dtype)

    qh = to_heads(0 * C)
    kh = to_heads(1 * C)
    vh = to_heads(2 * C)

    # ---- attention: one batched contraction over all (head, batch) pairs ----
    # q was pre-scaled by 1/sqrt(hd) via the folded in-projection weights.
    s = jnp.einsum('bqd,bkd->bqk', qh, kh,
                   preferred_element_type=jnp.float32)          # (H*bb, S, S)
    s = s - jnp.max(s, axis=-1, keepdims=True)
    p = jnp.exp(s)
    p = p * pl.reciprocal(jnp.sum(p, axis=-1, keepdims=True), approx=True)
    oh = jnp.einsum('bqk,bkd->bqd', p.astype(mxu_dtype), vh,
                    preferred_element_type=jnp.float32)         # (H*bb, S, hd)

    # reassemble heads back onto the lane axis: (H*bb, S, hd) -> (H, M, hd)
    # (leading/sublane reshape) -> one concat of num_heads pieces.
    oh = oh.reshape(num_heads, block_b * S, hd)
    attn = jnp.concatenate([oh[h] for h in range(num_heads)], axis=-1)  # (M, C)

    # ---- output projection + residual ----
    attn = dot(attn, out_wT_ref) + out_b_ref[...] + x

    # ---- feed-forward: LN -> Linear -> GELU -> Linear, + residual ----
    h = _layernorm(attn, ff_ln_w_ref[...], ff_ln_b_ref[...])
    h = dot(h, ff_w1T_ref) + ff_b1_ref[...]
    h = _gelu_exact(h)
    h = dot(h, ff_w2T_ref) + ff_b2_ref[...]

    # TODO(synk): with C=32 the store is not lane-dense (last dim < 128); a
    # lane-dense repack needs a bundle-dump measurement to justify at this size.
    o_ref[...] = h + attn


def _device_kind():
    try:
        return jax.devices()[0].device_kind.lower()
    except Exception:
        return ""


def _is_v7():
    kind = _device_kind()
    return ("v7" in kind) or ("7x" in kind)


def _default_use_bf16():
    # bf16 MXU inputs (f32 accumulate) are the fast path on v6e/v7x; keep f32
    # on v5e and older (no bf16 VALU -> the activation casts cost VPU work and
    # the 4x128x128 MXU's f32 penalty is smaller).
    kind = _device_kind()
    return ("v6" in kind) or _is_v7()


def _pick_block_b(batch, seq_len):
    # Pack batch elements per grid step until the matmul M dimension reaches
    # ~MAX_ROWS_PER_STEP rows.  Single-TC chips (v5e/v6e) may use grid=1;
    # v7x keeps >= 2 grid steps so both TensorCores get work.
    min_steps = 2 if _is_v7() else 1
    best = 1
    for bb in range(1, batch + 1):
        if batch % bb:
            continue
        if bb > 1 and bb * seq_len > MAX_ROWS_PER_STEP:
            continue
        if bb > 1 and batch // bb < min_steps:
            continue
        best = bb
    return best


def self_attention_forward(x_nchw, params, *, block_b=None, use_bf16_mxu=None):
    """x_nchw: (B, C, size, size) float32. Returns (B, C, size, size)."""
    B, C, H, W = x_nchw.shape
    S = H * W
    assert C % NUM_HEADS == 0
    hd = C // NUM_HEADS
    scale = 1.0 / math.sqrt(hd)
    if use_bf16_mxu is None:
        use_bf16_mxu = _default_use_bf16()
    mxu_dtype = jnp.bfloat16 if use_bf16_mxu else jnp.float32

    if block_b is None:
        block_b = _pick_block_b(B, S)
    assert B % block_b == 0
    grid = (B // block_b,)
    M = block_b * S

    # NCHW -> tokens-major (B*S, C); matches x.view(-1, C, S).swapaxes(1, 2)
    x_tok = jnp.transpose(x_nchw.reshape(B, C, S), (0, 2, 1))
    x_tok = x_tok.reshape(B * S, C).astype(jnp.float32)

    # Pre-transpose weights once (grid-invariant); fold the 1/sqrt(hd)
    # attention scale into the q rows of the in-projection; present 1-D
    # params as (1, N) rows for clean vreg broadcasts.
    q_scale = jnp.concatenate(
        [jnp.full((C,), scale, jnp.float32), jnp.ones((2 * C,), jnp.float32)])
    in_wT = (params["in_w"] * q_scale[:, None]).T.astype(mxu_dtype)   # (C, 3C)
    in_b = (params["in_b"] * q_scale).reshape(1, 3 * C).astype(jnp.float32)
    out_wT = params["out_w"].T.astype(mxu_dtype)
    ff_w1T = params["ff_w1"].T.astype(mxu_dtype)
    ff_w2T = params["ff_w2"].T.astype(mxu_dtype)
    row = lambda p: p.reshape(1, -1).astype(jnp.float32)

    # NOTE: pl.Buffered(1) on these constant-index specs would trim the
    # redundant second pipeline buffer; left at the default for portability.
    def full_spec(shape):
        zeros = (0,) * len(shape)
        return pl.BlockSpec(shape, lambda i, z=zeros: z)

    flops = B * (2 * S * C * 3 * C            # qkv proj
                 + 4 * NUM_HEADS * S * S * hd  # qk^T + pv
                 + 6 * S * C * C)              # out proj + ff1 + ff2
    transcendentals = B * (NUM_HEADS * S * S + S * C)   # exp + erf
    param_bytes = 4 * (3 * C * C + 3 * C + 3 * (C * C + C) + 4 * C)
    bytes_accessed = 8 * B * S * C + param_bytes

    kernel = functools.partial(
        self_attention_kernel, seq_len=S, block_b=block_b,
        num_heads=NUM_HEADS, mxu_dtype=mxu_dtype)

    out_tok = pl.pallas_call(
        kernel,
        out_shape=jax.ShapeDtypeStruct((B * S, C), jnp.float32),
        grid_spec=pltpu.PrefetchScalarGridSpec(
            num_scalar_prefetch=0,
            grid=grid,
            in_specs=[
                pl.BlockSpec((M, C), lambda i: (i, 0)),        # x tokens
                full_spec((1, C)), full_spec((1, C)),          # ln w, b
                full_spec((C, 3 * C)), full_spec((1, 3 * C)),  # in_proj W^T, b
                full_spec((C, C)), full_spec((1, C)),          # out_proj W^T, b
                full_spec((1, C)), full_spec((1, C)),          # ff ln w, b
                full_spec((C, C)), full_spec((1, C)),          # ff lin1 W^T, b
                full_spec((C, C)), full_spec((1, C)),          # ff lin2 W^T, b
            ],
            out_specs=pl.BlockSpec((M, C), lambda i: (i, 0)),
        ),
        compiler_params=pltpu.CompilerParams(
            dimension_semantics=("parallel",),
            vmem_limit_bytes=48 * 1024 * 1024),
        cost_estimate=pl.CostEstimate(
            flops=flops, transcendentals=transcendentals,
            bytes_accessed=bytes_accessed),
    )(
        x_tok,
        row(params["ln_w"]), row(params["ln_b"]),
        in_wT, in_b,
        out_wT, row(params["out_b"]),
        row(params["ff_ln_w"]), row(params["ff_ln_b"]),
        ff_w1T, row(params["ff_b1"]),
        ff_w2T, row(params["ff_b2"]),
    )

    # (B*S, C) -> NCHW; matches .swapaxes(2, 1).view(-1, C, size, size)
    return jnp.transpose(out_tok.reshape(B, S, C), (0, 2, 1)).reshape(B, C, H, W)


def self_attention_reference(x_nchw, params):
    """Pure-JAX (non-Pallas) reference of the PyTorch forward, f32/HIGHEST."""
    B, C, H, W = x_nchw.shape
    S = H * W
    hd = C // NUM_HEADS
    hp = lax.Precision.HIGHEST
    mm = lambda a, b: jnp.dot(a, b, precision=hp)

    def ln(v, w, b):
        mu = v.mean(-1, keepdims=True)
        var = ((v - mu) ** 2).mean(-1, keepdims=True)
        return (v - mu) / jnp.sqrt(var + LN_EPS) * w + b

    x = jnp.transpose(x_nchw.reshape(B, C, S), (0, 2, 1))        # (B, S, C)
    x_ln = ln(x, params["ln_w"], params["ln_b"])
    qkv = mm(x_ln, params["in_w"].T) + params["in_b"]            # (B, S, 3C)
    q, k, v = jnp.split(qkv, 3, axis=-1)

    def heads(t):
        return t.reshape(B, S, NUM_HEADS, hd).transpose(0, 2, 1, 3)

    qh, kh, vh = heads(q), heads(k), heads(v)
    s = jnp.einsum('bhqd,bhkd->bhqk', qh, kh, precision=hp) / math.sqrt(hd)
    p = jax.nn.softmax(s, axis=-1)
    o = jnp.einsum('bhqk,bhkd->bhqd', p, vh, precision=hp)
    o = o.transpose(0, 2, 1, 3).reshape(B, S, C)
    attn = mm(o, params["out_w"].T) + params["out_b"] + x

    h1 = ln(attn, params["ff_ln_w"], params["ff_ln_b"])
    h1 = mm(h1, params["ff_w1"].T) + params["ff_b1"]
    h1 = 0.5 * h1 * (1.0 + lax.erf(h1 / math.sqrt(2.0)))
    h1 = mm(h1, params["ff_w2"].T) + params["ff_b2"]
    out = h1 + attn
    return jnp.transpose(out, (0, 2, 1)).reshape(B, C, H, W)


def init_params(key, channels):
    C = channels
    keys = jax.random.split(key, 8)
    scale = 0.02
    return {
        # self.ln
        "ln_w": jnp.ones((C,), jnp.float32),
        "ln_b": jnp.zeros((C,), jnp.float32),
        # self.mha in_proj / out_proj
        "in_w": scale * jax.random.normal(keys[0], (3 * C, C), jnp.float32),
        "in_b": scale * jax.random.normal(keys[1], (3 * C,), jnp.float32),
        "out_w": scale * jax.random.normal(keys[2], (C, C), jnp.float32),
        "out_b": scale * jax.random.normal(keys[3], (C,), jnp.float32),
        # self.ff_self = [LayerNorm, Linear, GELU, Linear]
        "ff_ln_w": jnp.ones((C,), jnp.float32),
        "ff_ln_b": jnp.zeros((C,), jnp.float32),
        "ff_w1": scale * jax.random.normal(keys[4], (C, C), jnp.float32),
        "ff_b1": scale * jax.random.normal(keys[5], (C,), jnp.float32),
        "ff_w2": scale * jax.random.normal(keys[6], (C, C), jnp.float32),
        "ff_b2": scale * jax.random.normal(keys[7], (C,), jnp.float32),
    }


if __name__ == "__main__":
    B, C, SIZE = 2, 32, 8          # channels must be divisible by 4 heads
    key = jax.random.PRNGKey(0)
    k_x, k_p = jax.random.split(key)
    x = jax.random.normal(k_x, (B, C, SIZE, SIZE), jnp.float32)
    params = init_params(k_p, C)

    # f32-MXU path vs. the pure-JAX reference.
    out = jax.block_until_ready(
        self_attention_forward(x, params, use_bf16_mxu=False))
    ref = jax.block_until_ready(self_attention_reference(x, params))
    assert out.shape == (B, C, SIZE, SIZE)
    assert bool(jnp.all(jnp.isfinite(out)))
    assert bool(jnp.allclose(out, ref, atol=2e-3, rtol=2e-3))

    # Larger batch: default path (auto block_b, auto MXU dtype) must agree with
    # the one-element-per-step path, and the f32 path must match the reference.
    x8 = jax.random.normal(k_x, (8, C, SIZE, SIZE), jnp.float32)
    out8 = jax.block_until_ready(self_attention_forward(x8, params))
    out8_bb1 = jax.block_until_ready(
        self_attention_forward(x8, params, block_b=1))
    assert out8.shape == (8, C, SIZE, SIZE)
    assert bool(jnp.all(jnp.isfinite(out8)))
    assert bool(jnp.allclose(out8, out8_bb1, atol=1e-4, rtol=1e-4))

    out8_f32 = jax.block_until_ready(
        self_attention_forward(x8, params, use_bf16_mxu=False))
    ref8 = jax.block_until_ready(self_attention_reference(x8, params))
    assert bool(jnp.allclose(out8_f32, ref8, atol=2e-3, rtol=2e-3))

    print("KERNEL_OK")
</pallas_src>

<mosaic_0001>
module attributes {stable_mosaic.version = 11 : i64} {
  func.func @self_attention_kernel(%arg0: i32, %arg1: memref<128x32xf32, #tpu.memory_space<vmem>>, %arg2: memref<1x32xf32, #tpu.memory_space<vmem>>, %arg3: memref<1x32xf32, #tpu.memory_space<vmem>>, %arg4: memref<32x96xf32, #tpu.memory_space<vmem>>, %arg5: memref<1x96xf32, #tpu.memory_space<vmem>>, %arg6: memref<32x32xf32, #tpu.memory_space<vmem>>, %arg7: memref<1x32xf32, #tpu.memory_space<vmem>>, %arg8: memref<1x32xf32, #tpu.memory_space<vmem>>, %arg9: memref<1x32xf32, #tpu.memory_space<vmem>>, %arg10: memref<32x32xf32, #tpu.memory_space<vmem>>, %arg11: memref<1x32xf32, #tpu.memory_space<vmem>>, %arg12: memref<32x32xf32, #tpu.memory_space<vmem>>, %arg13: memref<1x32xf32, #tpu.memory_space<vmem>>, %arg14: memref<128x32xf32, #tpu.memory_space<vmem>>) attributes {dimension_semantics = [#tpu.dimension_semantics<parallel>], iteration_bounds = array<i64: 1>, scalar_prefetch = 0 : i64, scratch_operands = 0 : i64, tpu.core_type = #tpu.core_type<tc>, window_params = [{transform_indices = @transform_0, window_bounds = array<i64: 128, 32>}, {pipeline_mode = #tpu.pipeline_mode<synchronous>, transform_indices = @transform_1, window_bounds = array<i64: 1, 32>}, {pipeline_mode = #tpu.pipeline_mode<synchronous>, transform_indices = @transform_2, window_bounds = array<i64: 1, 32>}, {pipeline_mode = #tpu.pipeline_mode<synchronous>, transform_indices = @transform_3, window_bounds = array<i64: 32, 96>}, {pipeline_mode = #tpu.pipeline_mode<synchronous>, transform_indices = @transform_4, window_bounds = array<i64: 1, 96>}, {pipeline_mode = #tpu.pipeline_mode<synchronous>, transform_indices = @transform_5, window_bounds = array<i64: 32, 32>}, {pipeline_mode = #tpu.pipeline_mode<synchronous>, transform_indices = @transform_6, window_bounds = array<i64: 1, 32>}, {pipeline_mode = #tpu.pipeline_mode<synchronous>, transform_indices = @transform_7, window_bounds = array<i64: 1, 32>}, {pipeline_mode = #tpu.pipeline_mode<synchronous>, transform_indices = @transform_8, window_bounds = array<i64: 1, 32>}, {pipeline_mode = #tpu.pipeline_mode<synchronous>, transform_indices = @transform_9, window_bounds = array<i64: 32, 32>}, {pipeline_mode = #tpu.pipeline_mode<synchronous>, transform_indices = @transform_10, window_bounds = array<i64: 1, 32>}, {pipeline_mode = #tpu.pipeline_mode<synchronous>, transform_indices = @transform_11, window_bounds = array<i64: 32, 32>}, {pipeline_mode = #tpu.pipeline_mode<synchronous>, transform_indices = @transform_12, window_bounds = array<i64: 1, 32>}, {transform_indices = @transform_13, window_bounds = array<i64: 128, 32>}]} {
    %c0 = arith.constant 0 : index
    %c0_0 = arith.constant 0 : index
    %0 = vector.load %arg1[%c0, %c0_0] : memref<128x32xf32, #tpu.memory_space<vmem>>, vector<128x32xf32>
    %c0_1 = arith.constant 0 : index
    %c0_2 = arith.constant 0 : index
    %1 = vector.load %arg2[%c0_1, %c0_2] : memref<1x32xf32, #tpu.memory_space<vmem>>, vector<1x32xf32>
    %c0_3 = arith.constant 0 : index
    %c0_4 = arith.constant 0 : index
    %2 = vector.load %arg3[%c0_3, %c0_4] : memref<1x32xf32, #tpu.memory_space<vmem>>, vector<1x32xf32>
    %cst = arith.constant dense<0.000000e+00> : vector<128xf32>
    %3 = vector.multi_reduction <add>, %0, %cst [1] : vector<128x32xf32> to vector<128xf32>
    %4 = vector.shape_cast %3 : vector<128xf32> to vector<128x1xf32>
    %cst_5 = arith.constant 3.200000e+01 : f32
    %5 = vector.broadcast %cst_5 : f32 to vector<128x1xf32>
    %6 = arith.divf %4, %5 : vector<128x1xf32>
    %7 = vector.broadcast %6 : vector<128x1xf32> to vector<128x32xf32>
    %8 = arith.subf %0, %7 : vector<128x32xf32>
    %9 = arith.mulf %8, %8 : vector<128x32xf32>
    %cst_6 = arith.constant dense<0.000000e+00> : vector<128xf32>
    %10 = vector.multi_reduction <add>, %9, %cst_6 [1] : vector<128x32xf32> to vector<128xf32>
    %11 = vector.shape_cast %10 : vector<128xf32> to vector<128x1xf32>
    %cst_7 = arith.constant 3.200000e+01 : f32
    %12 = vector.broadcast %cst_7 : f32 to vector<128x1xf32>
    %13 = arith.divf %11, %12 : vector<128x1xf32>
    %cst_8 = arith.constant 9.99999974E-6 : f32
    %14 = vector.broadcast %cst_8 : f32 to vector<128x1xf32>
    %15 = arith.addf %13, %14 : vector<128x1xf32>
    %16 = math.rsqrt %15 : vector<128x1xf32>
    %17 = vector.broadcast %16 : vector<128x1xf32> to vector<128x32xf32>
    %18 = arith.mulf %8, %17 : vector<128x32xf32>
    %19 = vector.broadcast %1 : vector<1x32xf32> to vector<128x32xf32>
    %20 = arith.mulf %18, %19 : vector<128x32xf32>
    %21 = vector.broadcast %2 : vector<1x32xf32> to vector<128x32xf32>
    %22 = arith.addf %20, %21 : vector<128x32xf32>
    %c0_9 = arith.constant 0 : index
    %c0_10 = arith.constant 0 : index
    %23 = vector.load %arg4[%c0_9, %c0_10] : memref<32x96xf32, #tpu.memory_space<vmem>>, vector<32x96xf32>
    %cst_11 = arith.constant dense<0.000000e+00> : vector<128x96xf32>
    %24 = tpu.matmul %22, %23, %cst_11 {dimension_numbers = #tpu.dot_dimension_numbers<[1], [0], [0], [1], [0, 0, 1, 1], [], []>} : vector<128x32xf32>, vector<32x96xf32>, vector<128x96xf32> -> vector<128x96xf32>
    %c0_12 = arith.constant 0 : index
    %c0_13 = arith.constant 0 : index
    %25 = vector.load %arg5[%c0_12, %c0_13] : memref<1x96xf32, #tpu.memory_space<vmem>>, vector<1x96xf32>
    %26 = vector.broadcast %25 : vector<1x96xf32> to vector<128x96xf32>
    %27 = arith.addf %24, %26 : vector<128x96xf32>
    %28 = vector.extract_strided_slice %27 {offsets = [0, 0], sizes = [128, 8], strides = [1, 1]} : vector<128x96xf32> to vector<128x8xf32>
    %29 = vector.extract_strided_slice %27 {offsets = [0, 8], sizes = [128, 8], strides = [1, 1]} : vector<128x96xf32> to vector<128x8xf32>
    %30 = vector.extract_strided_slice %27 {offsets = [0, 16], sizes = [128, 8], strides = [1, 1]} : vector<128x96xf32> to vector<128x8xf32>
    %31 = vector.extract_strided_slice %27 {offsets = [0, 24], sizes = [128, 8], strides = [1, 1]} : vector<128x96xf32> to vector<128x8xf32>
    %32 = vector.shape_cast %28 : vector<128x8xf32> to vector<1x128x8xf32>
    %33 = vector.shape_cast %29 : vector<128x8xf32> to vector<1x128x8xf32>
    %34 = vector.shape_cast %30 : vector<128x8xf32> to vector<1x128x8xf32>
    %35 = vector.shape_cast %31 : vector<128x8xf32> to vector<1x128x8xf32>
    %36 = tpu.concatenate %32, %33, %34, %35 in 0 : vector<1x128x8xf32>, vector<1x128x8xf32>, vector<1x128x8xf32>, vector<1x128x8xf32> -> vector<4x128x8xf32>
    %37 = vector.shape_cast %36 : vector<4x128x8xf32> to vector<8x64x8xf32>
    %38 = vector.extract_strided_slice %27 {offsets = [0, 32], sizes = [128, 8], strides = [1, 1]} : vector<128x96xf32> to vector<128x8xf32>
    %39 = vector.extract_strided_slice %27 {offsets = [0, 40], sizes = [128, 8], strides = [1, 1]} : vector<128x96xf32> to vector<128x8xf32>
    %40 = vector.extract_strided_slice %27 {offsets = [0, 48], sizes = [128, 8], strides = [1, 1]} : vector<128x96xf32> to vector<128x8xf32>
    %41 = vector.extract_strided_slice %27 {offsets = [0, 56], sizes = [128, 8], strides = [1, 1]} : vector<128x96xf32> to vector<128x8xf32>
    %42 = vector.shape_cast %38 : vector<128x8xf32> to vector<1x128x8xf32>
    %43 = vector.shape_cast %39 : vector<128x8xf32> to vector<1x128x8xf32>
    %44 = vector.shape_cast %40 : vector<128x8xf32> to vector<1x128x8xf32>
    %45 = vector.shape_cast %41 : vector<128x8xf32> to vector<1x128x8xf32>
    %46 = tpu.concatenate %42, %43, %44, %45 in 0 : vector<1x128x8xf32>, vector<1x128x8xf32>, vector<1x128x8xf32>, vector<1x128x8xf32> -> vector<4x128x8xf32>
    %47 = vector.shape_cast %46 : vector<4x128x8xf32> to vector<8x64x8xf32>
    %48 = vector.extract_strided_slice %27 {offsets = [0, 64], sizes = [128, 8], strides = [1, 1]} : vector<128x96xf32> to vector<128x8xf32>
    %49 = vector.extract_strided_slice %27 {offsets = [0, 72], sizes = [128, 8], strides = [1, 1]} : vector<128x96xf32> to vector<128x8xf32>
    %50 = vector.extract_strided_slice %27 {offsets = [0, 80], sizes = [128, 8], strides = [1, 1]} : vector<128x96xf32> to vector<128x8xf32>
    %51 = vector.extract_strided_slice %27 {offsets = [0, 88], sizes = [128, 8], strides = [1, 1]} : vector<128x96xf32> to vector<128x8xf32>
    %52 = vector.shape_cast %48 : vector<128x8xf32> to vector<1x128x8xf32>
    %53 = vector.shape_cast %49 : vector<128x8xf32> to vector<1x128x8xf32>
    %54 = vector.shape_cast %50 : vector<128x8xf32> to vector<1x128x8xf32>
    %55 = vector.shape_cast %51 : vector<128x8xf32> to vector<1x128x8xf32>
    %56 = tpu.concatenate %52, %53, %54, %55 in 0 : vector<1x128x8xf32>, vector<1x128x8xf32>, vector<1x128x8xf32>, vector<1x128x8xf32> -> vector<4x128x8xf32>
    %57 = vector.shape_cast %56 : vector<4x128x8xf32> to vector<8x64x8xf32>
    "tpu.trace_start"() <{level = 10 : i32, message = "bqd,bkd->bqk"}> : () -> ()
    %cst_14 = arith.constant dense<0.000000e+00> : vector<8x64x64xf32>
    %58 = tpu.matmul %37, %47, %cst_14 {dimension_numbers = #tpu.dot_dimension_numbers<[2], [2], [1], [1], [0, 0, 0, 1, 1, 1], [0], [0]>} : vector<8x64x8xf32>, vector<8x64x8xf32>, vector<8x64x64xf32> -> vector<8x64x64xf32>
    "tpu.trace_stop"() : () -> ()
    %cst_15 = arith.constant dense<0xFF800000> : vector<8x64xf32>
    %59 = vector.multi_reduction <maximumf>, %58, %cst_15 [2] : vector<8x64x64xf32> to vector<8x64xf32>
    %60 = vector.shape_cast %59 : vector<8x64xf32> to vector<8x64x1xf32>
    %61 = vector.broadcast %60 : vector<8x64x1xf32> to vector<8x64x64xf32>
    %62 = arith.subf %58, %61 : vector<8x64x64xf32>
    %63 = math.exp %62 : vector<8x64x64xf32>
    %cst_16 = arith.constant dense<0.000000e+00> : vector<8x64xf32>
    %64 = vector.multi_reduction <add>, %63, %cst_16 [2] : vector<8x64x64xf32> to vector<8x64xf32>
    %65 = vector.shape_cast %64 : vector<8x64xf32> to vector<8x64x1xf32>
    %66 = tpu.reciprocal %65 {approx = true} : vector<8x64x1xf32> -> vector<8x64x1xf32>
    %67 = vector.broadcast %66 : vector<8x64x1xf32> to vector<8x64x64xf32>
    %68 = arith.mulf %63, %67 : vector<8x64x64xf32>
    "tpu.trace_start"() <{level = 10 : i32, message = "bqk,bkd->bqd"}> : () -> ()
    %cst_17 = arith.constant dense<0.000000e+00> : vector<8x64x8xf32>
    %69 = tpu.matmul %68, %57, %cst_17 {dimension_numbers = #tpu.dot_dimension_numbers<[2], [1], [1], [2], [0, 0, 0, 1, 1, 2], [0], [0]>} : vector<8x64x64xf32>, vector<8x64x8xf32>, vector<8x64x8xf32> -> vector<8x64x8xf32>
    "tpu.trace_stop"() : () -> ()
    %70 = vector.shape_cast %69 : vector<8x64x8xf32> to vector<4x128x8xf32>
    %71 = vector.extract_strided_slice %70 {offsets = [0, 0, 0], sizes = [1, 128, 8], strides = [1, 1, 1]} : vector<4x128x8xf32> to vector<1x128x8xf32>
    %72 = vector.shape_cast %71 : vector<1x128x8xf32> to vector<128x8xf32>
    %73 = vector.extract_strided_slice %70 {offsets = [1, 0, 0], sizes = [1, 128, 8], strides = [1, 1, 1]} : vector<4x128x8xf32> to vector<1x128x8xf32>
    %74 = vector.shape_cast %73 : vector<1x128x8xf32> to vector<128x8xf32>
    %75 = vector.extract_strided_slice %70 {offsets = [2, 0, 0], sizes = [1, 128, 8], strides = [1, 1, 1]} : vector<4x128x8xf32> to vector<1x128x8xf32>
    %76 = vector.shape_cast %75 : vector<1x128x8xf32> to vector<128x8xf32>
    %77 = vector.extract_strided_slice %70 {offsets = [3, 0, 0], sizes = [1, 128, 8], strides = [1, 1, 1]} : vector<4x128x8xf32> to vector<1x128x8xf32>
    %78 = vector.shape_cast %77 : vector<1x128x8xf32> to vector<128x8xf32>
    %79 = tpu.concatenate %72, %74, %76, %78 in 1 : vector<128x8xf32>, vector<128x8xf32>, vector<128x8xf32>, vector<128x8xf32> -> vector<128x32xf32>
    %c0_18 = arith.constant 0 : index
    %c0_19 = arith.constant 0 : index
    %80 = vector.load %arg6[%c0_18, %c0_19] : memref<32x32xf32, #tpu.memory_space<vmem>>, vector<32x32xf32>
    %cst_20 = arith.constant dense<0.000000e+00> : vector<128x32xf32>
    %81 = tpu.matmul %79, %80, %cst_20 {dimension_numbers = #tpu.dot_dimension_numbers<[1], [0], [0], [1], [0, 0, 1, 1], [], []>} : vector<128x32xf32>, vector<32x32xf32>, vector<128x32xf32> -> vector<128x32xf32>
    %c0_21 = arith.constant 0 : index
    %c0_22 = arith.constant 0 : index
    %82 = vector.load %arg7[%c0_21, %c0_22] : memref<1x32xf32, #tpu.memory_space<vmem>>, vector<1x32xf32>
    %83 = vector.broadcast %82 : vector<1x32xf32> to vector<128x32xf32>
    %84 = arith.addf %81, %83 : vector<128x32xf32>
    %85 = arith.addf %84, %0 : vector<128x32xf32>
    %c0_23 = arith.constant 0 : index
    %c0_24 = arith.constant 0 : index
    %86 = vector.load %arg8[%c0_23, %c0_24] : memref<1x32xf32, #tpu.memory_space<vmem>>, vector<1x32xf32>
    %c0_25 = arith.constant 0 : index
    %c0_26 = arith.constant 0 : index
    %87 = vector.load %arg9[%c0_25, %c0_26] : memref<1x32xf32, #tpu.memory_space<vmem>>, vector<1x32xf32>
    %cst_27 = arith.constant dense<0.000000e+00> : vector<128xf32>
    %88 = vector.multi_reduction <add>, %85, %cst_27 [1] : vector<128x32xf32> to vector<128xf32>
    %89 = vector.shape_cast %88 : vector<128xf32> to vector<128x1xf32>
    %cst_28 = arith.constant 3.200000e+01 : f32
    %90 = vector.broadcast %cst_28 : f32 to vector<128x1xf32>
    %91 = arith.divf %89, %90 : vector<128x1xf32>
    %92 = vector.broadcast %91 : vector<128x1xf32> to vector<128x32xf32>
    %93 = arith.subf %85, %92 : vector<128x32xf32>
    %94 = arith.mulf %93, %93 : vector<128x32xf32>
    %cst_29 = arith.constant dense<0.000000e+00> : vector<128xf32>
    %95 = vector.multi_reduction <add>, %94, %cst_29 [1] : vector<128x32xf32> to vector<128xf32>
    %96 = vector.shape_cast %95 : vector<128xf32> to vector<128x1xf32>
    %cst_30 = arith.constant 3.200000e+01 : f32
    %97 = vector.broadcast %cst_30 : f32 to vector<128x1xf32>
    %98 = arith.divf %96, %97 : vector<128x1xf32>
    %cst_31 = arith.constant 9.99999974E-6 : f32
    %99 = vector.broadcast %cst_31 : f32 to vector<128x1xf32>
    %100 = arith.addf %98, %99 : vector<128x1xf32>
    %101 = math.rsqrt %100 : vector<128x1xf32>
    %102 = vector.broadcast %101 : vector<128x1xf32> to vector<128x32xf32>
    %103 = arith.mulf %93, %102 : vector<128x32xf32>
    %104 = vector.broadcast %86 : vector<1x32xf32> to vector<128x32xf32>
    %105 = arith.mulf %103, %104 : vector<128x32xf32>
    %106 = vector.broadcast %87 : vector<1x32xf32> to vector<128x32xf32>
    %107 = arith.addf %105, %106 : vector<128x32xf32>
    %c0_32 = arith.constant 0 : index
    %c0_33 = arith.constant 0 : index
    %108 = vector.load %arg10[%c0_32, %c0_33] : memref<32x32xf32, #tpu.memory_space<vmem>>, vector<32x32xf32>
    %cst_34 = arith.constant dense<0.000000e+00> : vector<128x32xf32>
    %109 = tpu.matmul %107, %108, %cst_34 {dimension_numbers = #tpu.dot_dimension_numbers<[1], [0], [0], [1], [0, 0, 1, 1], [], []>} : vector<128x32xf32>, vector<32x32xf32>, vector<128x32xf32> -> vector<128x32xf32>
    %c0_35 = arith.constant 0 : index
    %c0_36 = arith.constant 0 : index
    %110 = vector.load %arg11[%c0_35, %c0_36] : memref<1x32xf32, #tpu.memory_space<vmem>>, vector<1x32xf32>
    %111 = vector.broadcast %110 : vector<1x32xf32> to vector<128x32xf32>
    %112 = arith.addf %109, %111 : vector<128x32xf32>
    %cst_37 = arith.constant 5.000000e-01 : f32
    %113 = vector.broadcast %cst_37 : f32 to vector<128x32xf32>
    %114 = arith.mulf %113, %112 : vector<128x32xf32>
    %cst_38 = arith.constant 0.707106769 : f32
    %115 = vector.broadcast %cst_38 : f32 to vector<128x32xf32>
    %116 = arith.mulf %112, %115 : vector<128x32xf32>
    %117 = math.erf %116 : vector<128x32xf32>
    %cst_39 = arith.constant 1.000000e+00 : f32
    %118 = vector.broadcast %cst_39 : f32 to vector<128x32xf32>
    %119 = arith.addf %118, %117 : vector<128x32xf32>
    %120 = arith.mulf %114, %119 : vector<128x32xf32>
    %c0_40 = arith.constant 0 : index
    %c0_41 = arith.constant 0 : index
    %121 = vector.load %arg12[%c0_40, %c0_41] : memref<32x32xf32, #tpu.memory_space<vmem>>, vector<32x32xf32>
    %cst_42 = arith.constant dense<0.000000e+00> : vector<128x32xf32>
    %122 = tpu.matmul %120, %121, %cst_42 {dimension_numbers = #tpu.dot_dimension_numbers<[1], [0], [0], [1], [0, 0, 1, 1], [], []>} : vector<128x32xf32>, vector<32x32xf32>, vector<128x32xf32> -> vector<128x32xf32>
    %c0_43 = arith.constant 0 : index
    %c0_44 = arith.constant 0 : index
    %123 = vector.load %arg13[%c0_43, %c0_44] : memref<1x32xf32, #tpu.memory_space<vmem>>, vector<1x32xf32>
    %124 = vector.broadcast %123 : vector<1x32xf32> to vector<128x32xf32>
    %125 = arith.addf %122, %124 : vector<128x32xf32>
    %126 = arith.addf %125, %85 : vector<128x32xf32>
    %c0_45 = arith.constant 0 : index
    %c0_46 = arith.constant 0 : index
    %127 = vector.load %arg14[%c0_45, %c0_46] : memref<128x32xf32, #tpu.memory_space<vmem>>, vector<128x32xf32>
    tpu.vector_store %arg14[%c0_45, %c0_46], %126 {strides = array<i32>} : memref<128x32xf32, #tpu.memory_space<vmem>>, vector<128x32xf32>,
    return
  }
  func.func @transform_0(%arg0: i32) -> (i32, i32) {
    %c0_i32 = arith.constant 0 : i32
    %c0_i32_0 = arith.constant 0 : i32
    return %arg0, %c0_i32 : i32, i32
  }
  func.func @transform_1(%arg0: i32) -> (i32, i32) {
    %c0_i32 = arith.constant 0 : i32
    %c0_i32_0 = arith.constant 0 : i32
    %c0_i32_1 = arith.constant 0 : i32
    return %c0_i32, %c0_i32_0 : i32, i32
  }
  func.func @transform_2(%arg0: i32) -> (i32, i32) {
    %c0_i32 = arith.constant 0 : i32
    %c0_i32_0 = arith.constant 0 : i32
    %c0_i32_1 = arith.constant 0 : i32
    return %c0_i32, %c0_i32_0 : i32, i32
  }
  func.func @transform_3(%arg0: i32) -> (i32, i32) {
    %c0_i32 = arith.constant 0 : i32
    %c0_i32_0 = arith.constant 0 : i32
    %c0_i32_1 = arith.constant 0 : i32
    return %c0_i32, %c0_i32_0 : i32, i32
  }
  func.func @transform_4(%arg0: i32) -> (i32, i32) {
    %c0_i32 = arith.constant 0 : i32
    %c0_i32_0 = arith.constant 0 : i32
    %c0_i32_1 = arith.constant 0 : i32
    return %c0_i32, %c0_i32_0 : i32, i32
  }
  func.func @transform_5(%arg0: i32) -> (i32, i32) {
    %c0_i32 = arith.constant 0 : i32
    %c0_i32_0 = arith.constant 0 : i32
    %c0_i32_1 = arith.constant 0 : i32
    return %c0_i32, %c0_i32_0 : i32, i32
  }
  func.func @transform_6(%arg0: i32) -> (i32, i32) {
    %c0_i32 = arith.constant 0 : i32
    %c0_i32_0 = arith.constant 0 : i32
    %c0_i32_1 = arith.constant 0 : i32
    return %c0_i32, %c0_i32_0 : i32, i32
  }
  func.func @transform_7(%arg0: i32) -> (i32, i32) {
    %c0_i32 = arith.constant 0 : i32
    %c0_i32_0 = arith.constant 0 : i32
    %c0_i32_1 = arith.constant 0 : i32
    return %c0_i32, %c0_i32_0 : i32, i32
  }
  func.func @transform_8(%arg0: i32) -> (i32, i32) {
    %c0_i32 = arith.constant 0 : i32
    %c0_i32_0 = arith.constant 0 : i32
    %c0_i32_1 = arith.constant 0 : i32
    return %c0_i32, %c0_i32_0 : i32, i32
  }
  func.func @transform_9(%arg0: i32) -> (i32, i32) {
    %c0_i32 = arith.constant 0 : i32
    %c0_i32_0 = arith.constant 0 : i32
    %c0_i32_1 = arith.constant 0 : i32
    return %c0_i32, %c0_i32_0 : i32, i32
  }
  func.func @transform_10(%arg0: i32) -> (i32, i32) {
    %c0_i32 = arith.constant 0 : i32
    %c0_i32_0 = arith.constant 0 : i32
    %c0_i32_1 = arith.constant 0 : i32
    return %c0_i32, %c0_i32_0 : i32, i32
  }
  func.func @transform_11(%arg0: i32) -> (i32, i32) {
    %c0_i32 = arith.constant 0 : i32
    %c0_i32_0 = arith.constant 0 : i32
    %c0_i32_1 = arith.constant 0 : i32
    return %c0_i32, %c0_i32_0 : i32, i32
  }
  func.func @transform_12(%arg0: i32) -> (i32, i32) {
    %c0_i32 = arith.constant 0 : i32
    %c0_i32_0 = arith.constant 0 : i32
    %c0_i32_1 = arith.constant 0 : i32
    return %c0_i32, %c0_i32_0 : i32, i32
  }
  func.func @transform_13(%arg0: i32) -> (i32, i32) {
    %c0_i32 = arith.constant 0 : i32
    %c0_i32_0 = arith.constant 0 : i32
    return %arg0, %c0_i32 : i32, i32
  }
}

</mosaic_0001>

<llo_original>
// kernel: tpu_custom_call.1
$region0: #{tpu_custom_call.1}
  #allocation0 [shape = 'u32[]', space=smem, size = 0x4, offset = 0x4, fixed_abs, tag = 'smem constant byte address 0x4 - core index']
  #allocation1 [shape = 'u32[144,128]{1,0:T(1,128)}', space=vmem, size = 0x12000, scoped, tag = 'internal scratch']
  %s0 = inlined_call_operand.vmem [shape: f32[128,32], index: 0, kind: input, shape index: {}]
  %s1 = inlined_call_operand.vmem [shape: f32[1,32], index: 1, kind: input, shape index: {}]
  %s2 = inlined_call_operand.vmem [shape: f32[1,32], index: 2, kind: input, shape index: {}]
  %s3 = inlined_call_operand.vmem [shape: f32[32,96], index: 3, kind: input, shape index: {}]
  %s4 = inlined_call_operand.vmem [shape: f32[1,96], index: 4, kind: input, shape index: {}]
  %s5 = inlined_call_operand.vmem [shape: f32[32,32], index: 5, kind: input, shape index: {}]
  %s6 = inlined_call_operand.vmem [shape: f32[1,32], index: 6, kind: input, shape index: {}]
  %s7 = inlined_call_operand.vmem [shape: f32[1,32], index: 7, kind: input, shape index: {}]
  %s8 = inlined_call_operand.vmem [shape: f32[1,32], index: 8, kind: input, shape index: {}]
  %s9 = inlined_call_operand.vmem [shape: f32[32,32], index: 9, kind: input, shape index: {}]
  %s10 = inlined_call_operand.vmem [shape: f32[1,32], index: 10, kind: input, shape index: {}]
  %s11 = inlined_call_operand.vmem [shape: f32[32,32], index: 11, kind: input, shape index: {}]
  %s12 = inlined_call_operand.vmem [shape: f32[1,32], index: 12, kind: input, shape index: {}]
  %s13 = inlined_call_operand.vmem [shape: f32[128,32], index: 13, kind: output, shape index: {}]
  %s14 = sld [smem:[#allocation0]]
  $region62: #{tpu_custom_call.1} parent=0
    _
  %s16 = ssub.s32 1, %s14
  %s17 = scalar_select 0, %s16, %s14
  // Predicated region
  $region2: #{tpu_custom_call.1} parent=0 // pred_check
    _
  $region3: #{tpu_custom_call.1} parent=0 // pred_check_branch
    %19 = sbr.rel (0) target = $region5
  $region4: #{tpu_custom_call.1} parent=0 // pred_region
    _
  $region5: #{tpu_custom_call.1} parent=0 // pred_fallthru
    _
  // Predicated region
  $region6: #{tpu_custom_call.1} parent=0 // pred_check
    _
  $region7: #{tpu_custom_call.1} parent=0 // pred_check_branch
    %21 = sbr.rel (0) target = $region9
  $region8: #{tpu_custom_call.1} parent=0 // pred_region
    _
  $region9: #{tpu_custom_call.1} parent=0 // pred_fallthru
    _
  // Predicated region
  $region10: #{tpu_custom_call.1} parent=0 // pred_check
    _
  $region11: #{tpu_custom_call.1} parent=0 // pred_check_branch
    %23 = sbr.rel (0) target = $region13
  $region12: #{tpu_custom_call.1} parent=0 // pred_region
    _
  $region13: #{tpu_custom_call.1} parent=0 // pred_fallthru
    _
  // Predicated region
  $region14: #{tpu_custom_call.1} parent=0 // pred_check
    _
  $region15: #{tpu_custom_call.1} parent=0 // pred_check_branch
    %25 = sbr.rel (0) target = $region17
  $region16: #{tpu_custom_call.1} parent=0 // pred_region
    _
  $region17: #{tpu_custom_call.1} parent=0 // pred_fallthru
    _
  // Predicated region
  $region18: #{tpu_custom_call.1} parent=0 // pred_check
    _
  $region19: #{tpu_custom_call.1} parent=0 // pred_check_branch
    %27 = sbr.rel (0) target = $region21
  $region20: #{tpu_custom_call.1} parent=0 // pred_region
    _
  $region21: #{tpu_custom_call.1} parent=0 // pred_fallthru
    _
  // Predicated region
  $region22: #{tpu_custom_call.1} parent=0 // pred_check
    _
  $region23: #{tpu_custom_call.1} parent=0 // pred_check_branch
    %29 = sbr.rel (0) target = $region25
  $region24: #{tpu_custom_call.1} parent=0 // pred_region
    _
  $region25: #{tpu_custom_call.1} parent=0 // pred_fallthru
    _
  // Predicated region
  $region26: #{tpu_custom_call.1} parent=0 // pred_check
    _
  $region27: #{tpu_custom_call.1} parent=0 // pred_check_branch
    %31 = sbr.rel (0) target = $region29
  $region28: #{tpu_custom_call.1} parent=0 // pred_region
    _
  $region29: #{tpu_custom_call.1} parent=0 // pred_fallthru
    _
  // Predicated region
  $region30: #{tpu_custom_call.1} parent=0 // pred_check
    _
  $region31: #{tpu_custom_call.1} parent=0 // pred_check_branch
    %33 = sbr.rel (0) target = $region33
  $region32: #{tpu_custom_call.1} parent=0 // pred_region
    _
  $region33: #{tpu_custom_call.1} parent=0 // pred_fallthru
    _
  // Predicated region
  $region34: #{tpu_custom_call.1} parent=0 // pred_check
    _
  $region35: #{tpu_custom_call.1} parent=0 // pred_check_branch
    %35 = sbr.rel (0) target = $region37
  $region36: #{tpu_custom_call.1} parent=0 // pred_region
    _
  $region37: #{tpu_custom_call.1} parent=0 // pred_fallthru
    _
  // Predicated region
  $region38: #{tpu_custom_call.1} parent=0 // pred_check
    _
  $region39: #{tpu_custom_call.1} parent=0 // pred_check_branch
    %37 = sbr.rel (0) target = $region41
  $region40: #{tpu_custom_call.1} parent=0 // pred_region
    _
  $region41: #{tpu_custom_call.1} parent=0 // pred_fallthru
    _
  // Predicated region
  $region42: #{tpu_custom_call.1} parent=0 // pred_check
    _
  $region43: #{tpu_custom_call.1} parent=0 // pred_check_branch
    %39 = sbr.rel (0) target = $region45
  $region44: #{tpu_custom_call.1} parent=0 // pred_region
    _
  $region45: #{tpu_custom_call.1} parent=0 // pred_fallthru
    _
  // Predicated region
  $region46: #{tpu_custom_call.1} parent=0 // pred_check
    _
  $region47: #{tpu_custom_call.1} parent=0 // pred_check_branch
    %41 = sbr.rel (0) target = $region49
  $region48: #{tpu_custom_call.1} parent=0 // pred_region
    _
  $region49: #{tpu_custom_call.1} parent=0 // pred_fallthru
    _
  // Predicated region
  $region50: #{tpu_custom_call.1} parent=0 // pred_check
    _
  $region51: #{tpu_custom_call.1} parent=0 // pred_check_branch
    %43 = sbr.rel (0) target = $region53
  $region52: #{tpu_custom_call.1} parent=0 // pred_region
    _
  $region53: #{tpu_custom_call.1} parent=0 // pred_fallthru
    _
  %v44 = vld [vmem:[%s0] sm:$0xff]
  %v45 = vld [vmem:[%s0 + $0x8] sm:$0xff]
  %v46 = vld [vmem:[%s0 + $0x10] sm:$0xff]
  %v47 = vld [vmem:[%s0 + $0x18] sm:$0xff]
  %v48 = vld [vmem:[%s0 + $0x20] sm:$0xff]
  %v49 = vld [vmem:[%s0 + $0x28] sm:$0xff]
  %v50 = vld [vmem:[%s0 + $0x30] sm:$0xff]
  %v51 = vld [vmem:[%s0 + $0x38] sm:$0xff]
  %v52 = vld [vmem:[%s0 + $0x40] sm:$0xff]
  %v53 = vld [vmem:[%s0 + $0x48] sm:$0xff]
  %v54 = vld [vmem:[%s0 + $0x50] sm:$0xff]
  %v55 = vld [vmem:[%s0 + $0x58] sm:$0xff]
  %v56 = vld [vmem:[%s0 + $0x60] sm:$0xff]
  %v57 = vld [vmem:[%s0 + $0x68] sm:$0xff]
  %v58 = vld [vmem:[%s0 + $0x70] sm:$0xff]
  %v59 = vld [vmem:[%s0 + $0x78] sm:$0xff]
  %v60 = vld [vmem:[%s1] sm:$0x1]
  %v61 = vld [vmem:[%s2] sm:$0x1]
  %vm62 = vcmask 261120
  %v63 = vsel %vm62, %v44, 0.0
  %64 = vadd.xlane.f32.xlu0 %v63
  %v65 = vpop.xlane.xlu0 %64
  %v66 = vsel %vm62, %v45, 0.0
  %67 = vadd.xlane.f32.xlu0 %v66
  %v68 = vpop.xlane.xlu0 %67
  %v69 = vsel %vm62, %v46, 0.0
  %70 = vadd.xlane.f32.xlu0 %v69
  %v71 = vpop.xlane.xlu0 %70
  %v72 = vsel %vm62, %v47, 0.0
  %73 = vadd.xlane.f32.xlu0 %v72
  %v74 = vpop.xlane.xlu0 %73
  %v75 = vsel %vm62, %v48, 0.0
  %76 = vadd.xlane.f32.xlu0 %v75
  %v77 = vpop.xlane.xlu0 %76
  %v78 = vsel %vm62, %v49, 0.0
  %79 = vadd.xlane.f32.xlu0 %v78
  %v80 = vpop.xlane.xlu0 %79
  %v81 = vsel %vm62, %v50, 0.0
  %82 = vadd.xlane.f32.xlu0 %v81
  %v83 = vpop.xlane.xlu0 %82
  %v84 = vsel %vm62, %v51, 0.0
  %85 = vadd.xlane.f32.xlu0 %v84
  %v86 = vpop.xlane.xlu0 %85
  %v87 = vsel %vm62, %v52, 0.0
  %88 = vadd.xlane.f32.xlu0 %v87
  %v89 = vpop.xlane.xlu0 %88
  %v90 = vsel %vm62, %v53, 0.0
  %91 = vadd.xlane.f32.xlu0 %v90
  %v92 = vpop.xlane.xlu0 %91
  %v93 = vsel %vm62, %v54, 0.0
  %94 = vadd.xlane.f32.xlu0 %v93
  %v95 = vpop.xlane.xlu0 %94
  %v96 = vsel %vm62, %v55, 0.0
  %97 = vadd.xlane.f32.xlu0 %v96
  %v98 = vpop.xlane.xlu0 %97
  %v99 = vsel %vm62, %v56, 0.0
  %100 = vadd.xlane.f32.xlu0 %v99
  %v101 = vpop.xlane.xlu0 %100
  %v102 = vsel %vm62, %v57, 0.0
  %103 = vadd.xlane.f32.xlu0 %v102
  %v104 = vpop.xlane.xlu0 %103
  %v105 = vsel %vm62, %v58, 0.0
  %106 = vadd.xlane.f32.xlu0 %v105
  %v107 = vpop.xlane.xlu0 %106
  %v108 = vsel %vm62, %v59, 0.0
  %109 = vadd.xlane.f32.xlu0 %v108
  %v110 = vpop.xlane.xlu0 %109
  %v111 = vrcp.pop 32.0
  %v112 = vmul.f32 %v65, %v111
  %v113 = vmul.f32 %v68, %v111
  %v114 = vmul.f32 %v71, %v111
  %v115 = vmul.f32 %v74, %v111
  %v116 = vmul.f32 %v77, %v111
  %v117 = vmul.f32 %v80, %v111
  %v118 = vmul.f32 %v83, %v111
  %v119 = vmul.f32 %v86, %v111
  %v120 = vmul.f32 %v89, %v111
  %v121 = vmul.f32 %v92, %v111
  %v122 = vmul.f32 %v95, %v111
  %v123 = vmul.f32 %v98, %v111
  %v124 = vmul.f32 %v101, %v111
  %v125 = vmul.f32 %v104, %v111
  %v126 = vmul.f32 %v107, %v111
  %v127 = vmul.f32 %v110, %v111
  %v128 = vsub.f32 %v44, %v112
  %v129 = vsub.f32 %v45, %v113
  %v130 = vsub.f32 %v46, %v114
  %v131 = vsub.f32 %v47, %v115
  %v132 = vsub.f32 %v48, %v116
  %v133 = vsub.f32 %v49, %v117
  %v134 = vsub.f32 %v50, %v118
  %v135 = vsub.f32 %v51, %v119
  %v136 = vsub.f32 %v52, %v120
  %v137 = vsub.f32 %v53, %v121
  %v138 = vsub.f32 %v54, %v122
  %v139 = vsub.f32 %v55, %v123
  %v140 = vsub.f32 %v56, %v124
  %v141 = vsub.f32 %v57, %v125
  %v142 = vsub.f32 %v58, %v126
  %v143 = vsub.f32 %v59, %v127
  %v144 = vmul.f32 %v128, %v128
  %v145 = vmul.f32 %v129, %v129
  %v146 = vmul.f32 %v130, %v130
  %v147 = vmul.f32 %v131, %v131
  %v148 = vmul.f32 %v132, %v132
  %v149 = vmul.f32 %v133, %v133
  %v150 = vmul.f32 %v134, %v134
  %v151 = vmul.f32 %v135, %v135
  %v152 = vmul.f32 %v136, %v136
  %v153 = vmul.f32 %v137, %v137
  %v154 = vmul.f32 %v138, %v138
  %v155 = vmul.f32 %v139, %v139
  %v156 = vmul.f32 %v140, %v140
  %v157 = vmul.f32 %v141, %v141
  %v158 = vmul.f32 %v142, %v142
  %v159 = vmul.f32 %v143, %v143
  %v160 = vsel %vm62, %v144, 0.0
  %161 = vadd.xlane.f32.xlu0 %v160
  %v162 = vpop.xlane.xlu0 %161
  %v163 = vsel %vm62, %v145, 0.0
  %164 = vadd.xlane.f32.xlu0 %v163
  %v165 = vpop.xlane.xlu0 %164
  %v166 = vsel %vm62, %v146, 0.0
  %167 = vadd.xlane.f32.xlu0 %v166
  %v168 = vpop.xlane.xlu0 %167
  %v169 = vsel %vm62, %v147, 0.0
  %170 = vadd.xlane.f32.xlu0 %v169
  %v171 = vpop.xlane.xlu0 %170
  %v172 = vsel %vm62, %v148, 0.0
  %173 = vadd.xlane.f32.xlu0 %v172
  %v174 = vpop.xlane.xlu0 %173
  %v175 = vsel %vm62, %v149, 0.0
  %176 = vadd.xlane.f32.xlu0 %v175
  %v177 = vpop.xlane.xlu0 %176
  %v178 = vsel %vm62, %v150, 0.0
  %179 = vadd.xlane.f32.xlu0 %v178
  %v180 = vpop.xlane.xlu0 %179
  %v181 = vsel %vm62, %v151, 0.0
  %182 = vadd.xlane.f32.xlu0 %v181
  %v183 = vpop.xlane.xlu0 %182
  %v184 = vsel %vm62, %v152, 0.0
  %185 = vadd.xlane.f32.xlu0 %v184
  %v186 = vpop.xlane.xlu0 %185
  %v187 = vsel %vm62, %v153, 0.0
  %188 = vadd.xlane.f32.xlu0 %v187
  %v189 = vpop.xlane.xlu0 %188
  %v190 = vsel %vm62, %v154, 0.0
  %191 = vadd.xlane.f32.xlu0 %v190
  %v192 = vpop.xlane.xlu0 %191
  %v193 = vsel %vm62, %v155, 0.0
  %194 = vadd.xlane.f32.xlu0 %v193
  %v195 = vpop.xlane.xlu0 %194
  %v196 = vsel %vm62, %v156, 0.0
  %197 = vadd.xlane.f32.xlu0 %v196
  %v198 = vpop.xlane.xlu0 %197
  %v199 = vsel %vm62, %v157, 0.0
  %200 = vadd.xlane.f32.xlu0 %v199
  %v201 = vpop.xlane.xlu0 %200
  %v202 = vsel %vm62, %v158, 0.0
  %203 = vadd.xlane.f32.xlu0 %v202
  %v204 = vpop.xlane.xlu0 %203
  %v205 = vsel %vm62, %v159, 0.0
  %206 = vadd.xlane.f32.xlu0 %v205
  %v207 = vpop.xlane.xlu0 %206
  %v208 = vmul.f32 %v162, %v111
  %v209 = vmul.f32 %v165, %v111
  %v210 = vmul.f32 %v168, %v111
  %v211 = vmul.f32 %v171, %v111
  %v212 = vmul.f32 %v174, %v111
  %v213 = vmul.f32 %v177, %v111
  %v214 = vmul.f32 %v180, %v111
  %v215 = vmul.f32 %v183, %v111
  %v216 = vmul.f32 %v186, %v111
  %v217 = vmul.f32 %v189, %v111
  %v218 = vmul.f32 %v192, %v111
  %v219 = vmul.f32 %v195, %v111
  %v220 = vmul.f32 %v198, %v111
  %v221 = vmul.f32 %v201, %v111
  %v222 = vmul.f32 %v204, %v111
  %v223 = vmul.f32 %v207, %v111
  %v224 = vadd.f32 %v208, 1e-05
  %v225 = vadd.f32 %v209, 1e-05
  %v226 = vadd.f32 %v210, 1e-05
  %v227 = vadd.f32 %v211, 1e-05
  %v228 = vadd.f32 %v212, 1e-05
  %v229 = vadd.f32 %v213, 1e-05
  %v230 = vadd.f32 %v214, 1e-05
  %v231 = vadd.f32 %v215, 1e-05
  %v232 = vadd.f32 %v216, 1e-05
  %v233 = vadd.f32 %v217, 1e-05
  %v234 = vadd.f32 %v218, 1e-05
  %v235 = vadd.f32 %v219, 1e-05
  %v236 = vadd.f32 %v220, 1e-05
  %v237 = vadd.f32 %v221, 1e-05
  %v238 = vadd.f32 %v222, 1e-05
  %v239 = vadd.f32 %v223, 1e-05
  %v240 = vrsqrt.pop %v224
  %v241 = vrsqrt.pop %v225
  %v242 = vrsqrt.pop %v226
  %v243 = vrsqrt.pop %v227
  %v244 = vrsqrt.pop %v228
  %v245 = vrsqrt.pop %v229
  %v246 = vrsqrt.pop %v230
  %v247 = vrsqrt.pop %v231
  %v248 = vrsqrt.pop %v232
  %v249 = vrsqrt.pop %v233
  %v250 = vrsqrt.pop %v234
  %v251 = vrsqrt.pop %v235
  %v252 = vrsqrt.pop %v236
  %v253 = vrsqrt.pop %v237
  %v254 = vrsqrt.pop %v238
  %v255 = vrsqrt.pop %v239
  %v256 = vmul.f32 %v128, %v240
  %v257 = vmul.f32 %v129, %v241
  %v258 = vmul.f32 %v130, %v242
  %v259 = vmul.f32 %v131, %v243
  %v260 = vmul.f32 %v132, %v244
  %v261 = vmul.f32 %v133, %v245
  %v262 = vmul.f32 %v134, %v246
  %v263 = vmul.f32 %v135, %v247
  %v264 = vmul.f32 %v136, %v248
  %v265 = vmul.f32 %v137, %v249
  %v266 = vmul.f32 %v138, %v250
  %v267 = vmul.f32 %v139, %v251
  %v268 = vmul.f32 %v140, %v252
  %v269 = vmul.f32 %v141, %v253
  %v270 = vmul.f32 %v142, %v254
  %v271 = vmul.f32 %v143, %v255
  %v273 = vlaneseq
  %v274 = vshrl.u32 %v273, 7
  %v275 = vsub.s32 0, %v274
  %v276 = vrot.slane %v60, %v275
  %v278 = vmul.f32 %v256, %v276
  %v279 = vmul.f32 %v257, %v276
  %v280 = vmul.f32 %v258, %v276
  %v281 = vmul.f32 %v259, %v276
  %v282 = vmul.f32 %v260, %v276
  %v283 = vmul.f32 %v261, %v276
  %v284 = vmul.f32 %v262, %v276
  %v285 = vmul.f32 %v263, %v276
  %v286 = vmul.f32 %v264, %v276
  %v287 = vmul.f32 %v265, %v276
  %v288 = vmul.f32 %v266, %v276
  %v289 = vmul.f32 %v267, %v276
  %v290 = vmul.f32 %v268, %v276
  %v291 = vmul.f32 %v269, %v276
  %v292 = vmul.f32 %v270, %v276
  %v293 = vmul.f32 %v271, %v276
  %v295 = vlaneseq
  %v296 = vshrl.u32 %v295, 7
  %v297 = vsub.s32 0, %v296
  %v298 = vrot.slane %v61, %v297
  %v300 = vadd.f32 %v278, %v298
  %v301 = vadd.f32 %v279, %v298
  %v302 = vadd.f32 %v280, %v298
  %v303 = vadd.f32 %v281, %v298
  %v304 = vadd.f32 %v282, %v298
  %v305 = vadd.f32 %v283, %v298
  %v306 = vadd.f32 %v284, %v298
  %v307 = vadd.f32 %v285, %v298
  %v308 = vadd.f32 %v286, %v298
  %v309 = vadd.f32 %v287, %v298
  %v310 = vadd.f32 %v288, %v298
  %v311 = vadd.f32 %v289, %v298
  %v312 = vadd.f32 %v290, %v298
  %v313 = vadd.f32 %v291, %v298
  %v314 = vadd.f32 %v292, %v298
  %v315 = vadd.f32 %v293, %v298
  %v316 = vld [vmem:[%s3] sm:$0xff]
  %v317 = vld [vmem:[%s3 + $0x8] sm:$0xff]
  %v318 = vld [vmem:[%s3 + $0x10] sm:$0xff]
  %v319 = vld [vmem:[%s3 + $0x18] sm:$0xff]
  %v320 = vld [vmem:[%s4] sm:$0x1]
  %v322 = vlaneseq
  %v323 = vshrl.u32 %v322, 7
  %v324 = vsub.s32 0, %v323
  %v325 = vrot.slane %v320, %v324
  %v328 = vsel %vm62, %v300, 0
  %v331 = vsel %vm62, %v301, 0
  %v334 = vsel %vm62, %v302, 0
  %v337 = vsel %vm62, %v303, 0
  %v340 = vsel %vm62, %v304, 0
  %v343 = vsel %vm62, %v305, 0
  %v346 = vsel %vm62, %v306, 0
  %v349 = vsel %vm62, %v307, 0
  %v352 = vsel %vm62, %v308, 0
  %v355 = vsel %vm62, %v309, 0
  %v358 = vsel %vm62, %v310, 0
  %v361 = vsel %vm62, %v311, 0
  %v364 = vsel %vm62, %v312, 0
  %v367 = vsel %vm62, %v313, 0
  %v370 = vsel %vm62, %v314, 0
  %v373 = vsel %vm62, %v315, 0
  %375 = vmatprep.subr.mxu0 0.0
  %376 = vmatpush1.msra.mxu0 %v316
  %377 = vmatprep.subr.mxu0 0.0
  %378 = vmatpush1.msra.mxu0 %v317
  %379 = vmatprep.subr.mxu0 0.0
  %380 = vmatpush1.msra.mxu0 %v318
  %381 = vmatprep.subr.mxu0 0.0
  %382 = vmatpush1.msra.mxu0 %v319
  %383 = vmatprep.subr.mxu0 0.0
  %384 = vmatpush1.msra.mxu0 0.0
  %385 = vmatprep.subr.mxu0 0.0
  %386 = vmatpush1.msra.mxu0 0.0
  %387 = vmatprep.subr.mxu0 0.0
  %388 = vmatpush1.msra.mxu0 0.0
  %389 = vmatprep.subr.mxu0 0.0
  %390 = vmatpush1.msra.mxu0 0.0
  %391 = vmatprep.subr.mxu0 0.0
  %392 = vmatpush1.msra.mxu0 0.0
  %393 = vmatprep.subr.mxu0 0.0
  %394 = vmatpush1.msra.mxu0 0.0
  %395 = vmatprep.subr.mxu0 0.0
  %396 = vmatpush1.msra.mxu0 0.0
  %397 = vmatprep.subr.mxu0 0.0
  %398 = vmatpush1.msra.mxu0 0.0
  %399 = vmatprep.subr.mxu0 0.0
  %400 = vmatpush1.msra.mxu0 0.0
  %401 = vmatprep.subr.mxu0 0.0
  %402 = vmatpush1.msra.mxu0 0.0
  %403 = vmatprep.subr.mxu0 0.0
  %404 = vmatpush1.msra.mxu0 0.0
  %405 = vmatprep.subr.mxu0 0.0
  %406 = vmatpush1.msra.mxu0 0.0
  %407 = vmatprep.subr.mxu0 0.0
  %408 = vmatpush1.msra.mxu0 0.0
  %409 = vmatprep.subr.mxu0 0.0
  %410 = vmatpush1.msra.mxu0 0.0
  %411 = vmatprep.subr.mxu0 0.0
  %412 = vmatpush1.msra.mxu0 0.0
  %413 = vmatprep.subr.mxu0 0.0
  %414 = vmatpush1.msra.mxu0 0.0
  %415 = vmatprep.subr.mxu0 0.0
  %416 = vmatpush1.msra.mxu0 0.0
  %417 = vmatprep.subr.mxu0 0.0
  %418 = vmatpush1.msra.mxu0 0.0
  %419 = vmatprep.subr.mxu0 0.0
  %420 = vmatpush1.msra.mxu0 0.0
  %421 = vmatprep.subr.mxu0 0.0
  %422 = vmatpush1.msra.mxu0 0.0
  %423 = vmatprep.subr.mxu0 0.0
  %424 = vmatpush1.msra.mxu0 0.0
  %425 = vmatprep.subr.mxu0 0.0
  %426 = vmatpush1.msra.mxu0 0.0
  %427 = vmatprep.subr.mxu0 0.0
  %428 = vmatpush1.msra.mxu0 0.0
  %429 = vmatprep.subr.mxu0 0.0
  %430 = vmatpush1.msra.mxu0 0.0
  %431 = vmatprep.subr.mxu0 0.0
  %432 = vmatpush1.msra.mxu0 0.0
  %433 = vmatprep.subr.mxu0 0.0
  %434 = vmatpush1.msra.mxu0 0.0
  %435 = vmatprep.subr.mxu0 0.0
  %436 = vmatpush1.msra.mxu0 0.0
  %437 = vmatprep.subr.mxu0 0.0
  %438 = vmatpush1.msra.mxu0 0.0
  %439 = vmatprep.mubr.f32.mxu0 0.0
  %440 = vmatmul.mubr.f32.gmra.mrb[0].mxu0 %v328
  %v441 = vpop.f32.mrb[0].mxu0
  %v442 = vadd.f32 %v325, %v441
  %v443 = vpop.f32.mrb[0].mxu0
  %444 = vmatprep.mubr.f32.mxu0 0.0
  %445 = vmatmul.mubr.f32.gmra.mrb[0].mxu0 %v331
  %v446 = vpop.f32.mrb[0].mxu0
  %v447 = vadd.f32 %v325, %v446
  %v448 = vpop.f32.mrb[0].mxu0
  %449 = vmatprep.mubr.f32.mxu0 0.0
  %450 = vmatmul.mubr.f32.gmra.mrb[0].mxu0 %v334
  %v451 = vpop.f32.mrb[0].mxu0
  %v452 = vadd.f32 %v325, %v451
  %v453 = vpop.f32.mrb[0].mxu0
  %454 = vmatprep.mubr.f32.mxu0 0.0
  %455 = vmatmul.mubr.f32.gmra.mrb[0].mxu0 %v337
  %v456 = vpop.f32.mrb[0].mxu0
  %v457 = vadd.f32 %v325, %v456
  %v458 = vpop.f32.mrb[0].mxu0
  %459 = vmatprep.mubr.f32.mxu0 0.0
  %460 = vmatmul.mubr.f32.gmra.mrb[0].mxu0 %v340
  %v461 = vpop.f32.mrb[0].mxu0
  %v462 = vadd.f32 %v325, %v461
  %v463 = vpop.f32.mrb[0].mxu0
  %464 = vmatprep.mubr.f32.mxu0 0.0
  %465 = vmatmul.mubr.f32.gmra.mrb[0].mxu0 %v343
  %v466 = vpop.f32.mrb[0].mxu0
  %v467 = vadd.f32 %v325, %v466
  %v468 = vpop.f32.mrb[0].mxu0
  %469 = vmatprep.mubr.f32.mxu0 0.0
  %470 = vmatmul.mubr.f32.gmra.mrb[0].mxu0 %v346
  %v471 = vpop.f32.mrb[0].mxu0
  %v472 = vadd.f32 %v325, %v471
  %v473 = vpop.f32.mrb[0].mxu0
  %474 = vmatprep.mubr.f32.mxu0 0.0
  %475 = vmatmul.mubr.f32.gmra.mrb[0].mxu0 %v349
  %v476 = vpop.f32.mrb[0].mxu0
  %v477 = vadd.f32 %v325, %v476
  %v478 = vpop.f32.mrb[0].mxu0
  %479 = vmatprep.mubr.f32.mxu0 0.0
  %480 = vmatmul.mubr.f32.gmra.mrb[0].mxu0 %v352
  %v481 = vpop.f32.mrb[0].mxu0
  %v482 = vadd.f32 %v325, %v481
  %v483 = vpop.f32.mrb[0].mxu0
  %484 = vmatprep.mubr.f32.mxu0 0.0
  %485 = vmatmul.mubr.f32.gmra.mrb[0].mxu0 %v355
  %v486 = vpop.f32.mrb[0].mxu0
  %v487 = vadd.f32 %v325, %v486
  %v488 = vpop.f32.mrb[0].mxu0
  %489 = vmatprep.mubr.f32.mxu0 0.0
  %490 = vmatmul.mubr.f32.gmra.mrb[0].mxu0 %v358
  %v491 = vpop.f32.mrb[0].mxu0
  %v492 = vadd.f32 %v325, %v491
  %v493 = vpop.f32.mrb[0].mxu0
  %494 = vmatprep.mubr.f32.mxu0 0.0
  %495 = vmatmul.mubr.f32.gmra.mrb[0].mxu0 %v361
  %v496 = vpop.f32.mrb[0].mxu0
  %v497 = vadd.f32 %v325, %v496
  %v498 = vpop.f32.mrb[0].mxu0
  %499 = vmatprep.mubr.f32.mxu0 0.0
  %500 = vmatmul.mubr.f32.gmra.mrb[0].mxu0 %v364
  %v501 = vpop.f32.mrb[0].mxu0
  %v502 = vadd.f32 %v325, %v501
  %v503 = vpop.f32.mrb[0].mxu0
  %504 = vmatprep.mubr.f32.mxu0 0.0
  %505 = vmatmul.mubr.f32.gmra.mrb[0].mxu0 %v367
  %v506 = vpop.f32.mrb[0].mxu0
  %v507 = vadd.f32 %v325, %v506
  %v508 = vpop.f32.mrb[0].mxu0
  %509 = vmatprep.mubr.f32.mxu0 0.0
  %510 = vmatmul.mubr.f32.gmra.mrb[0].mxu0 %v370
  %v511 = vpop.f32.mrb[0].mxu0
  %v512 = vadd.f32 %v325, %v511
  %v513 = vpop.f32.mrb[0].mxu0
  %514 = vmatprep.mubr.f32.mxu0 0.0
  %515 = vmatmul.mubr.f32.gmra.mrb[0].mxu0 %v373
  %v516 = vpop.f32.mrb[0].mxu0
  %v517 = vadd.f32 %v325, %v516
  %v518 = vpop.f32.mrb[0].mxu0
  %519 = vdwg.mxu0
  %536 = vrot.lane.b32.xlu0 %v442, 120
  %v537 = vpop.permute.xlu0 %536
  %538 = vrot.lane.b32.xlu0 %v447, 120
  %v539 = vpop.permute.xlu0 %538
  %540 = vrot.lane.b32.xlu0 %v452, 120
  %v541 = vpop.permute.xlu0 %540
  %542 = vrot.lane.b32.xlu0 %v457, 120
  %v543 = vpop.permute.xlu0 %542
  %544 = vrot.lane.b32.xlu0 %v462, 120
  %v545 = vpop.permute.xlu0 %544
  %546 = vrot.lane.b32.xlu0 %v467, 120
  %v547 = vpop.permute.xlu0 %546
  %548 = vrot.lane.b32.xlu0 %v472, 120
  %v549 = vpop.permute.xlu0 %548
  %550 = vrot.lane.b32.xlu0 %v477, 120
  %v551 = vpop.permute.xlu0 %550
  %552 = vrot.lane.b32.xlu0 %v482, 120
  %v553 = vpop.permute.xlu0 %552
  %554 = vrot.lane.b32.xlu0 %v487, 120
  %v555 = vpop.permute.xlu0 %554
  %556 = vrot.lane.b32.xlu0 %v492, 120
  %v557 = vpop.permute.xlu0 %556
  %558 = vrot.lane.b32.xlu0 %v497, 120
  %v559 = vpop.permute.xlu0 %558
  %560 = vrot.lane.b32.xlu0 %v502, 120
  %v561 = vpop.permute.xlu0 %560
  %562 = vrot.lane.b32.xlu0 %v507, 120
  %v563 = vpop.permute.xlu0 %562
  %564 = vrot.lane.b32.xlu0 %v512, 120
  %v565 = vpop.permute.xlu0 %564
  %566 = vrot.lane.b32.xlu0 %v517, 120
  %v567 = vpop.permute.xlu0 %566
  %568 = vrot.lane.b32.xlu0 %v442, 112
  %v569 = vpop.permute.xlu0 %568
  %570 = vrot.lane.b32.xlu0 %v447, 112
  %v571 = vpop.permute.xlu0 %570
  %572 = vrot.lane.b32.xlu0 %v452, 112
  %v573 = vpop.permute.xlu0 %572
  %574 = vrot.lane.b32.xlu0 %v457, 112
  %v575 = vpop.permute.xlu0 %574
  %576 = vrot.lane.b32.xlu0 %v462, 112
  %v577 = vpop.permute.xlu0 %576
  %578 = vrot.lane.b32.xlu0 %v467, 112
  %v579 = vpop.permute.xlu0 %578
  %580 = vrot.lane.b32.xlu0 %v472, 112
  %v581 = vpop.permute.xlu0 %580
  %582 = vrot.lane.b32.xlu0 %v477, 112
  %v583 = vpop.permute.xlu0 %582
  %584 = vrot.lane.b32.xlu0 %v482, 112
  %v585 = vpop.permute.xlu0 %584
  %586 = vrot.lane.b32.xlu0 %v487, 112
  %v587 = vpop.permute.xlu0 %586
  %588 = vrot.lane.b32.xlu0 %v492, 112
  %v589 = vpop.permute.xlu0 %588
  %590 = vrot.lane.b32.xlu0 %v497, 112
  %v591 = vpop.permute.xlu0 %590
  %592 = vrot.lane.b32.xlu0 %v502, 112
  %v593 = vpop.permute.xlu0 %592
  %594 = vrot.lane.b32.xlu0 %v507, 112
  %v595 = vpop.permute.xlu0 %594
  %596 = vrot.lane.b32.xlu0 %v512, 112
  %v597 = vpop.permute.xlu0 %596
  %598 = vrot.lane.b32.xlu0 %v517, 112
  %v599 = vpop.permute.xlu0 %598
  %600 = vrot.lane.b32.xlu0 %v442, 104
  %v601 = vpop.permute.xlu0 %600
  %602 = vrot.lane.b32.xlu0 %v447, 104
  %v603 = vpop.permute.xlu0 %602
  %604 = vrot.lane.b32.xlu0 %v452, 104
  %v605 = vpop.permute.xlu0 %604
  %606 = vrot.lane.b32.xlu0 %v457, 104
  %v607 = vpop.permute.xlu0 %606
  %608 = vrot.lane.b32.xlu0 %v462, 104
  %v609 = vpop.permute.xlu0 %608
  %610 = vrot.lane.b32.xlu0 %v467, 104
  %v611 = vpop.permute.xlu0 %610
  %612 = vrot.lane.b32.xlu0 %v472, 104
  %v613 = vpop.permute.xlu0 %612
  %614 = vrot.lane.b32.xlu0 %v477, 104
  %v615 = vpop.permute.xlu0 %614
  %616 = vrot.lane.b32.xlu0 %v482, 104
  %v617 = vpop.permute.xlu0 %616
  %618 = vrot.lane.b32.xlu0 %v487, 104
  %v619 = vpop.permute.xlu0 %618
  %620 = vrot.lane.b32.xlu0 %v492, 104
  %v621 = vpop.permute.xlu0 %620
  %622 = vrot.lane.b32.xlu0 %v497, 104
  %v623 = vpop.permute.xlu0 %622
  %624 = vrot.lane.b32.xlu0 %v502, 104
  %v625 = vpop.permute.xlu0 %624
  %626 = vrot.lane.b32.xlu0 %v507, 104
  %v627 = vpop.permute.xlu0 %626
  %628 = vrot.lane.b32.xlu0 %v512, 104
  %v629 = vpop.permute.xlu0 %628
  %630 = vrot.lane.b32.xlu0 %v517, 104
  %v631 = vpop.permute.xlu0 %630
  %632 = vrot.lane.b32.xlu0 %v442, 96
  %v633 = vpop.permute.xlu0 %632
  %634 = vrot.lane.b32.xlu0 %v447, 96
  %v635 = vpop.permute.xlu0 %634
  %636 = vrot.lane.b32.xlu0 %v452, 96
  %v637 = vpop.permute.xlu0 %636
  %638 = vrot.lane.b32.xlu0 %v457, 96
  %v639 = vpop.permute.xlu0 %638
  %640 = vrot.lane.b32.xlu0 %v462, 96
  %v641 = vpop.permute.xlu0 %640
  %642 = vrot.lane.b32.xlu0 %v467, 96
  %v643 = vpop.permute.xlu0 %642
  %644 = vrot.lane.b32.xlu0 %v472, 96
  %v645 = vpop.permute.xlu0 %644
  %646 = vrot.lane.b32.xlu0 %v477, 96
  %v647 = vpop.permute.xlu0 %646
  %vm648 = vcmask 64512
  %v649 = vsel %vm648, %v442, 0
  %v651 = vsel %vm648, %v447, 0
  %v653 = vsel %vm648, %v452, 0
  %v655 = vsel %vm648, %v457, 0
  %v657 = vsel %vm648, %v462, 0
  %v659 = vsel %vm648, %v467, 0
  %v661 = vsel %vm648, %v472, 0
  %v663 = vsel %vm648, %v477, 0
  %v665 = vsel %vm648, %v633, 0
  %v667 = vsel %vm648, %v635, 0
  %v669 = vsel %vm648, %v637, 0
  %v671 = vsel %vm648, %v639, 0
  %v673 = vsel %vm648, %v641, 0
  %v675 = vsel %vm648, %v643, 0
  %v677 = vsel %vm648, %v645, 0
  %v679 = vsel %vm648, %v647, 0
  %681 = vmatprep.subr.mxu0 0.0
  %682 = vmatpush1.xpose.msra.mxu0 %v665
  %683 = vmatprep.subr.mxu0 0.0
  %684 = vmatpush1.xpose.msra.mxu0 %v667
  %685 = vmatprep.subr.mxu0 0.0
  %686 = vmatpush1.xpose.msra.mxu0 %v669
  %687 = vmatprep.subr.mxu0 0.0
  %688 = vmatpush1.xpose.msra.mxu0 %v671
  %689 = vmatprep.subr.mxu0 0.0
  %690 = vmatpush1.xpose.msra.mxu0 %v673
  %691 = vmatprep.subr.mxu0 0.0
  %692 = vmatpush1.xpose.msra.mxu0 %v675
  %693 = vmatprep.subr.mxu0 0.0
  %694 = vmatpush1.xpose.msra.mxu0 %v677
  %695 = vmatprep.subr.mxu0 0.0
  %696 = vmatpush1.xpose.msra.mxu0 %v679
  %697 = vmatprep.subr.mxu0 0.0
  %698 = vmatpush1.xpose.msra.mxu0 0.0
  %699 = vmatprep.subr.mxu0 0.0
  %700 = vmatpush1.xpose.msra.mxu0 0.0
  %701 = vmatprep.subr.mxu0 0.0
  %702 = vmatpush1.xpose.msra.mxu0 0.0
  %703 = vmatprep.subr.mxu0 0.0
  %704 = vmatpush1.xpose.msra.mxu0 0.0
  %705 = vmatprep.subr.mxu0 0.0
  %706 = vmatpush1.xpose.msra.mxu0 0.0
  %707 = vmatprep.subr.mxu0 0.0
  %708 = vmatpush1.xpose.msra.mxu0 0.0
  %709 = vmatprep.subr.mxu0 0.0
  %710 = vmatpush1.xpose.msra.mxu0 0.0
  %711 = vmatprep.subr.mxu0 0.0
  %712 = vmatpush1.xpose.msra.mxu0 0.0
  %713 = vmatprep.subr.mxu0 0.0
  %714 = vmatpush1.xpose.msra.mxu0 0.0
  %715 = vmatprep.subr.mxu0 0.0
  %716 = vmatpush1.xpose.msra.mxu0 0.0
  %717 = vmatprep.subr.mxu0 0.0
  %718 = vmatpush1.xpose.msra.mxu0 0.0
  %719 = vmatprep.subr.mxu0 0.0
  %720 = vmatpush1.xpose.msra.mxu0 0.0
  %721 = vmatprep.subr.mxu0 0.0
  %722 = vmatpush1.xpose.msra.mxu0 0.0
  %723 = vmatprep.subr.mxu0 0.0
  %724 = vmatpush1.xpose.msra.mxu0 0.0
  %725 = vmatprep.subr.mxu0 0.0
  %726 = vmatpush1.xpose.msra.mxu0 0.0
  %727 = vmatprep.subr.mxu0 0.0
  %728 = vmatpush1.xpose.msra.mxu0 0.0
  %729 = vmatprep.subr.mxu0 0.0
  %730 = vmatpush1.xpose.msra.mxu0 0.0
  %731 = vmatprep.subr.mxu0 0.0
  %732 = vmatpush1.xpose.msra.mxu0 0.0
  %733 = vmatprep.subr.mxu0 0.0
  %734 = vmatpush1.xpose.msra.mxu0 0.0
  %735 = vmatprep.subr.mxu0 0.0
  %736 = vmatpush1.xpose.msra.mxu0 0.0
  %737 = vmatprep.subr.mxu0 0.0
  %738 = vmatpush1.xpose.msra.mxu0 0.0
  %739 = vmatprep.subr.mxu0 0.0
  %740 = vmatpush1.xpose.msra.mxu0 0.0
  %741 = vmatprep.subr.mxu0 0.0
  %742 = vmatpush1.xpose.msra.mxu0 0.0
  %743 = vmatprep.subr.mxu0 0.0
  %744 = vmatpush1.xpose.msra.mxu0 0.0
  %745 = vmatprep.mubr.f32.mxu0 0.0
  %746 = vmatmul.mubr.f32.gmra.mrb[0].mxu0 %v649
  %v747 = vpop.f32.mrb[0].mxu0
  %v748 = vadd.f32 0.0, %v747
  %v749 = vpop.f32.mrb[0].mxu0
  %750 = vmatprep.mubr.f32.mxu0 0.0
  %751 = vmatmul.mubr.f32.gmra.mrb[0].mxu0 %v651
  %v752 = vpop.f32.mrb[0].mxu0
  %v753 = vadd.f32 0.0, %v752
  %v754 = vpop.f32.mrb[0].mxu0
  %755 = vmatprep.mubr.f32.mxu0 0.0
  %756 = vmatmul.mubr.f32.gmra.mrb[0].mxu0 %v653
  %v757 = vpop.f32.mrb[0].mxu0
  %v758 = vadd.f32 0.0, %v757
  %v759 = vpop.f32.mrb[0].mxu0
  %760 = vmatprep.mubr.f32.mxu0 0.0
  %761 = vmatmul.mubr.f32.gmra.mrb[0].mxu0 %v655
  %v762 = vpop.f32.mrb[0].mxu0
  %v763 = vadd.f32 0.0, %v762
  %v764 = vpop.f32.mrb[0].mxu0
  %765 = vmatprep.mubr.f32.mxu0 0.0
  %766 = vmatmul.mubr.f32.gmra.mrb[0].mxu0 %v657
  %v767 = vpop.f32.mrb[0].mxu0
  %v768 = vadd.f32 0.0, %v767
  %v769 = vpop.f32.mrb[0].mxu0
  %770 = vmatprep.mubr.f32.mxu0 0.0
  %771 = vmatmul.mubr.f32.gmra.mrb[0].mxu0 %v659
  %v772 = vpop.f32.mrb[0].mxu0
  %v773 = vadd.f32 0.0, %v772
  %v774 = vpop.f32.mrb[0].mxu0
  %775 = vmatprep.mubr.f32.mxu0 0.0
  %776 = vmatmul.mubr.f32.gmra.mrb[0].mxu0 %v661
  %v777 = vpop.f32.mrb[0].mxu0
  %v778 = vadd.f32 0.0, %v777
  %v779 = vpop.f32.mrb[0].mxu0
  %780 = vmatprep.mubr.f32.mxu0 0.0
  %781 = vmatmul.mubr.f32.gmra.mrb[0].mxu0 %v663
  %v782 = vpop.f32.mrb[0].mxu0
  %v783 = vadd.f32 0.0, %v782
  %v784 = vpop.f32.mrb[0].mxu0
  %785 = vdwg.mxu0
  %786 = vrot.lane.b32.xlu0 %v482, 96
  %v787 = vpop.permute.xlu0 %786
  %788 = vrot.lane.b32.xlu0 %v487, 96
  %v789 = vpop.permute.xlu0 %788
  %790 = vrot.lane.b32.xlu0 %v492, 96
  %v791 = vpop.permute.xlu0 %790
  %792 = vrot.lane.b32.xlu0 %v497, 96
  %v793 = vpop.permute.xlu0 %792
  %794 = vrot.lane.b32.xlu0 %v502, 96
  %v795 = vpop.permute.xlu0 %794
  %796 = vrot.lane.b32.xlu0 %v507, 96
  %v797 = vpop.permute.xlu0 %796
  %798 = vrot.lane.b32.xlu0 %v512, 96
  %v799 = vpop.permute.xlu0 %798
  %800 = vrot.lane.b32.xlu0 %v517, 96
  %v801 = vpop.permute.xlu0 %800
  %v802 = vsel %vm648, %v482, 0
  %v804 = vsel %vm648, %v487, 0
  %v806 = vsel %vm648, %v492, 0
  %v808 = vsel %vm648, %v497, 0
  %v810 = vsel %vm648, %v502, 0
  %v812 = vsel %vm648, %v507, 0
  %v814 = vsel %vm648, %v512, 0
  %v816 = vsel %vm648, %v517, 0
  %v818 = vsel %vm648, %v787, 0
  %v820 = vsel %vm648, %v789, 0
  %v822 = vsel %vm648, %v791, 0
  %v824 = vsel %vm648, %v793, 0
  %v826 = vsel %vm648, %v795, 0
  %v828 = vsel %vm648, %v797, 0
  %v830 = vsel %vm648, %v799, 0
  %v832 = vsel %vm648, %v801, 0
  %834 = vmatprep.subr.mxu0 0.0
  %835 = vmatpush1.xpose.msra.mxu0 %v818
  %836 = vmatprep.subr.mxu0 0.0
  %837 = vmatpush1.xpose.msra.mxu0 %v820
  %838 = vmatprep.subr.mxu0 0.0
  %839 = vmatpush1.xpose.msra.mxu0 %v822
  %840 = vmatprep.subr.mxu0 0.0
  %841 = vmatpush1.xpose.msra.mxu0 %v824
  %842 = vmatprep.subr.mxu0 0.0
  %843 = vmatpush1.xpose.msra.mxu0 %v826
  %844 = vmatprep.subr.mxu0 0.0
  %845 = vmatpush1.xpose.msra.mxu0 %v828
  %846 = vmatprep.subr.mxu0 0.0
  %847 = vmatpush1.xpose.msra.mxu0 %v830
  %848 = vmatprep.subr.mxu0 0.0
  %849 = vmatpush1.xpose.msra.mxu0 %v832
  %850 = vmatprep.subr.mxu0 0.0
  %851 = vmatpush1.xpose.msra.mxu0 0.0
  %852 = vmatprep.subr.mxu0 0.0
  %853 = vmatpush1.xpose.msra.mxu0 0.0
  %854 = vmatprep.subr.mxu0 0.0
  %855 = vmatpush1.xpose.msra.mxu0 0.0
  %856 = vmatprep.subr.mxu0 0.0
  %857 = vmatpush1.xpose.msra.mxu0 0.0
  %858 = vmatprep.subr.mxu0 0.0
  %859 = vmatpush1.xpose.msra.mxu0 0.0
  %860 = vmatprep.subr.mxu0 0.0
  %861 = vmatpush1.xpose.msra.mxu0 0.0
  %862 = vmatprep.subr.mxu0 0.0
  %863 = vmatpush1.xpose.msra.mxu0 0.0
  %864 = vmatprep.subr.mxu0 0.0
  %865 = vmatpush1.xpose.msra.mxu0 0.0
  %866 = vmatprep.subr.mxu0 0.0
  %867 = vmatpush1.xpose.msra.mxu0 0.0
  %868 = vmatprep.subr.mxu0 0.0
  %869 = vmatpush1.xpose.msra.mxu0 0.0
  %870 = vmatprep.subr.mxu0 0.0
  %871 = vmatpush1.xpose.msra.mxu0 0.0
  %872 = vmatprep.subr.mxu0 0.0
  %873 = vmatpush1.xpose.msra.mxu0 0.0
  %874 = vmatprep.subr.mxu0 0.0
  %875 = vmatpush1.xpose.msra.mxu0 0.0
  %876 = vmatprep.subr.mxu0 0.0
  %877 = vmatpush1.xpose.msra.mxu0 0.0
  %878 = vmatprep.subr.mxu0 0.0
  %879 = vmatpush1.xpose.msra.mxu0 0.0
  %880 = vmatprep.subr.mxu0 0.0
  %881 = vmatpush1.xpose.msra.mxu0 0.0
  %882 = vmatprep.subr.mxu0 0.0
  %883 = vmatpush1.xpose.msra.mxu0 0.0
  %884 = vmatprep.subr.mxu0 0.0
  %885 = vmatpush1.xpose.msra.mxu0 0.0
  %886 = vmatprep.subr.mxu0 0.0
  %887 = vmatpush1.xpose.msra.mxu0 0.0
  %888 = vmatprep.subr.mxu0 0.0
  %889 = vmatpush1.xpose.msra.mxu0 0.0
  %890 = vmatprep.subr.mxu0 0.0
  %891 = vmatpush1.xpose.msra.mxu0 0.0
  %892 = vmatprep.subr.mxu0 0.0
  %893 = vmatpush1.xpose.msra.mxu0 0.0
  %894 = vmatprep.subr.mxu0 0.0
  %895 = vmatpush1.xpose.msra.mxu0 0.0
  %896 = vmatprep.subr.mxu0 0.0
  %897 = vmatpush1.xpose.msra.mxu0 0.0
  %898 = vmatprep.mubr.f32.mxu0 0.0
  %899 = vmatmul.mubr.f32.gmra.mrb[0].mxu0 %v802
  %v900 = vpop.f32.mrb[0].mxu0
  %v901 = vadd.f32 0.0, %v900
  %v902 = vpop.f32.mrb[0].mxu0
  %903 = vmatprep.mubr.f32.mxu0 0.0
  %904 = vmatmul.mubr.f32.gmra.mrb[0].mxu0 %v804
  %v905 = vpop.f32.mrb[0].mxu0
  %v906 = vadd.f32 0.0, %v905
  %v907 = vpop.f32.mrb[0].mxu0
  %908 = vmatprep.mubr.f32.mxu0 0.0
  %909 = vmatmul.mubr.f32.gmra.mrb[0].mxu0 %v806
  %v910 = vpop.f32.mrb[0].mxu0
  %v911 = vadd.f32 0.0, %v910
  %v912 = vpop.f32.mrb[0].mxu0
  %913 = vmatprep.mubr.f32.mxu0 0.0
  %914 = vmatmul.mubr.f32.gmra.mrb[0].mxu0 %v808
  %v915 = vpop.f32.mrb[0].mxu0
  %v916 = vadd.f32 0.0, %v915
  %v917 = vpop.f32.mrb[0].mxu0
  %918 = vmatprep.mubr.f32.mxu0 0.0
  %919 = vmatmul.mubr.f32.gmra.mrb[0].mxu0 %v810
  %v920 = vpop.f32.mrb[0].mxu0
  %v921 = vadd.f32 0.0, %v920
  %v922 = vpop.f32.mrb[0].mxu0
  %923 = vmatprep.mubr.f32.mxu0 0.0
  %924 = vmatmul.mubr.f32.gmra.mrb[0].mxu0 %v812
  %v925 = vpop.f32.mrb[0].mxu0
  %v926 = vadd.f32 0.0, %v925
  %v927 = vpop.f32.mrb[0].mxu0
  %928 = vmatprep.mubr.f32.mxu0 0.0
  %929 = vmatmul.mubr.f32.gmra.mrb[0].mxu0 %v814
  %v930 = vpop.f32.mrb[0].mxu0
  %v931 = vadd.f32 0.0, %v930
  %v932 = vpop.f32.mrb[0].mxu0
  %933 = vmatprep.mubr.f32.mxu0 0.0
  %934 = vmatmul.mubr.f32.gmra.mrb[0].mxu0 %v816
  %v935 = vpop.f32.mrb[0].mxu0
  %v936 = vadd.f32 0.0, %v935
  %v937 = vpop.f32.mrb[0].mxu0
  %938 = vdwg.mxu0
  %939 = vrot.lane.b32.xlu0 %v537, 96
  %v940 = vpop.permute.xlu0 %939
  %941 = vrot.lane.b32.xlu0 %v539, 96
  %v942 = vpop.permute.xlu0 %941
  %943 = vrot.lane.b32.xlu0 %v541, 96
  %v944 = vpop.permute.xlu0 %943
  %945 = vrot.lane.b32.xlu0 %v543, 96
  %v946 = vpop.permute.xlu0 %945
  %947 = vrot.lane.b32.xlu0 %v545, 96
  %v948 = vpop.permute.xlu0 %947
  %949 = vrot.lane.b32.xlu0 %v547, 96
  %v950 = vpop.permute.xlu0 %949
  %951 = vrot.lane.b32.xlu0 %v549, 96
  %v952 = vpop.permute.xlu0 %951
  %953 = vrot.lane.b32.xlu0 %v551, 96
  %v954 = vpop.permute.xlu0 %953
  %v955 = vsel %vm648, %v537, 0
  %v957 = vsel %vm648, %v539, 0
  %v959 = vsel %vm648, %v541, 0
  %v961 = vsel %vm648, %v543, 0
  %v963 = vsel %vm648, %v545, 0
  %v965 = vsel %vm648, %v547, 0
  %v967 = vsel %vm648, %v549, 0
  %v969 = vsel %vm648, %v551, 0
  %v971 = vsel %vm648, %v940, 0
  %v973 = vsel %vm648, %v942, 0
  %v975 = vsel %vm648, %v944, 0
  %v977 = vsel %vm648, %v946, 0
  %v979 = vsel %vm648, %v948, 0
  %v981 = vsel %vm648, %v950, 0
  %v983 = vsel %vm648, %v952, 0
  %v985 = vsel %vm648, %v954, 0
  %987 = vmatprep.subr.mxu0 0.0
  %988 = vmatpush1.xpose.msra.mxu0 %v971
  %989 = vmatprep.subr.mxu0 0.0
  %990 = vmatpush1.xpose.msra.mxu0 %v973
  %991 = vmatprep.subr.mxu0 0.0
  %992 = vmatpush1.xpose.msra.mxu0 %v975
  %993 = vmatprep.subr.mxu0 0.0
  %994 = vmatpush1.xpose.msra.mxu0 %v977
  %995 = vmatprep.subr.mxu0 0.0
  %996 = vmatpush1.xpose.msra.mxu0 %v979
  %997 = vmatprep.subr.mxu0 0.0
  %998 = vmatpush1.xpose.msra.mxu0 %v981
  %999 = vmatprep.subr.mxu0 0.0
  %1000 = vmatpush1.xpose.msra.mxu0 %v983
  %1001 = vmatprep.subr.mxu0 0.0
  %1002 = vmatpush1.xpose.msra.mxu0 %v985
  %1003 = vmatprep.subr.mxu0 0.0
  %1004 = vmatpush1.xpose.msra.mxu0 0.0
  %1005 = vmatprep.subr.mxu0 0.0
  %1006 = vmatpush1.xpose.msra.mxu0 0.0
  %1007 = vmatprep.subr.mxu0 0.0
  %1008 = vmatpush1.xpose.msra.mxu0 0.0
  %1009 = vmatprep.subr.mxu0 0.0
  %1010 = vmatpush1.xpose.msra.mxu0 0.0
  %1011 = vmatprep.subr.mxu0 0.0
  %1012 = vmatpush1.xpose.msra.mxu0 0.0
  %1013 = vmatprep.subr.mxu0 0.0
  %1014 = vmatpush1.xpose.msra.mxu0 0.0
  %1015 = vmatprep.subr.mxu0 0.0
  %1016 = vmatpush1.xpose.msra.mxu0 0.0
  %1017 = vmatprep.subr.mxu0 0.0
  %1018 = vmatpush1.xpose.msra.mxu0 0.0
  %1019 = vmatprep.subr.mxu0 0.0
  %1020 = vmatpush1.xpose.msra.mxu0 0.0
  %1021 = vmatprep.subr.mxu0 0.0
  %1022 = vmatpush1.xpose.msra.mxu0 0.0
  %1023 = vmatprep.subr.mxu0 0.0
  %1024 = vmatpush1.xpose.msra.mxu0 0.0
  %1025 = vmatprep.subr.mxu0 0.0
  %1026 = vmatpush1.xpose.msra.mxu0 0.0
  %1027 = vmatprep.subr.mxu0 0.0
  %1028 = vmatpush1.xpose.msra.mxu0 0.0
  %1029 = vmatprep.subr.mxu0 0.0
  %1030 = vmatpush1.xpose.msra.mxu0 0.0
  %1031 = vmatprep.subr.mxu0 0.0
  %1032 = vmatpush1.xpose.msra.mxu0 0.0
  %1033 = vmatprep.subr.mxu0 0.0
  %1034 = vmatpush1.xpose.msra.mxu0 0.0
  %1035 = vmatprep.subr.mxu0 0.0
  %1036 = vmatpush1.xpose.msra.mxu0 0.0
  %1037 = vmatprep.subr.mxu0 0.0
  %1038 = vmatpush1.xpose.msra.mxu0 0.0
  %1039 = vmatprep.subr.mxu0 0.0
  %1040 = vmatpush1.xpose.msra.mxu0 0.0
  %1041 = vmatprep.subr.mxu0 0.0
  %1042 = vmatpush1.xpose.msra.mxu0 0.0
  %1043 = vmatprep.subr.mxu0 0.0
  %1044 = vmatpush1.xpose.msra.mxu0 0.0
  %1045 = vmatprep.subr.mxu0 0.0
  %1046 = vmatpush1.xpose.msra.mxu0 0.0
  %1047 = vmatprep.subr.mxu0 0.0
  %1048 = vmatpush1.xpose.msra.mxu0 0.0
  %1049 = vmatprep.subr.mxu0 0.0
  %1050 = vmatpush1.xpose.msra.mxu0 0.0
  %1051 = vmatprep.mubr.f32.mxu0 0.0
  %1052 = vmatmul.mubr.f32.gmra.mrb[0].mxu0 %v955
  %v1053 = vpop.f32.mrb[0].mxu0
  %v1054 = vadd.f32 0.0, %v1053
  %v1055 = vpop.f32.mrb[0].mxu0
  %1056 = vmatprep.mubr.f32.mxu0 0.0
  %1057 = vmatmul.mubr.f32.gmra.mrb[0].mxu0 %v957
  %v1058 = vpop.f32.mrb[0].mxu0
  %v1059 = vadd.f32 0.0, %v1058
  %v1060 = vpop.f32.mrb[0].mxu0
  %1061 = vmatprep.mubr.f32.mxu0 0.0
  %1062 = vmatmul.mubr.f32.gmra.mrb[0].mxu0 %v959
  %v1063 = vpop.f32.mrb[0].mxu0
  %v1064 = vadd.f32 0.0, %v1063
  %v1065 = vpop.f32.mrb[0].mxu0
  %1066 = vmatprep.mubr.f32.mxu0 0.0
  %1067 = vmatmul.mubr.f32.gmra.mrb[0].mxu0 %v961
  %v1068 = vpop.f32.mrb[0].mxu0
  %v1069 = vadd.f32 0.0, %v1068
  %v1070 = vpop.f32.mrb[0].mxu0
  %1071 = vmatprep.mubr.f32.mxu0 0.0
  %1072 = vmatmul.mubr.f32.gmra.mrb[0].mxu0 %v963
  %v1073 = vpop.f32.mrb[0].mxu0
  %v1074 = vadd.f32 0.0, %v1073
  %v1075 = vpop.f32.mrb[0].mxu0
  %1076 = vmatprep.mubr.f32.mxu0 0.0
  %1077 = vmatmul.mubr.f32.gmra.mrb[0].mxu0 %v965
  %v1078 = vpop.f32.mrb[0].mxu0
  %v1079 = vadd.f32 0.0, %v1078
  %v1080 = vpop.f32.mrb[0].mxu0
  %1081 = vmatprep.mubr.f32.mxu0 0.0
  %1082 = vmatmul.mubr.f32.gmra.mrb[0].mxu0 %v967
  %v1083 = vpop.f32.mrb[0].mxu0
  %v1084 = vadd.f32 0.0, %v1083
  %v1085 = vpop.f32.mrb[0].mxu0
  %1086 = vmatprep.mubr.f32.mxu0 0.0
  %1087 = vmatmul.mubr.f32.gmra.mrb[0].mxu0 %v969
  %v1088 = vpop.f32.mrb[0].mxu0
  %v1089 = vadd.f32 0.0, %v1088
  %v1090 = vpop.f32.mrb[0].mxu0
  %1091 = vdwg.mxu0
  %1092 = vrot.lane.b32.xlu0 %v553, 96
  %v1093 = vpop.permute.xlu0 %1092
  %1094 = vrot.lane.b32.xlu0 %v555, 96
  %v1095 = vpop.permute.xlu0 %1094
  %1096 = vrot.lane.b32.xlu0 %v557, 96
  %v1097 = vpop.permute.xlu0 %1096
  %1098 = vrot.lane.b32.xlu0 %v559, 96
  %v1099 = vpop.permute.xlu0 %1098
  %1100 = vrot.lane.b32.xlu0 %v561, 96
  %v1101 = vpop.permute.xlu0 %1100
  %1102 = vrot.lane.b32.xlu0 %v563, 96
  %v1103 = vpop.permute.xlu0 %1102
  %1104 = vrot.lane.b32.xlu0 %v565, 96
  %v1105 = vpop.permute.xlu0 %1104
  %1106 = vrot.lane.b32.xlu0 %v567, 96
  %v1107 = vpop.permute.xlu0 %1106
  %v1108 = vsel %vm648, %v553, 0
  %v1110 = vsel %vm648, %v555, 0
  %v1112 = vsel %vm648, %v557, 0
  %v1114 = vsel %vm648, %v559, 0
  %v1116 = vsel %vm648, %v561, 0
  %v1118 = vsel %vm648, %v563, 0
  %v1120 = vsel %vm648, %v565, 0
  %v1122 = vsel %vm648, %v567, 0
  %v1124 = vsel %vm648, %v1093, 0
  %v1126 = vsel %vm648, %v1095, 0
  %v1128 = vsel %vm648, %v1097, 0
  %v1130 = vsel %vm648, %v1099, 0
  %v1132 = vsel %vm648, %v1101, 0
  %v1134 = vsel %vm648, %v1103, 0
  %v1136 = vsel %vm648, %v1105, 0
  %v1138 = vsel %vm648, %v1107, 0
  %1140 = vmatprep.subr.mxu0 0.0
  %1141 = vmatpush1.xpose.msra.mxu0 %v1124
  %1142 = vmatprep.subr.mxu0 0.0
  %1143 = vmatpush1.xpose.msra.mxu0 %v1126
  %1144 = vmatprep.subr.mxu0 0.0
  %1145 = vmatpush1.xpose.msra.mxu0 %v1128
  %1146 = vmatprep.subr.mxu0 0.0
  %1147 = vmatpush1.xpose.msra.mxu0 %v1130
  %1148 = vmatprep.subr.mxu0 0.0
  %1149 = vmatpush1.xpose.msra.mxu0 %v1132
  %1150 = vmatprep.subr.mxu0 0.0
  %1151 = vmatpush1.xpose.msra.mxu0 %v1134
  %1152 = vmatprep.subr.mxu0 0.0
  %1153 = vmatpush1.xpose.msra.mxu0 %v1136
  %1154 = vmatprep.subr.mxu0 0.0
  %1155 = vmatpush1.xpose.msra.mxu0 %v1138
  %1156 = vmatprep.subr.mxu0 0.0
  %1157 = vmatpush1.xpose.msra.mxu0 0.0
  %1158 = vmatprep.subr.mxu0 0.0
  %1159 = vmatpush1.xpose.msra.mxu0 0.0
  %1160 = vmatprep.subr.mxu0 0.0
  %1161 = vmatpush1.xpose.msra.mxu0 0.0
  %1162 = vmatprep.subr.mxu0 0.0
  %1163 = vmatpush1.xpose.msra.mxu0 0.0
  %1164 = vmatprep.subr.mxu0 0.0
  %1165 = vmatpush1.xpose.msra.mxu0 0.0
  %1166 = vmatprep.subr.mxu0 0.0
  %1167 = vmatpush1.xpose.msra.mxu0 0.0
  %1168 = vmatprep.subr.mxu0 0.0
  %1169 = vmatpush1.xpose.msra.mxu0 0.0
  %1170 = vmatprep.subr.mxu0 0.0
  %1171 = vmatpush1.xpose.msra.mxu0 0.0
  %1172 = vmatprep.subr.mxu0 0.0
  %1173 = vmatpush1.xpose.msra.mxu0 0.0
  %1174 = vmatprep.subr.mxu0 0.0
  %1175 = vmatpush1.xpose.msra.mxu0 0.0
  %1176 = vmatprep.subr.mxu0 0.0
  %1177 = vmatpush1.xpose.msra.mxu0 0.0
  %1178 = vmatprep.subr.mxu0 0.0
  %1179 = vmatpush1.xpose.msra.mxu0 0.0
  %1180 = vmatprep.subr.mxu0 0.0
  %1181 = vmatpush1.xpose.msra.mxu0 0.0
  %1182 = vmatprep.subr.mxu0 0.0
  %1183 = vmatpush1.xpose.msra.mxu0 0.0
  %1184 = vmatprep.subr.mxu0 0.0
  %1185 = vmatpush1.xpose.msra.mxu0 0.0
  %1186 = vmatprep.subr.mxu0 0.0
  %1187 = vmatpush1.xpose.msra.mxu0 0.0
  %1188 = vmatprep.subr.mxu0 0.0
  %1189 = vmatpush1.xpose.msra.mxu0 0.0
  %1190 = vmatprep.subr.mxu0 0.0
  %1191 = vmatpush1.xpose.msra.mxu0 0.0
  %1192 = vmatprep.subr.mxu0 0.0
  %1193 = vmatpush1.xpose.msra.mxu0 0.0
  %1194 = vmatprep.subr.mxu0 0.0
  %1195 = vmatpush1.xpose.msra.mxu0 0.0
  %1196 = vmatprep.subr.mxu0 0.0
  %1197 = vmatpush1.xpose.msra.mxu0 0.0
  %1198 = vmatprep.subr.mxu0 0.0
  %1199 = vmatpush1.xpose.msra.mxu0 0.0
  %1200 = vmatprep.subr.mxu0 0.0
  %1201 = vmatpush1.xpose.msra.mxu0 0.0
  %1202 = vmatprep.subr.mxu0 0.0
  %1203 = vmatpush1.xpose.msra.mxu0 0.0
  %1204 = vmatprep.mubr.f32.mxu0 0.0
  %1205 = vmatmul.mubr.f32.gmra.mrb[0].mxu0 %v1108
  %v1206 = vpop.f32.mrb[0].mxu0
  %v1207 = vadd.f32 0.0, %v1206
  %v1208 = vpop.f32.mrb[0].mxu0
  %1209 = vmatprep.mubr.f32.mxu0 0.0
  %1210 = vmatmul.mubr.f32.gmra.mrb[0].mxu0 %v1110
  %v1211 = vpop.f32.mrb[0].mxu0
  %v1212 = vadd.f32 0.0, %v1211
  %v1213 = vpop.f32.mrb[0].mxu0
  %1214 = vmatprep.mubr.f32.mxu0 0.0
  %1215 = vmatmul.mubr.f32.gmra.mrb[0].mxu0 %v1112
  %v1216 = vpop.f32.mrb[0].mxu0
  %v1217 = vadd.f32 0.0, %v1216
  %v1218 = vpop.f32.mrb[0].mxu0
  %1219 = vmatprep.mubr.f32.mxu0 0.0
  %1220 = vmatmul.mubr.f32.gmra.mrb[0].mxu0 %v1114
  %v1221 = vpop.f32.mrb[0].mxu0
  %v1222 = vadd.f32 0.0, %v1221
  %v1223 = vpop.f32.mrb[0].mxu0
  %1224 = vmatprep.mubr.f32.mxu0 0.0
  %1225 = vmatmul.mubr.f32.gmra.mrb[0].mxu0 %v1116
  %v1226 = vpop.f32.mrb[0].mxu0
  %v1227 = vadd.f32 0.0, %v1226
  %v1228 = vpop.f32.mrb[0].mxu0
  %1229 = vmatprep.mubr.f32.mxu0 0.0
  %1230 = vmatmul.mubr.f32.gmra.mrb[0].mxu0 %v1118
  %v1231 = vpop.f32.mrb[0].mxu0
  %v1232 = vadd.f32 0.0, %v1231
  %v1233 = vpop.f32.mrb[0].mxu0
  %1234 = vmatprep.mubr.f32.mxu0 0.0
  %1235 = vmatmul.mubr.f32.gmra.mrb[0].mxu0 %v1120
  %v1236 = vpop.f32.mrb[0].mxu0
  %v1237 = vadd.f32 0.0, %v1236
  %v1238 = vpop.f32.mrb[0].mxu0
  %1239 = vmatprep.mubr.f32.mxu0 0.0
  %1240 = vmatmul.mubr.f32.gmra.mrb[0].mxu0 %v1122
  %v1241 = vpop.f32.mrb[0].mxu0
  %v1242 = vadd.f32 0.0, %v1241
  %v1243 = vpop.f32.mrb[0].mxu0
  %1244 = vdwg.mxu0
  %1245 = vrot.lane.b32.xlu0 %v569, 96
  %v1246 = vpop.permute.xlu0 %1245
  %1247 = vrot.lane.b32.xlu0 %v571, 96
  %v1248 = vpop.permute.xlu0 %1247
  %1249 = vrot.lane.b32.xlu0 %v573, 96
  %v1250 = vpop.permute.xlu0 %1249
  %1251 = vrot.lane.b32.xlu0 %v575, 96
  %v1252 = vpop.permute.xlu0 %1251
  %1253 = vrot.lane.b32.xlu0 %v577, 96
  %v1254 = vpop.permute.xlu0 %1253
  %1255 = vrot.lane.b32.xlu0 %v579, 96
  %v1256 = vpop.permute.xlu0 %1255
  %1257 = vrot.lane.b32.xlu0 %v581, 96
  %v1258 = vpop.permute.xlu0 %1257
  %1259 = vrot.lane.b32.xlu0 %v583, 96
  %v1260 = vpop.permute.xlu0 %1259
  %v1261 = vsel %vm648, %v569, 0
  %v1263 = vsel %vm648, %v571, 0
  %v1265 = vsel %vm648, %v573, 0
  %v1267 = vsel %vm648, %v575, 0
  %v1269 = vsel %vm648, %v577, 0
  %v1271 = vsel %vm648, %v579, 0
  %v1273 = vsel %vm648, %v581, 0
  %v1275 = vsel %vm648, %v583, 0
  %v1277 = vsel %vm648, %v1246, 0
  %v1279 = vsel %vm648, %v1248, 0
  %v1281 = vsel %vm648, %v1250, 0
  %v1283 = vsel %vm648, %v1252, 0
  %v1285 = vsel %vm648, %v1254, 0
  %v1287 = vsel %vm648, %v1256, 0
  %v1289 = vsel %vm648, %v1258, 0
  %v1291 = vsel %vm648, %v1260, 0
  %1293 = vmatprep.subr.mxu0 0.0
  %1294 = vmatpush1.xpose.msra.mxu0 %v1277
  %1295 = vmatprep.subr.mxu0 0.0
  %1296 = vmatpush1.xpose.msra.mxu0 %v1279
  %1297 = vmatprep.subr.mxu0 0.0
  %1298 = vmatpush1.xpose.msra.mxu0 %v1281
  %1299 = vmatprep.subr.mxu0 0.0
  %1300 = vmatpush1.xpose.msra.mxu0 %v1283
  %1301 = vmatprep.subr.mxu0 0.0
  %1302 = vmatpush1.xpose.msra.mxu0 %v1285
  %1303 = vmatprep.subr.mxu0 0.0
  %1304 = vmatpush1.xpose.msra.mxu0 %v1287
  %1305 = vmatprep.subr.mxu0 0.0
  %1306 = vmatpush1.xpose.msra.mxu0 %v1289
  %1307 = vmatprep.subr.mxu0 0.0
  %1308 = vmatpush1.xpose.msra.mxu0 %v1291
  %1309 = vmatprep.subr.mxu0 0.0
  %1310 = vmatpush1.xpose.msra.mxu0 0.0
  %1311 = vmatprep.subr.mxu0 0.0
  %1312 = vmatpush1.xpose.msra.mxu0 0.0
  %1313 = vmatprep.subr.mxu0 0.0
  %1314 = vmatpush1.xpose.msra.mxu0 0.0
  %1315 = vmatprep.subr.mxu0 0.0
  %1316 = vmatpush1.xpose.msra.mxu0 0.0
  %1317 = vmatprep.subr.mxu0 0.0
  %1318 = vmatpush1.xpose.msra.mxu0 0.0
  %1319 = vmatprep.subr.mxu0 0.0
  %1320 = vmatpush1.xpose.msra.mxu0 0.0
  %1321 = vmatprep.subr.mxu0 0.0
  %1322 = vmatpush1.xpose.msra.mxu0 0.0
  %1323 = vmatprep.subr.mxu0 0.0
  %1324 = vmatpush1.xpose.msra.mxu0 0.0
  %1325 = vmatprep.subr.mxu0 0.0
  %1326 = vmatpush1.xpose.msra.mxu0 0.0
  %1327 = vmatprep.subr.mxu0 0.0
  %1328 = vmatpush1.xpose.msra.mxu0 0.0
  %1329 = vmatprep.subr.mxu0 0.0
  %1330 = vmatpush1.xpose.msra.mxu0 0.0
  %1331 = vmatprep.subr.mxu0 0.0
  %1332 = vmatpush1.xpose.msra.mxu0 0.0
  %1333 = vmatprep.subr.mxu0 0.0
  %1334 = vmatpush1.xpose.msra.mxu0 0.0
  %1335 = vmatprep.subr.mxu0 0.0
  %1336 = vmatpush1.xpose.msra.mxu0 0.0
  %1337 = vmatprep.subr.mxu0 0.0
  %1338 = vmatpush1.xpose.msra.mxu0 0.0
  %1339 = vmatprep.subr.mxu0 0.0
  %1340 = vmatpush1.xpose.msra.mxu0 0.0
  %1341 = vmatprep.subr.mxu0 0.0
  %1342 = vmatpush1.xpose.msra.mxu0 0.0
  %1343 = vmatprep.subr.mxu0 0.0
  %1344 = vmatpush1.xpose.msra.mxu0 0.0
  %1345 = vmatprep.subr.mxu0 0.0
  %1346 = vmatpush1.xpose.msra.mxu0 0.0
  %1347 = vmatprep.subr.mxu0 0.0
  %1348 = vmatpush1.xpose.msra.mxu0 0.0
  %1349 = vmatprep.subr.mxu0 0.0
  %1350 = vmatpush1.xpose.msra.mxu0 0.0
  %1351 = vmatprep.subr.mxu0 0.0
  %1352 = vmatpush1.xpose.msra.mxu0 0.0
  %1353 = vmatprep.subr.mxu0 0.0
  %1354 = vmatpush1.xpose.msra.mxu0 0.0
  %1355 = vmatprep.subr.mxu0 0.0
  %1356 = vmatpush1.xpose.msra.mxu0 0.0
  %1357 = vmatprep.mubr.f32.mxu0 0.0
  %1358 = vmatmul.mubr.f32.gmra.mrb[0].mxu0 %v1261
  %v1359 = vpop.f32.mrb[0].mxu0
  %v1360 = vadd.f32 0.0, %v1359
  %v1361 = vpop.f32.mrb[0].mxu0
  %1362 = vmatprep.mubr.f32.mxu0 0.0
  %1363 = vmatmul.mubr.f32.gmra.mrb[0].mxu0 %v1263
  %v1364 = vpop.f32.mrb[0].mxu0
  %v1365 = vadd.f32 0.0, %v1364
  %v1366 = vpop.f32.mrb[0].mxu0
  %1367 = vmatprep.mubr.f32.mxu0 0.0
  %1368 = vmatmul.mubr.f32.gmra.mrb[0].mxu0 %v1265
  %v1369 = vpop.f32.mrb[0].mxu0
  %v1370 = vadd.f32 0.0, %v1369
  %v1371 = vpop.f32.mrb[0].mxu0
  %1372 = vmatprep.mubr.f32.mxu0 0.0
  %1373 = vmatmul.mubr.f32.gmra.mrb[0].mxu0 %v1267
  %v1374 = vpop.f32.mrb[0].mxu0
  %v1375 = vadd.f32 0.0, %v1374
  %v1376 = vpop.f32.mrb[0].mxu0
  %1377 = vmatprep.mubr.f32.mxu0 0.0
  %1378 = vmatmul.mubr.f32.gmra.mrb[0].mxu0 %v1269
  %v1379 = vpop.f32.mrb[0].mxu0
  %v1380 = vadd.f32 0.0, %v1379
  %v1381 = vpop.f32.mrb[0].mxu0
  %1382 = vmatprep.mubr.f32.mxu0 0.0
  %1383 = vmatmul.mubr.f32.gmra.mrb[0].mxu0 %v1271
  %v1384 = vpop.f32.mrb[0].mxu0
  %v1385 = vadd.f32 0.0, %v1384
  %v1386 = vpop.f32.mrb[0].mxu0
  %1387 = vmatprep.mubr.f32.mxu0 0.0
  %1388 = vmatmul.mubr.f32.gmra.mrb[0].mxu0 %v1273
  %v1389 = vpop.f32.mrb[0].mxu0
  %v1390 = vadd.f32 0.0, %v1389
  %v1391 = vpop.f32.mrb[0].mxu0
  %1392 = vmatprep.mubr.f32.mxu0 0.0
  %1393 = vmatmul.mubr.f32.gmra.mrb[0].mxu0 %v1275
  %v1394 = vpop.f32.mrb[0].mxu0
  %v1395 = vadd.f32 0.0, %v1394
  %v1396 = vpop.f32.mrb[0].mxu0
  %1397 = vdwg.mxu0
  %1398 = vrot.lane.b32.xlu0 %v585, 96
  %v1399 = vpop.permute.xlu0 %1398
  %1400 = vrot.lane.b32.xlu0 %v587, 96
  %v1401 = vpop.permute.xlu0 %1400
  %1402 = vrot.lane.b32.xlu0 %v589, 96
  %v1403 = vpop.permute.xlu0 %1402
  %1404 = vrot.lane.b32.xlu0 %v591, 96
  %v1405 = vpop.permute.xlu0 %1404
  %1406 = vrot.lane.b32.xlu0 %v593, 96
  %v1407 = vpop.permute.xlu0 %1406
  %1408 = vrot.lane.b32.xlu0 %v595, 96
  %v1409 = vpop.permute.xlu0 %1408
  %1410 = vrot.lane.b32.xlu0 %v597, 96
  %v1411 = vpop.permute.xlu0 %1410
  %1412 = vrot.lane.b32.xlu0 %v599, 96
  %v1413 = vpop.permute.xlu0 %1412
  %v1414 = vsel %vm648, %v585, 0
  %v1416 = vsel %vm648, %v587, 0
  %v1418 = vsel %vm648, %v589, 0
  %v1420 = vsel %vm648, %v591, 0
  %v1422 = vsel %vm648, %v593, 0
  %v1424 = vsel %vm648, %v595, 0
  %v1426 = vsel %vm648, %v597, 0
  %v1428 = vsel %vm648, %v599, 0
  %v1430 = vsel %vm648, %v1399, 0
  %v1432 = vsel %vm648, %v1401, 0
  %v1434 = vsel %vm648, %v1403, 0
  %v1436 = vsel %vm648, %v1405, 0
  %v1438 = vsel %vm648, %v1407, 0
  %v1440 = vsel %vm648, %v1409, 0
  %v1442 = vsel %vm648, %v1411, 0
  %v1444 = vsel %vm648, %v1413, 0
  %1446 = vmatprep.subr.mxu0 0.0
  %1447 = vmatpush1.xpose.msra.mxu0 %v1430
  %1448 = vmatprep.subr.mxu0 0.0
  %1449 = vmatpush1.xpose.msra.mxu0 %v1432
  %1450 = vmatprep.subr.mxu0 0.0
  %1451 = vmatpush1.xpose.msra.mxu0 %v1434
  %1452 = vmatprep.subr.mxu0 0.0
  %1453 = vmatpush1.xpose.msra.mxu0 %v1436
  %1454 = vmatprep.subr.mxu0 0.0
  %1455 = vmatpush1.xpose.msra.mxu0 %v1438
  %1456 = vmatprep.subr.mxu0 0.0
  %1457 = vmatpush1.xpose.msra.mxu0 %v1440
  %1458 = vmatprep.subr.mxu0 0.0
  %1459 = vmatpush1.xpose.msra.mxu0 %v1442
  %1460 = vmatprep.subr.mxu0 0.0
  %1461 = vmatpush1.xpose.msra.mxu0 %v1444
  %1462 = vmatprep.subr.mxu0 0.0
  %1463 = vmatpush1.xpose.msra.mxu0 0.0
  %1464 = vmatprep.subr.mxu0 0.0
  %1465 = vmatpush1.xpose.msra.mxu0 0.0
  %1466 = vmatprep.subr.mxu0 0.0
  %1467 = vmatpush1.xpose.msra.mxu0 0.0
  %1468 = vmatprep.subr.mxu0 0.0
  %1469 = vmatpush1.xpose.msra.mxu0 0.0
  %1470 = vmatprep.subr.mxu0 0.0
  %1471 = vmatpush1.xpose.msra.mxu0 0.0
  %1472 = vmatprep.subr.mxu0 0.0
  %1473 = vmatpush1.xpose.msra.mxu0 0.0
  %1474 = vmatprep.subr.mxu0 0.0
  %1475 = vmatpush1.xpose.msra.mxu0 0.0
  %1476 = vmatprep.subr.mxu0 0.0
  %1477 = vmatpush1.xpose.msra.mxu0 0.0
  %1478 = vmatprep.subr.mxu0 0.0
  %1479 = vmatpush1.xpose.msra.mxu0 0.0
  %1480 = vmatprep.subr.mxu0 0.0
  %1481 = vmatpush1.xpose.msra.mxu0 0.0
  %1482 = vmatprep.subr.mxu0 0.0
  %1483 = vmatpush1.xpose.msra.mxu0 0.0
  %1484 = vmatprep.subr.mxu0 0.0
  %1485 = vmatpush1.xpose.msra.mxu0 0.0
  %1486 = vmatprep.subr.mxu0 0.0
  %1487 = vmatpush1.xpose.msra.mxu0 0.0
  %1488 = vmatprep.subr.mxu0 0.0
  %1489 = vmatpush1.xpose.msra.mxu0 0.0
  %1490 = vmatprep.subr.mxu0 0.0
  %1491 = vmatpush1.xpose.msra.mxu0 0.0
  %1492 = vmatprep.subr.mxu0 0.0
  %1493 = vmatpush1.xpose.msra.mxu0 0.0
  %1494 = vmatprep.subr.mxu0 0.0
  %1495 = vmatpush1.xpose.msra.mxu0 0.0
  %1496 = vmatprep.subr.mxu0 0.0
  %1497 = vmatpush1.xpose.msra.mxu0 0.0
  %1498 = vmatprep.subr.mxu0 0.0
  %1499 = vmatpush1.xpose.msra.mxu0 0.0
  %1500 = vmatprep.subr.mxu0 0.0
  %1501 = vmatpush1.xpose.msra.mxu0 0.0
  %1502 = vmatprep.subr.mxu0 0.0
  %1503 = vmatpush1.xpose.msra.mxu0 0.0
  %1504 = vmatprep.subr.mxu0 0.0
  %1505 = vmatpush1.xpose.msra.mxu0 0.0
  %1506 = vmatprep.subr.mxu0 0.0
  %1507 = vmatpush1.xpose.msra.mxu0 0.0
  %1508 = vmatprep.subr.mxu0 0.0
  %1509 = vmatpush1.xpose.msra.mxu0 0.0
  %1510 = vmatprep.mubr.f32.mxu0 0.0
  %1511 = vmatmul.mubr.f32.gmra.mrb[0].mxu0 %v1414
  %v1512 = vpop.f32.mrb[0].mxu0
  %v1513 = vadd.f32 0.0, %v1512
  %v1514 = vpop.f32.mrb[0].mxu0
  %1515 = vmatprep.mubr.f32.mxu0 0.0
  %1516 = vmatmul.mubr.f32.gmra.mrb[0].mxu0 %v1416
  %v1517 = vpop.f32.mrb[0].mxu0
  %v1518 = vadd.f32 0.0, %v1517
  %v1519 = vpop.f32.mrb[0].mxu0
  %1520 = vmatprep.mubr.f32.mxu0 0.0
  %1521 = vmatmul.mubr.f32.gmra.mrb[0].mxu0 %v1418
  %v1522 = vpop.f32.mrb[0].mxu0
  %v1523 = vadd.f32 0.0, %v1522
  %v1524 = vpop.f32.mrb[0].mxu0
  %1525 = vmatprep.mubr.f32.mxu0 0.0
  %1526 = vmatmul.mubr.f32.gmra.mrb[0].mxu0 %v1420
  %v1527 = vpop.f32.mrb[0].mxu0
  %v1528 = vadd.f32 0.0, %v1527
  %v1529 = vpop.f32.mrb[0].mxu0
  %1530 = vmatprep.mubr.f32.mxu0 0.0
  %1531 = vmatmul.mubr.f32.gmra.mrb[0].mxu0 %v1422
  %v1532 = vpop.f32.mrb[0].mxu0
  %v1533 = vadd.f32 0.0, %v1532
  %v1534 = vpop.f32.mrb[0].mxu0
  %1535 = vmatprep.mubr.f32.mxu0 0.0
  %1536 = vmatmul.mubr.f32.gmra.mrb[0].mxu0 %v1424
  %v1537 = vpop.f32.mrb[0].mxu0
  %v1538 = vadd.f32 0.0, %v1537
  %v1539 = vpop.f32.mrb[0].mxu0
  %1540 = vmatprep.mubr.f32.mxu0 0.0
  %1541 = vmatmul.mubr.f32.gmra.mrb[0].mxu0 %v1426
  %v1542 = vpop.f32.mrb[0].mxu0
  %v1543 = vadd.f32 0.0, %v1542
  %v1544 = vpop.f32.mrb[0].mxu0
  %1545 = vmatprep.mubr.f32.mxu0 0.0
  %1546 = vmatmul.mubr.f32.gmra.mrb[0].mxu0 %v1428
  %v1547 = vpop.f32.mrb[0].mxu0
  %v1548 = vadd.f32 0.0, %v1547
  %v1549 = vpop.f32.mrb[0].mxu0
  %1550 = vdwg.mxu0
  %1551 = vrot.lane.b32.xlu0 %v601, 96
  %v1552 = vpop.permute.xlu0 %1551
  %1553 = vrot.lane.b32.xlu0 %v603, 96
  %v1554 = vpop.permute.xlu0 %1553
  %1555 = vrot.lane.b32.xlu0 %v605, 96
  %v1556 = vpop.permute.xlu0 %1555
  %1557 = vrot.lane.b32.xlu0 %v607, 96
  %v1558 = vpop.permute.xlu0 %1557
  %1559 = vrot.lane.b32.xlu0 %v609, 96
  %v1560 = vpop.permute.xlu0 %1559
  %1561 = vrot.lane.b32.xlu0 %v611, 96
  %v1562 = vpop.permute.xlu0 %1561
  %1563 = vrot.lane.b32.xlu0 %v613, 96
  %v1564 = vpop.permute.xlu0 %1563
  %1565 = vrot.lane.b32.xlu0 %v615, 96
  %v1566 = vpop.permute.xlu0 %1565
  %v1567 = vsel %vm648, %v601, 0
  %v1569 = vsel %vm648, %v603, 0
  %v1571 = vsel %vm648, %v605, 0
  %v1573 = vsel %vm648, %v607, 0
  %v1575 = vsel %vm648, %v609, 0
  %v1577 = vsel %vm648, %v611, 0
  %v1579 = vsel %vm648, %v613, 0
  %v1581 = vsel %vm648, %v615, 0
  %v1583 = vsel %vm648, %v1552, 0
  %v1585 = vsel %vm648, %v1554, 0
  %v1587 = vsel %vm648, %v1556, 0
  %v1589 = vsel %vm648, %v1558, 0
  %v1591 = vsel %vm648, %v1560, 0
  %v1593 = vsel %vm648, %v1562, 0
  %v1595 = vsel %vm648, %v1564, 0
  %v1597 = vsel %vm648, %v1566, 0
  %1599 = vmatprep.subr.mxu0 0.0
  %1600 = vmatpush1.xpose.msra.mxu0 %v1583
  %1601 = vmatprep.subr.mxu0 0.0
  %1602 = vmatpush1.xpose.msra.mxu0 %v1585
  %1603 = vmatprep.subr.mxu0 0.0
  %1604 = vmatpush1.xpose.msra.mxu0 %v1587
  %1605 = vmatprep.subr.mxu0 0.0
  %1606 = vmatpush1.xpose.msra.mxu0 %v1589
  %1607 = vmatprep.subr.mxu0 0.0
  %1608 = vmatpush1.xpose.msra.mxu0 %v1591
  %1609 = vmatprep.subr.mxu0 0.0
  %1610 = vmatpush1.xpose.msra.mxu0 %v1593
  %1611 = vmatprep.subr.mxu0 0.0
  %1612 = vmatpush1.xpose.msra.mxu0 %v1595
  %1613 = vmatprep.subr.mxu0 0.0
  %1614 = vmatpush1.xpose.msra.mxu0 %v1597
  %1615 = vmatprep.subr.mxu0 0.0
  %1616 = vmatpush1.xpose.msra.mxu0 0.0
  %1617 = vmatprep.subr.mxu0 0.0
  %1618 = vmatpush1.xpose.msra.mxu0 0.0
  %1619 = vmatprep.subr.mxu0 0.0
  %1620 = vmatpush1.xpose.msra.mxu0 0.0
  %1621 = vmatprep.subr.mxu0 0.0
  %1622 = vmatpush1.xpose.msra.mxu0 0.0
  %1623 = vmatprep.subr.mxu0 0.0
  %1624 = vmatpush1.xpose.msra.mxu0 0.0
  %1625 = vmatprep.subr.mxu0 0.0
  %1626 = vmatpush1.xpose.msra.mxu0 0.0
  %1627 = vmatprep.subr.mxu0 0.0
  %1628 = vmatpush1.xpose.msra.mxu0 0.0
  %1629 = vmatprep.subr.mxu0 0.0
  %1630 = vmatpush1.xpose.msra.mxu0 0.0
  %1631 = vmatprep.subr.mxu0 0.0
  %1632 = vmatpush1.xpose.msra.mxu0 0.0
  %1633 = vmatprep.subr.mxu0 0.0
  %1634 = vmatpush1.xpose.msra.mxu0 0.0
  %1635 = vmatprep.subr.mxu0 0.0
  %1636 = vmatpush1.xpose.msra.mxu0 0.0
  %1637 = vmatprep.subr.mxu0 0.0
  %1638 = vmatpush1.xpose.msra.mxu0 0.0
  %1639 = vmatprep.subr.mxu0 0.0
  %1640 = vmatpush1.xpose.msra.mxu0 0.0
  %1641 = vmatprep.subr.mxu0 0.0
  %1642 = vmatpush1.xpose.msra.mxu0 0.0
  %1643 = vmatprep.subr.mxu0 0.0
  %1644 = vmatpush1.xpose.msra.mxu0 0.0
  %1645 = vmatprep.subr.mxu0 0.0
  %1646 = vmatpush1.xpose.msra.mxu0 0.0
  %1647 = vmatprep.subr.mxu0 0.0
  %1648 = vmatpush1.xpose.msra.mxu0 0.0
  %1649 = vmatprep.subr.mxu0 0.0
  %1650 = vmatpush1.xpose.msra.mxu0 0.0
  %1651 = vmatprep.subr.mxu0 0.0
  %1652 = vmatpush1.xpose.msra.mxu0 0.0
  %1653 = vmatprep.subr.mxu0 0.0
  %1654 = vmatpush1.xpose.msra.mxu0 0.0
  %1655 = vmatprep.subr.mxu0 0.0
  %1656 = vmatpush1.xpose.msra.mxu0 0.0
  %1657 = vmatprep.subr.mxu0 0.0
  %1658 = vmatpush1.xpose.msra.mxu0 0.0
  %1659 = vmatprep.subr.mxu0 0.0
  %1660 = vmatpush1.xpose.msra.mxu0 0.0
  %1661 = vmatprep.subr.mxu0 0.0
  %1662 = vmatpush1.xpose.msra.mxu0 0.0
  %1663 = vmatprep.mubr.f32.mxu0 0.0
  %1664 = vmatmul.mubr.f32.gmra.mrb[0].mxu0 %v1567
  %v1665 = vpop.f32.mrb[0].mxu0
  %v1666 = vadd.f32 0.0, %v1665
  %v1667 = vpop.f32.mrb[0].mxu0
  %1668 = vmatprep.mubr.f32.mxu0 0.0
  %1669 = vmatmul.mubr.f32.gmra.mrb[0].mxu0 %v1569
  %v1670 = vpop.f32.mrb[0].mxu0
  %v1671 = vadd.f32 0.0, %v1670
  %v1672 = vpop.f32.mrb[0].mxu0
  %1673 = vmatprep.mubr.f32.mxu0 0.0
  %1674 = vmatmul.mubr.f32.gmra.mrb[0].mxu0 %v1571
  %v1675 = vpop.f32.mrb[0].mxu0
  %v1676 = vadd.f32 0.0, %v1675
  %v1677 = vpop.f32.mrb[0].mxu0
  %1678 = vmatprep.mubr.f32.mxu0 0.0
  %1679 = vmatmul.mubr.f32.gmra.mrb[0].mxu0 %v1573
  %v1680 = vpop.f32.mrb[0].mxu0
  %v1681 = vadd.f32 0.0, %v1680
  %v1682 = vpop.f32.mrb[0].mxu0
  %1683 = vmatprep.mubr.f32.mxu0 0.0
  %1684 = vmatmul.mubr.f32.gmra.mrb[0].mxu0 %v1575
  %v1685 = vpop.f32.mrb[0].mxu0
  %v1686 = vadd.f32 0.0, %v1685
  %v1687 = vpop.f32.mrb[0].mxu0
  %1688 = vmatprep.mubr.f32.mxu0 0.0
  %1689 = vmatmul.mubr.f32.gmra.mrb[0].mxu0 %v1577
  %v1690 = vpop.f32.mrb[0].mxu0
  %v1691 = vadd.f32 0.0, %v1690
  %v1692 = vpop.f32.mrb[0].mxu0
  %1693 = vmatprep.mubr.f32.mxu0 0.0
  %1694 = vmatmul.mubr.f32.gmra.mrb[0].mxu0 %v1579
  %v1695 = vpop.f32.mrb[0].mxu0
  %v1696 = vadd.f32 0.0, %v1695
  %v1697 = vpop.f32.mrb[0].mxu0
  %1698 = vmatprep.mubr.f32.mxu0 0.0
  %1699 = vmatmul.mubr.f32.gmra.mrb[0].mxu0 %v1581
  %v1700 = vpop.f32.mrb[0].mxu0
  %v1701 = vadd.f32 0.0, %v1700
  %v1702 = vpop.f32.mrb[0].mxu0
  %1703 = vdwg.mxu0
  %1704 = vrot.lane.b32.xlu0 %v617, 96
  %v1705 = vpop.permute.xlu0 %1704
  %1706 = vrot.lane.b32.xlu0 %v619, 96
  %v1707 = vpop.permute.xlu0 %1706
  %1708 = vrot.lane.b32.xlu0 %v621, 96
  %v1709 = vpop.permute.xlu0 %1708
  %1710 = vrot.lane.b32.xlu0 %v623, 96
  %v1711 = vpop.permute.xlu0 %1710
  %1712 = vrot.lane.b32.xlu0 %v625, 96
  %v1713 = vpop.permute.xlu0 %1712
  %1714 = vrot.lane.b32.xlu0 %v627, 96
  %v1715 = vpop.permute.xlu0 %1714
  %1716 = vrot.lane.b32.xlu0 %v629, 96
  %v1717 = vpop.permute.xlu0 %1716
  %1718 = vrot.lane.b32.xlu0 %v631, 96
  %v1719 = vpop.permute.xlu0 %1718
  %v1720 = vsel %vm648, %v617, 0
  %v1722 = vsel %vm648, %v619, 0
  %v1724 = vsel %vm648, %v621, 0
  %v1726 = vsel %vm648, %v623, 0
  %v1728 = vsel %vm648, %v625, 0
  %v1730 = vsel %vm648, %v627, 0
  %v1732 = vsel %vm648, %v629, 0
  %v1734 = vsel %vm648, %v631, 0
  %v1736 = vsel %vm648, %v1705, 0
  %v1738 = vsel %vm648, %v1707, 0
  %v1740 = vsel %vm648, %v1709, 0
  %v1742 = vsel %vm648, %v1711, 0
  %v1744 = vsel %vm648, %v1713, 0
  %v1746 = vsel %vm648, %v1715, 0
  %v1748 = vsel %vm648, %v1717, 0
  %v1750 = vsel %vm648, %v1719, 0
  %1752 = vmatprep.subr.mxu0 0.0
  %1753 = vmatpush1.xpose.msra.mxu0 %v1736
  %1754 = vmatprep.subr.mxu0 0.0
  %1755 = vmatpush1.xpose.msra.mxu0 %v1738
  %1756 = vmatprep.subr.mxu0 0.0
  %1757 = vmatpush1.xpose.msra.mxu0 %v1740
  %1758 = vmatprep.subr.mxu0 0.0
  %1759 = vmatpush1.xpose.msra.mxu0 %v1742
  %1760 = vmatprep.subr.mxu0 0.0
  %1761 = vmatpush1.xpose.msra.mxu0 %v1744
  %1762 = vmatprep.subr.mxu0 0.0
  %1763 = vmatpush1.xpose.msra.mxu0 %v1746
  %1764 = vmatprep.subr.mxu0 0.0
  %1765 = vmatpush1.xpose.msra.mxu0 %v1748
  %1766 = vmatprep.subr.mxu0 0.0
  %1767 = vmatpush1.xpose.msra.mxu0 %v1750
  %1768 = vmatprep.subr.mxu0 0.0
  %1769 = vmatpush1.xpose.msra.mxu0 0.0
  %1770 = vmatprep.subr.mxu0 0.0
  %1771 = vmatpush1.xpose.msra.mxu0 0.0
  %1772 = vmatprep.subr.mxu0 0.0
  %1773 = vmatpush1.xpose.msra.mxu0 0.0
  %1774 = vmatprep.subr.mxu0 0.0
  %1775 = vmatpush1.xpose.msra.mxu0 0.0
  %1776 = vmatprep.subr.mxu0 0.0
  %1777 = vmatpush1.xpose.msra.mxu0 0.0
  %1778 = vmatprep.subr.mxu0 0.0
  %1779 = vmatpush1.xpose.msra.mxu0 0.0
  %1780 = vmatprep.subr.mxu0 0.0
  %1781 = vmatpush1.xpose.msra.mxu0 0.0
  %1782 = vmatprep.subr.mxu0 0.0
  %1783 = vmatpush1.xpose.msra.mxu0 0.0
  %1784 = vmatprep.subr.mxu0 0.0
  %1785 = vmatpush1.xpose.msra.mxu0 0.0
  %1786 = vmatprep.subr.mxu0 0.0
  %1787 = vmatpush1.xpose.msra.mxu0 0.0
  %1788 = vmatprep.subr.mxu0 0.0
  %1789 = vmatpush1.xpose.msra.mxu0 0.0
  %1790 = vmatprep.subr.mxu0 0.0
  %1791 = vmatpush1.xpose.msra.mxu0 0.0
  %1792 = vmatprep.subr.mxu0 0.0
  %1793 = vmatpush1.xpose.msra.mxu0 0.0
  %1794 = vmatprep.subr.mxu0 0.0
  %1795 = vmatpush1.xpose.msra.mxu0 0.0
  %1796 = vmatprep.subr.mxu0 0.0
  %1797 = vmatpush1.xpose.msra.mxu0 0.0
  %1798 = vmatprep.subr.mxu0 0.0
  %1799 = vmatpush1.xpose.msra.mxu0 0.0
  %1800 = vmatprep.subr.mxu0 0.0
  %1801 = vmatpush1.xpose.msra.mxu0 0.0
  %1802 = vmatprep.subr.mxu0 0.0
  %1803 = vmatpush1.xpose.msra.mxu0 0.0
  %1804 = vmatprep.subr.mxu0 0.0
  %1805 = vmatpush1.xpose.msra.mxu0 0.0
  %1806 = vmatprep.subr.mxu0 0.0
  %1807 = vmatpush1.xpose.msra.mxu0 0.0
  %1808 = vmatprep.subr.mxu0 0.0
  %1809 = vmatpush1.xpose.msra.mxu0 0.0
  %1810 = vmatprep.subr.mxu0 0.0
  %1811 = vmatpush1.xpose.msra.mxu0 0.0
  %1812 = vmatprep.subr.mxu0 0.0
  %1813 = vmatpush1.xpose.msra.mxu0 0.0
  %1814 = vmatprep.subr.mxu0 0.0
  %1815 = vmatpush1.xpose.msra.mxu0 0.0
  %1816 = vmatprep.mubr.f32.mxu0 0.0
  %1817 = vmatmul.mubr.f32.gmra.mrb[0].mxu0 %v1720
  %v1818 = vpop.f32.mrb[0].mxu0
  %v1819 = vadd.f32 0.0, %v1818
  %v1820 = vpop.f32.mrb[0].mxu0
  %1821 = vmatprep.mubr.f32.mxu0 0.0
  %1822 = vmatmul.mubr.f32.gmra.mrb[0].mxu0 %v1722
  %v1823 = vpop.f32.mrb[0].mxu0
  %v1824 = vadd.f32 0.0, %v1823
  %v1825 = vpop.f32.mrb[0].mxu0
  %1826 = vmatprep.mubr.f32.mxu0 0.0
  %1827 = vmatmul.mubr.f32.gmra.mrb[0].mxu0 %v1724
  %v1828 = vpop.f32.mrb[0].mxu0
  %v1829 = vadd.f32 0.0, %v1828
  %v1830 = vpop.f32.mrb[0].mxu0
  %1831 = vmatprep.mubr.f32.mxu0 0.0
  %1832 = vmatmul.mubr.f32.gmra.mrb[0].mxu0 %v1726
  %v1833 = vpop.f32.mrb[0].mxu0
  %v1834 = vadd.f32 0.0, %v1833
  %v1835 = vpop.f32.mrb[0].mxu0
  %1836 = vmatprep.mubr.f32.mxu0 0.0
  %1837 = vmatmul.mubr.f32.gmra.mrb[0].mxu0 %v1728
  %v1838 = vpop.f32.mrb[0].mxu0
  %v1839 = vadd.f32 0.0, %v1838
  %v1840 = vpop.f32.mrb[0].mxu0
  %1841 = vmatprep.mubr.f32.mxu0 0.0
  %1842 = vmatmul.mubr.f32.gmra.mrb[0].mxu0 %v1730
  %v1843 = vpop.f32.mrb[0].mxu0
  %v1844 = vadd.f32 0.0, %v1843
  %v1845 = vpop.f32.mrb[0].mxu0
  %1846 = vmatprep.mubr.f32.mxu0 0.0
  %1847 = vmatmul.mubr.f32.gmra.mrb[0].mxu0 %v1732
  %v1848 = vpop.f32.mrb[0].mxu0
  %v1849 = vadd.f32 0.0, %v1848
  %v1850 = vpop.f32.mrb[0].mxu0
  %1851 = vmatprep.mubr.f32.mxu0 0.0
  %1852 = vmatmul.mubr.f32.gmra.mrb[0].mxu0 %v1734
  %v1853 = vpop.f32.mrb[0].mxu0
  %v1854 = vadd.f32 0.0, %v1853
  %v1855 = vpop.f32.mrb[0].mxu0
  %1856 = vdwg.mxu0
  %vm1857 = vcmask 523264
  %v1858 = vsel %vm1857, %v748, -inf
  %1859 = vmax.xlane.f32.xlu0 %v1858
  %v1860 = vpop.xlane.xlu0 %1859
  %v1861 = vsel %vm1857, %v753, -inf
  %1862 = vmax.xlane.f32.xlu0 %v1861
  %v1863 = vpop.xlane.xlu0 %1862
  %v1864 = vsel %vm1857, %v758, -inf
  %1865 = vmax.xlane.f32.xlu0 %v1864
  %v1866 = vpop.xlane.xlu0 %1865
  %v1867 = vsel %vm1857, %v763, -inf
  %1868 = vmax.xlane.f32.xlu0 %v1867
  %v1869 = vpop.xlane.xlu0 %1868
  %v1870 = vsel %vm1857, %v768, -inf
  %1871 = vmax.xlane.f32.xlu0 %v1870
  %v1872 = vpop.xlane.xlu0 %1871
  %v1873 = vsel %vm1857, %v773, -inf
  %1874 = vmax.xlane.f32.xlu0 %v1873
  %v1875 = vpop.xlane.xlu0 %1874
  %v1876 = vsel %vm1857, %v778, -inf
  %1877 = vmax.xlane.f32.xlu0 %v1876
  %v1878 = vpop.xlane.xlu0 %1877
  %v1879 = vsel %vm1857, %v783, -inf
  %1880 = vmax.xlane.f32.xlu0 %v1879
  %v1881 = vpop.xlane.xlu0 %1880
  %v1882 = vsel %vm1857, %v901, -inf
  %1883 = vmax.xlane.f32.xlu0 %v1882
  %v1884 = vpop.xlane.xlu0 %1883
  %v1885 = vsel %vm1857, %v906, -inf
  %1886 = vmax.xlane.f32.xlu0 %v1885
  %v1887 = vpop.xlane.xlu0 %1886
  %v1888 = vsel %vm1857, %v911, -inf
  %1889 = vmax.xlane.f32.xlu0 %v1888
  %v1890 = vpop.xlane.xlu0 %1889
  %v1891 = vsel %vm1857, %v916, -inf
  %1892 = vmax.xlane.f32.xlu0 %v1891
  %v1893 = vpop.xlane.xlu0 %1892
  %v1894 = vsel %vm1857, %v921, -inf
  %1895 = vmax.xlane.f32.xlu0 %v1894
  %v1896 = vpop.xlane.xlu0 %1895
  %v1897 = vsel %vm1857, %v926, -inf
  %1898 = vmax.xlane.f32.xlu0 %v1897
  %v1899 = vpop.xlane.xlu0 %1898
  %v1900 = vsel %vm1857, %v931, -inf
  %1901 = vmax.xlane.f32.xlu0 %v1900
  %v1902 = vpop.xlane.xlu0 %1901
  %v1903 = vsel %vm1857, %v936, -inf
  %1904 = vmax.xlane.f32.xlu0 %v1903
  %v1905 = vpop.xlane.xlu0 %1904
  %v1906 = vsel %vm1857, %v1054, -inf
  %1907 = vmax.xlane.f32.xlu0 %v1906
  %v1908 = vpop.xlane.xlu0 %1907
  %v1909 = vsel %vm1857, %v1059, -inf
  %1910 = vmax.xlane.f32.xlu0 %v1909
  %v1911 = vpop.xlane.xlu0 %1910
  %v1912 = vsel %vm1857, %v1064, -inf
  %1913 = vmax.xlane.f32.xlu0 %v1912
  %v1914 = vpop.xlane.xlu0 %1913
  %v1915 = vsel %vm1857, %v1069, -inf
  %1916 = vmax.xlane.f32.xlu0 %v1915
  %v1917 = vpop.xlane.xlu0 %1916
  %v1918 = vsel %vm1857, %v1074, -inf
  %1919 = vmax.xlane.f32.xlu0 %v1918
  %v1920 = vpop.xlane.xlu0 %1919
  %v1921 = vsel %vm1857, %v1079, -inf
  %1922 = vmax.xlane.f32.xlu0 %v1921
  %v1923 = vpop.xlane.xlu0 %1922
  %v1924 = vsel %vm1857, %v1084, -inf
  %1925 = vmax.xlane.f32.xlu0 %v1924
  %v1926 = vpop.xlane.xlu0 %1925
  %v1927 = vsel %vm1857, %v1089, -inf
  %1928 = vmax.xlane.f32.xlu0 %v1927
  %v1929 = vpop.xlane.xlu0 %1928
  %v1930 = vsel %vm1857, %v1207, -inf
  %1931 = vmax.xlane.f32.xlu0 %v1930
  %v1932 = vpop.xlane.xlu0 %1931
  %v1933 = vsel %vm1857, %v1212, -inf
  %1934 = vmax.xlane.f32.xlu0 %v1933
  %v1935 = vpop.xlane.xlu0 %1934
  %v1936 = vsel %vm1857, %v1217, -inf
  %1937 = vmax.xlane.f32.xlu0 %v1936
  %v1938 = vpop.xlane.xlu0 %1937
  %v1939 = vsel %vm1857, %v1222, -inf
  %1940 = vmax.xlane.f32.xlu0 %v1939
  %v1941 = vpop.xlane.xlu0 %1940
  %v1942 = vsel %vm1857, %v1227, -inf
  %1943 = vmax.xlane.f32.xlu0 %v1942
  %v1944 = vpop.xlane.xlu0 %1943
  %v1945 = vsel %vm1857, %v1232, -inf
  %1946 = vmax.xlane.f32.xlu0 %v1945
  %v1947 = vpop.xlane.xlu0 %1946
  %v1948 = vsel %vm1857, %v1237, -inf
  %1949 = vmax.xlane.f32.xlu0 %v1948
  %v1950 = vpop.xlane.xlu0 %1949
  %v1951 = vsel %vm1857, %v1242, -inf
  %1952 = vmax.xlane.f32.xlu0 %v1951
  %v1953 = vpop.xlane.xlu0 %1952
  %v1954 = vsel %vm1857, %v1360, -inf
  %1955 = vmax.xlane.f32.xlu0 %v1954
  %v1956 = vpop.xlane.xlu0 %1955
  %v1957 = vsel %vm1857, %v1365, -inf
  %1958 = vmax.xlane.f32.xlu0 %v1957
  %v1959 = vpop.xlane.xlu0 %1958
  %v1960 = vsel %vm1857, %v1370, -inf
  %1961 = vmax.xlane.f32.xlu0 %v1960
  %v1962 = vpop.xlane.xlu0 %1961
  %v1963 = vsel %vm1857, %v1375, -inf
  %1964 = vmax.xlane.f32.xlu0 %v1963
  %v1965 = vpop.xlane.xlu0 %1964
  %v1966 = vsel %vm1857, %v1380, -inf
  %1967 = vmax.xlane.f32.xlu0 %v1966
  %v1968 = vpop.xlane.xlu0 %1967
  %v1969 = vsel %vm1857, %v1385, -inf
  %1970 = vmax.xlane.f32.xlu0 %v1969
  %v1971 = vpop.xlane.xlu0 %1970
  %v1972 = vsel %vm1857, %v1390, -inf
  %1973 = vmax.xlane.f32.xlu0 %v1972
  %v1974 = vpop.xlane.xlu0 %1973
  %v1975 = vsel %vm1857, %v1395, -inf
  %1976 = vmax.xlane.f32.xlu0 %v1975
  %v1977 = vpop.xlane.xlu0 %1976
  %v1978 = vsel %vm1857, %v1513, -inf
  %1979 = vmax.xlane.f32.xlu0 %v1978
  %v1980 = vpop.xlane.xlu0 %1979
  %v1981 = vsel %vm1857, %v1518, -inf
  %1982 = vmax.xlane.f32.xlu0 %v1981
  %v1983 = vpop.xlane.xlu0 %1982
  %v1984 = vsel %vm1857, %v1523, -inf
  %1985 = vmax.xlane.f32.xlu0 %v1984
  %v1986 = vpop.xlane.xlu0 %1985
  %v1987 = vsel %vm1857, %v1528, -inf
  %1988 = vmax.xlane.f32.xlu0 %v1987
  %v1989 = vpop.xlane.xlu0 %1988
  %v1990 = vsel %vm1857, %v1533, -inf
  %1991 = vmax.xlane.f32.xlu0 %v1990
  %v1992 = vpop.xlane.xlu0 %1991
  %v1993 = vsel %vm1857, %v1538, -inf
  %1994 = vmax.xlane.f32.xlu0 %v1993
  %v1995 = vpop.xlane.xlu0 %1994
  %v1996 = vsel %vm1857, %v1543, -inf
  %1997 = vmax.xlane.f32.xlu0 %v1996
  %v1998 = vpop.xlane.xlu0 %1997
  %v1999 = vsel %vm1857, %v1548, -inf
  %2000 = vmax.xlane.f32.xlu0 %v1999
  %v2001 = vpop.xlane.xlu0 %2000
  %v2002 = vsel %vm1857, %v1666, -inf
  %2003 = vmax.xlane.f32.xlu0 %v2002
  %v2004 = vpop.xlane.xlu0 %2003
  %v2005 = vsel %vm1857, %v1671, -inf
  %2006 = vmax.xlane.f32.xlu0 %v2005
  %v2007 = vpop.xlane.xlu0 %2006
  %v2008 = vsel %vm1857, %v1676, -inf
  %2009 = vmax.xlane.f32.xlu0 %v2008
  %v2010 = vpop.xlane.xlu0 %2009
  %v2011 = vsel %vm1857, %v1681, -inf
  %2012 = vmax.xlane.f32.xlu0 %v2011
  %v2013 = vpop.xlane.xlu0 %2012
  %v2014 = vsel %vm1857, %v1686, -inf
  %2015 = vmax.xlane.f32.xlu0 %v2014
  %v2016 = vpop.xlane.xlu0 %2015
  %v2017 = vsel %vm1857, %v1691, -inf
  %2018 = vmax.xlane.f32.xlu0 %v2017
  %v2019 = vpop.xlane.xlu0 %2018
  %v2020 = vsel %vm1857, %v1696, -inf
  %2021 = vmax.xlane.f32.xlu0 %v2020
  %v2022 = vpop.xlane.xlu0 %2021
  %v2023 = vsel %vm1857, %v1701, -inf
  %2024 = vmax.xlane.f32.xlu0 %v2023
  %v2025 = vpop.xlane.xlu0 %2024
  %v2026 = vsel %vm1857, %v1819, -inf
  %2027 = vmax.xlane.f32.xlu0 %v2026
  %v2028 = vpop.xlane.xlu0 %2027
  %v2029 = vsel %vm1857, %v1824, -inf
  %2030 = vmax.xlane.f32.xlu0 %v2029
  %v2031 = vpop.xlane.xlu0 %2030
  %v2032 = vsel %vm1857, %v1829, -inf
  %2033 = vmax.xlane.f32.xlu0 %v2032
  %v2034 = vpop.xlane.xlu0 %2033
  %v2035 = vsel %vm1857, %v1834, -inf
  %2036 = vmax.xlane.f32.xlu0 %v2035
  %v2037 = vpop.xlane.xlu0 %2036
  %v2038 = vsel %vm1857, %v1839, -inf
  %2039 = vmax.xlane.f32.xlu0 %v2038
  %v2040 = vpop.xlane.xlu0 %2039
  %v2041 = vsel %vm1857, %v1844, -inf
  %2042 = vmax.xlane.f32.xlu0 %v2041
  %v2043 = vpop.xlane.xlu0 %2042
  %v2044 = vsel %vm1857, %v1849, -inf
  %2045 = vmax.xlane.f32.xlu0 %v2044
  %v2046 = vpop.xlane.xlu0 %2045
  %v2047 = vsel %vm1857, %v1854, -inf
  %2048 = vmax.xlane.f32.xlu0 %v2047
  %v2049 = vpop.xlane.xlu0 %2048
  %v2050 = vsub.f32 %v748, %v1860
  %v2051 = vsub.f32 %v753, %v1863
  %v2052 = vsub.f32 %v758, %v1866
  %v2053 = vsub.f32 %v763, %v1869
  %v2054 = vsub.f32 %v768, %v1872
  %v2055 = vsub.f32 %v773, %v1875
  %v2056 = vsub.f32 %v778, %v1878
  %v2057 = vsub.f32 %v783, %v1881
  %v2058 = vsub.f32 %v901, %v1884
  %v2059 = vsub.f32 %v906, %v1887
  %v2060 = vsub.f32 %v911, %v1890
  %v2061 = vsub.f32 %v916, %v1893
  %v2062 = vsub.f32 %v921, %v1896
  %v2063 = vsub.f32 %v926, %v1899
  %v2064 = vsub.f32 %v931, %v1902
  %v2065 = vsub.f32 %v936, %v1905
  %v2066 = vsub.f32 %v1054, %v1908
  %v2067 = vsub.f32 %v1059, %v1911
  %v2068 = vsub.f32 %v1064, %v1914
  %v2069 = vsub.f32 %v1069, %v1917
  %v2070 = vsub.f32 %v1074, %v1920
  %v2071 = vsub.f32 %v1079, %v1923
  %v2072 = vsub.f32 %v1084, %v1926
  %v2073 = vsub.f32 %v1089, %v1929
  %v2074 = vsub.f32 %v1207, %v1932
  %v2075 = vsub.f32 %v1212, %v1935
  %v2076 = vsub.f32 %v1217, %v1938
  %v2077 = vsub.f32 %v1222, %v1941
  %v2078 = vsub.f32 %v1227, %v1944
  %v2079 = vsub.f32 %v1232, %v1947
  %v2080 = vsub.f32 %v1237, %v1950
  %v2081 = vsub.f32 %v1242, %v1953
  %v2082 = vsub.f32 %v1360, %v1956
  %v2083 = vsub.f32 %v1365, %v1959
  %v2084 = vsub.f32 %v1370, %v1962
  %v2085 = vsub.f32 %v1375, %v1965
  %v2086 = vsub.f32 %v1380, %v1968
  %v2087 = vsub.f32 %v1385, %v1971
  %v2088 = vsub.f32 %v1390, %v1974
  %v2089 = vsub.f32 %v1395, %v1977
  %v2090 = vsub.f32 %v1513, %v1980
  %v2091 = vsub.f32 %v1518, %v1983
  %v2092 = vsub.f32 %v1523, %v1986
  %v2093 = vsub.f32 %v1528, %v1989
  %v2094 = vsub.f32 %v1533, %v1992
  %v2095 = vsub.f32 %v1538, %v1995
  %v2096 = vsub.f32 %v1543, %v1998
  %v2097 = vsub.f32 %v1548, %v2001
  %v2098 = vsub.f32 %v1666, %v2004
  %v2099 = vsub.f32 %v1671, %v2007
  %v2100 = vsub.f32 %v1676, %v2010
  %v2101 = vsub.f32 %v1681, %v2013
  %v2102 = vsub.f32 %v1686, %v2016
  %v2103 = vsub.f32 %v1691, %v2019
  %v2104 = vsub.f32 %v1696, %v2022
  %v2105 = vsub.f32 %v1701, %v2025
  %v2106 = vsub.f32 %v1819, %v2028
  %v2107 = vsub.f32 %v1824, %v2031
  %v2108 = vsub.f32 %v1829, %v2034
  %v2109 = vsub.f32 %v1834, %v2037
  %v2110 = vsub.f32 %v1839, %v2040
  %v2111 = vsub.f32 %v1844, %v2043
  %v2112 = vsub.f32 %v1849, %v2046
  %v2113 = vsub.f32 %v1854, %v2049
  %v2114 = vmul.f32 %v2050, 1.442695
  %v2115 = vpow.pop %v2114
  %v2116 = vmul.f32 %v2051, 1.442695
  %v2117 = vpow.pop %v2116
  %v2118 = vmul.f32 %v2052, 1.442695
  %v2119 = vpow.pop %v2118
  %v2120 = vmul.f32 %v2053, 1.442695
  %v2121 = vpow.pop %v2120
  %v2122 = vmul.f32 %v2054, 1.442695
  %v2123 = vpow.pop %v2122
  %v2124 = vmul.f32 %v2055, 1.442695
  %v2125 = vpow.pop %v2124
  %v2126 = vmul.f32 %v2056, 1.442695
  %v2127 = vpow.pop %v2126
  %v2128 = vmul.f32 %v2057, 1.442695
  %v2129 = vpow.pop %v2128
  %v2130 = vmul.f32 %v2058, 1.442695
  %v2131 = vpow.pop %v2130
  %v2132 = vmul.f32 %v2059, 1.442695
  %v2133 = vpow.pop %v2132
  %v2134 = vmul.f32 %v2060, 1.442695
  %v2135 = vpow.pop %v2134
  %v2136 = vmul.f32 %v2061, 1.442695
  %v2137 = vpow.pop %v2136
  %v2138 = vmul.f32 %v2062, 1.442695
  %v2139 = vpow.pop %v2138
  %v2140 = vmul.f32 %v2063, 1.442695
  %v2141 = vpow.pop %v2140
  %v2142 = vmul.f32 %v2064, 1.442695
  %v2143 = vpow.pop %v2142
  %v2144 = vmul.f32 %v2065, 1.442695
  %v2145 = vpow.pop %v2144
  %v2146 = vmul.f32 %v2066, 1.442695
  %v2147 = vpow.pop %v2146
  %v2148 = vmul.f32 %v2067, 1.442695
  %v2149 = vpow.pop %v2148
  %v2150 = vmul.f32 %v2068, 1.442695
  %v2151 = vpow.pop %v2150
  %v2152 = vmul.f32 %v2069, 1.442695
  %v2153 = vpow.pop %v2152
  %v2154 = vmul.f32 %v2070, 1.442695
  %v2155 = vpow.pop %v2154
  %v2156 = vmul.f32 %v2071, 1.442695
  %v2157 = vpow.pop %v2156
  %v2158 = vmul.f32 %v2072, 1.442695
  %v2159 = vpow.pop %v2158
  %v2160 = vmul.f32 %v2073, 1.442695
  %v2161 = vpow.pop %v2160
  %v2162 = vmul.f32 %v2074, 1.442695
  %v2163 = vpow.pop %v2162
  %v2164 = vmul.f32 %v2075, 1.442695
  %v2165 = vpow.pop %v2164
  %v2166 = vmul.f32 %v2076, 1.442695
  %v2167 = vpow.pop %v2166
  %v2168 = vmul.f32 %v2077, 1.442695
  %v2169 = vpow.pop %v2168
  %v2170 = vmul.f32 %v2078, 1.442695
  %v2171 = vpow.pop %v2170
  %v2172 = vmul.f32 %v2079, 1.442695
  %v2173 = vpow.pop %v2172
  %v2174 = vmul.f32 %v2080, 1.442695
  %v2175 = vpow.pop %v2174
  %v2176 = vmul.f32 %v2081, 1.442695
  %v2177 = vpow.pop %v2176
  %v2178 = vmul.f32 %v2082, 1.442695
  %v2179 = vpow.pop %v2178
  %v2180 = vmul.f32 %v2083, 1.442695
  %v2181 = vpow.pop %v2180
  %v2182 = vmul.f32 %v2084, 1.442695
  %v2183 = vpow.pop %v2182
  %v2184 = vmul.f32 %v2085, 1.442695
  %v2185 = vpow.pop %v2184
  %v2186 = vmul.f32 %v2086, 1.442695
  %v2187 = vpow.pop %v2186
  %v2188 = vmul.f32 %v2087, 1.442695
  %v2189 = vpow.pop %v2188
  %v2190 = vmul.f32 %v2088, 1.442695
  %v2191 = vpow.pop %v2190
  %v2192 = vmul.f32 %v2089, 1.442695
  %v2193 = vpow.pop %v2192
  %v2194 = vmul.f32 %v2090, 1.442695
  %v2195 = vpow.pop %v2194
  %v2196 = vmul.f32 %v2091, 1.442695
  %v2197 = vpow.pop %v2196
  %v2198 = vmul.f32 %v2092, 1.442695
  %v2199 = vpow.pop %v2198
  %v2200 = vmul.f32 %v2093, 1.442695
  %v2201 = vpow.pop %v2200
  %v2202 = vmul.f32 %v2094, 1.442695
  %v2203 = vpow.pop %v2202
  %v2204 = vmul.f32 %v2095, 1.442695
  %v2205 = vpow.pop %v2204
  %v2206 = vmul.f32 %v2096, 1.442695
  %v2207 = vpow.pop %v2206
  %v2208 = vmul.f32 %v2097, 1.442695
  %v2209 = vpow.pop %v2208
  %v2210 = vmul.f32 %v2098, 1.442695
  %v2211 = vpow.pop %v2210
  %v2212 = vmul.f32 %v2099, 1.442695
  %v2213 = vpow.pop %v2212
  %v2214 = vmul.f32 %v2100, 1.442695
  %v2215 = vpow.pop %v2214
  %v2216 = vmul.f32 %v2101, 1.442695
  %v2217 = vpow.pop %v2216
  %v2218 = vmul.f32 %v2102, 1.442695
  %v2219 = vpow.pop %v2218
  %v2220 = vmul.f32 %v2103, 1.442695
  %v2221 = vpow.pop %v2220
  %v2222 = vmul.f32 %v2104, 1.442695
  %v2223 = vpow.pop %v2222
  %v2224 = vmul.f32 %v2105, 1.442695
  %v2225 = vpow.pop %v2224
  %v2226 = vmul.f32 %v2106, 1.442695
  %v2227 = vpow.pop %v2226
  %v2228 = vmul.f32 %v2107, 1.442695
  %v2229 = vpow.pop %v2228
  %v2230 = vmul.f32 %v2108, 1.442695
  %v2231 = vpow.pop %v2230
  %v2232 = vmul.f32 %v2109, 1.442695
  %v2233 = vpow.pop %v2232
  %v2234 = vmul.f32 %v2110, 1.442695
  %v2235 = vpow.pop %v2234
  %v2236 = vmul.f32 %v2111, 1.442695
  %v2237 = vpow.pop %v2236
  %v2238 = vmul.f32 %v2112, 1.442695
  %v2239 = vpow.pop %v2238
  %v2240 = vmul.f32 %v2113, 1.442695
  %v2241 = vpow.pop %v2240
  %v2242 = vsel %vm1857, %v2115, 0.0
  %2243 = vadd.xlane.f32.xlu0 %v2242
  %v2244 = vpop.xlane.xlu0 %2243
  %v2245 = vsel %vm1857, %v2117, 0.0
  %2246 = vadd.xlane.f32.xlu0 %v2245
  %v2247 = vpop.xlane.xlu0 %2246
  %v2248 = vsel %vm1857, %v2119, 0.0
  %2249 = vadd.xlane.f32.xlu0 %v2248
  %v2250 = vpop.xlane.xlu0 %2249
  %v2251 = vsel %vm1857, %v2121, 0.0
  %2252 = vadd.xlane.f32.xlu0 %v2251
  %v2253 = vpop.xlane.xlu0 %2252
  %v2254 = vsel %vm1857, %v2123, 0.0
  %2255 = vadd.xlane.f32.xlu0 %v2254
  %v2256 = vpop.xlane.xlu0 %2255
  %v2257 = vsel %vm1857, %v2125, 0.0
  %2258 = vadd.xlane.f32.xlu0 %v2257
  %v2259 = vpop.xlane.xlu0 %2258
  %v2260 = vsel %vm1857, %v2127, 0.0
  %2261 = vadd.xlane.f32.xlu0 %v2260
  %v2262 = vpop.xlane.xlu0 %2261
  %v2263 = vsel %vm1857, %v2129, 0.0
  %2264 = vadd.xlane.f32.xlu0 %v2263
  %v2265 = vpop.xlane.xlu0 %2264
  %v2266 = vsel %vm1857, %v2131, 0.0
  %2267 = vadd.xlane.f32.xlu0 %v2266
  %v2268 = vpop.xlane.xlu0 %2267
  %v2269 = vsel %vm1857, %v2133, 0.0
  %2270 = vadd.xlane.f32.xlu0 %v2269
  %v2271 = vpop.xlane.xlu0 %2270
  %v2272 = vsel %vm1857, %v2135, 0.0
  %2273 = vadd.xlane.f32.xlu0 %v2272
  %v2274 = vpop.xlane.xlu0 %2273
  %v2275 = vsel %vm1857, %v2137, 0.0
  %2276 = vadd.xlane.f32.xlu0 %v2275
  %v2277 = vpop.xlane.xlu0 %2276
  %v2278 = vsel %vm1857, %v2139, 0.0
  %2279 = vadd.xlane.f32.xlu0 %v2278
  %v2280 = vpop.xlane.xlu0 %2279
  %v2281 = vsel %vm1857, %v2141, 0.0
  %2282 = vadd.xlane.f32.xlu0 %v2281
  %v2283 = vpop.xlane.xlu0 %2282
  %v2284 = vsel %vm1857, %v2143, 0.0
  %2285 = vadd.xlane.f32.xlu0 %v2284
  %v2286 = vpop.xlane.xlu0 %2285
  %v2287 = vsel %vm1857, %v2145, 0.0
  %2288 = vadd.xlane.f32.xlu0 %v2287
  %v2289 = vpop.xlane.xlu0 %2288
  %v2290 = vsel %vm1857, %v2147, 0.0
  %2291 = vadd.xlane.f32.xlu0 %v2290
  %v2292 = vpop.xlane.xlu0 %2291
  %v2293 = vsel %vm1857, %v2149, 0.0
  %2294 = vadd.xlane.f32.xlu0 %v2293
  %v2295 = vpop.xlane.xlu0 %2294
  %v2296 = vsel %vm1857, %v2151, 0.0
  %2297 = vadd.xlane.f32.xlu0 %v2296
  %v2298 = vpop.xlane.xlu0 %2297
  %v2299 = vsel %vm1857, %v2153, 0.0
  %2300 = vadd.xlane.f32.xlu0 %v2299
  %v2301 = vpop.xlane.xlu0 %2300
  %v2302 = vsel %vm1857, %v2155, 0.0
  %2303 = vadd.xlane.f32.xlu0 %v2302
  %v2304 = vpop.xlane.xlu0 %2303
  %v2305 = vsel %vm1857, %v2157, 0.0
  %2306 = vadd.xlane.f32.xlu0 %v2305
  %v2307 = vpop.xlane.xlu0 %2306
  %v2308 = vsel %vm1857, %v2159, 0.0
  %2309 = vadd.xlane.f32.xlu0 %v2308
  %v2310 = vpop.xlane.xlu0 %2309
  %v2311 = vsel %vm1857, %v2161, 0.0
  %2312 = vadd.xlane.f32.xlu0 %v2311
  %v2313 = vpop.xlane.xlu0 %2312
  %v2314 = vsel %vm1857, %v2163, 0.0
  %2315 = vadd.xlane.f32.xlu0 %v2314
  %v2316 = vpop.xlane.xlu0 %2315
  %v2317 = vsel %vm1857, %v2165, 0.0
  %2318 = vadd.xlane.f32.xlu0 %v2317
  %v2319 = vpop.xlane.xlu0 %2318
  %v2320 = vsel %vm1857, %v2167, 0.0
  %2321 = vadd.xlane.f32.xlu0 %v2320
  %v2322 = vpop.xlane.xlu0 %2321
  %v2323 = vsel %vm1857, %v2169, 0.0
  %2324 = vadd.xlane.f32.xlu0 %v2323
  %v2325 = vpop.xlane.xlu0 %2324
  %v2326 = vsel %vm1857, %v2171, 0.0
  %2327 = vadd.xlane.f32.xlu0 %v2326
  %v2328 = vpop.xlane.xlu0 %2327
  %v2329 = vsel %vm1857, %v2173, 0.0
  %2330 = vadd.xlane.f32.xlu0 %v2329
  %v2331 = vpop.xlane.xlu0 %2330
  %v2332 = vsel %vm1857, %v2175, 0.0
  %2333 = vadd.xlane.f32.xlu0 %v2332
  %v2334 = vpop.xlane.xlu0 %2333
  %v2335 = vsel %vm1857, %v2177, 0.0
  %2336 = vadd.xlane.f32.xlu0 %v2335
  %v2337 = vpop.xlane.xlu0 %2336
  %v2338 = vsel %vm1857, %v2179, 0.0
  %2339 = vadd.xlane.f32.xlu0 %v2338
  %v2340 = vpop.xlane.xlu0 %2339
  %v2341 = vsel %vm1857, %v2181, 0.0
  %2342 = vadd.xlane.f32.xlu0 %v2341
  %v2343 = vpop.xlane.xlu0 %2342
  %v2344 = vsel %vm1857, %v2183, 0.0
  %2345 = vadd.xlane.f32.xlu0 %v2344
  %v2346 = vpop.xlane.xlu0 %2345
  %v2347 = vsel %vm1857, %v2185, 0.0
  %2348 = vadd.xlane.f32.xlu0 %v2347
  %v2349 = vpop.xlane.xlu0 %2348
  %v2350 = vsel %vm1857, %v2187, 0.0
  %2351 = vadd.xlane.f32.xlu0 %v2350
  %v2352 = vpop.xlane.xlu0 %2351
  %v2353 = vsel %vm1857, %v2189, 0.0
  %2354 = vadd.xlane.f32.xlu0 %v2353
  %v2355 = vpop.xlane.xlu0 %2354
  %v2356 = vsel %vm1857, %v2191, 0.0
  %2357 = vadd.xlane.f32.xlu0 %v2356
  %v2358 = vpop.xlane.xlu0 %2357
  %v2359 = vsel %vm1857, %v2193, 0.0
  %2360 = vadd.xlane.f32.xlu0 %v2359
  %v2361 = vpop.xlane.xlu0 %2360
  %v2362 = vsel %vm1857, %v2195, 0.0
  %2363 = vadd.xlane.f32.xlu0 %v2362
  %v2364 = vpop.xlane.xlu0 %2363
  %v2365 = vsel %vm1857, %v2197, 0.0
  %2366 = vadd.xlane.f32.xlu0 %v2365
  %v2367 = vpop.xlane.xlu0 %2366
  %v2368 = vsel %vm1857, %v2199, 0.0
  %2369 = vadd.xlane.f32.xlu0 %v2368
  %v2370 = vpop.xlane.xlu0 %2369
  %v2371 = vsel %vm1857, %v2201, 0.0
  %2372 = vadd.xlane.f32.xlu0 %v2371
  %v2373 = vpop.xlane.xlu0 %2372
  %v2374 = vsel %vm1857, %v2203, 0.0
  %2375 = vadd.xlane.f32.xlu0 %v2374
  %v2376 = vpop.xlane.xlu0 %2375
  %v2377 = vsel %vm1857, %v2205, 0.0
  %2378 = vadd.xlane.f32.xlu0 %v2377
  %v2379 = vpop.xlane.xlu0 %2378
  %v2380 = vsel %vm1857, %v2207, 0.0
  %2381 = vadd.xlane.f32.xlu0 %v2380
  %v2382 = vpop.xlane.xlu0 %2381
  %v2383 = vsel %vm1857, %v2209, 0.0
  %2384 = vadd.xlane.f32.xlu0 %v2383
  %v2385 = vpop.xlane.xlu0 %2384
  %v2386 = vsel %vm1857, %v2211, 0.0
  %2387 = vadd.xlane.f32.xlu0 %v2386
  %v2388 = vpop.xlane.xlu0 %2387
  %v2389 = vsel %vm1857, %v2213, 0.0
  %2390 = vadd.xlane.f32.xlu0 %v2389
  %v2391 = vpop.xlane.xlu0 %2390
  %v2392 = vsel %vm1857, %v2215, 0.0
  %2393 = vadd.xlane.f32.xlu0 %v2392
  %v2394 = vpop.xlane.xlu0 %2393
  %v2395 = vsel %vm1857, %v2217, 0.0
  %2396 = vadd.xlane.f32.xlu0 %v2395
  %v2397 = vpop.xlane.xlu0 %2396
  %v2398 = vsel %vm1857, %v2219, 0.0
  %2399 = vadd.xlane.f32.xlu0 %v2398
  %v2400 = vpop.xlane.xlu0 %2399
  %v2401 = vsel %vm1857, %v2221, 0.0
  %2402 = vadd.xlane.f32.xlu0 %v2401
  %v2403 = vpop.xlane.xlu0 %2402
  %v2404 = vsel %vm1857, %v2223, 0.0
  %2405 = vadd.xlane.f32.xlu0 %v2404
  %v2406 = vpop.xlane.xlu0 %2405
  %v2407 = vsel %vm1857, %v2225, 0.0
  %2408 = vadd.xlane.f32.xlu0 %v2407
  %v2409 = vpop.xlane.xlu0 %2408
  %v2410 = vsel %vm1857, %v2227, 0.0
  %2411 = vadd.xlane.f32.xlu0 %v2410
  %v2412 = vpop.xlane.xlu0 %2411
  %v2413 = vsel %vm1857, %v2229, 0.0
  %2414 = vadd.xlane.f32.xlu0 %v2413
  %v2415 = vpop.xlane.xlu0 %2414
  %v2416 = vsel %vm1857, %v2231, 0.0
  %2417 = vadd.xlane.f32.xlu0 %v2416
  %v2418 = vpop.xlane.xlu0 %2417
  %v2419 = vsel %vm1857, %v2233, 0.0
  %2420 = vadd.xlane.f32.xlu0 %v2419
  %v2421 = vpop.xlane.xlu0 %2420
  %v2422 = vsel %vm1857, %v2235, 0.0
  %2423 = vadd.xlane.f32.xlu0 %v2422
  %v2424 = vpop.xlane.xlu0 %2423
  %v2425 = vsel %vm1857, %v2237, 0.0
  %2426 = vadd.xlane.f32.xlu0 %v2425
  %v2427 = vpop.xlane.xlu0 %2426
  %v2428 = vsel %vm1857, %v2239, 0.0
  %2429 = vadd.xlane.f32.xlu0 %v2428
  %v2430 = vpop.xlane.xlu0 %2429
  %v2431 = vsel %vm1857, %v2241, 0.0
  %2432 = vadd.xlane.f32.xlu0 %v2431
  %v2433 = vpop.xlane.xlu0 %2432
  %v2434 = vrcp.pop %v2244
  %v2435 = vrcp.pop %v2247
  %v2436 = vrcp.pop %v2250
  %v2437 = vrcp.pop %v2253
  %v2438 = vrcp.pop %v2256
  %v2439 = vrcp.pop %v2259
  %v2440 = vrcp.pop %v2262
  %v2441 = vrcp.pop %v2265
  %v2442 = vrcp.pop %v2268
  %v2443 = vrcp.pop %v2271
  %v2444 = vrcp.pop %v2274
  %v2445 = vrcp.pop %v2277
  %v2446 = vrcp.pop %v2280
  %v2447 = vrcp.pop %v2283
  %v2448 = vrcp.pop %v2286
  %v2449 = vrcp.pop %v2289
  %v2450 = vrcp.pop %v2292
  %v2451 = vrcp.pop %v2295
  %v2452 = vrcp.pop %v2298
  %v2453 = vrcp.pop %v2301
  %v2454 = vrcp.pop %v2304
  %v2455 = vrcp.pop %v2307
  %v2456 = vrcp.pop %v2310
  %v2457 = vrcp.pop %v2313
  %v2458 = vrcp.pop %v2316
  %v2459 = vrcp.pop %v2319
  %v2460 = vrcp.pop %v2322
  %v2461 = vrcp.pop %v2325
  %v2462 = vrcp.pop %v2328
  %v2463 = vrcp.pop %v2331
  %v2464 = vrcp.pop %v2334
  %v2465 = vrcp.pop %v2337
  %v2466 = vrcp.pop %v2340
  %v2467 = vrcp.pop %v2343
  %v2468 = vrcp.pop %v2346
  %v2469 = vrcp.pop %v2349
  %v2470 = vrcp.pop %v2352
  %v2471 = vrcp.pop %v2355
  %v2472 = vrcp.pop %v2358
  %v2473 = vrcp.pop %v2361
  %v2474 = vrcp.pop %v2364
  %v2475 = vrcp.pop %v2367
  %v2476 = vrcp.pop %v2370
  %v2477 = vrcp.pop %v2373
  %v2478 = vrcp.pop %v2376
  %v2479 = vrcp.pop %v2379
  %v2480 = vrcp.pop %v2382
  %v2481 = vrcp.pop %v2385
  %v2482 = vrcp.pop %v2388
  %v2483 = vrcp.pop %v2391
  %v2484 = vrcp.pop %v2394
  %v2485 = vrcp.pop %v2397
  %v2486 = vrcp.pop %v2400
  %v2487 = vrcp.pop %v2403
  %v2488 = vrcp.pop %v2406
  %v2489 = vrcp.pop %v2409
  %v2490 = vrcp.pop %v2412
  %v2491 = vrcp.pop %v2415
  %v2492 = vrcp.pop %v2418
  %v2493 = vrcp.pop %v2421
  %v2494 = vrcp.pop %v2424
  %v2495 = vrcp.pop %v2427
  %v2496 = vrcp.pop %v2430
  %v2497 = vrcp.pop %v2433
  %v2498 = vmul.f32 %v2115, %v2434
  %v2499 = vmul.f32 %v2117, %v2435
  %v2500 = vmul.f32 %v2119, %v2436
  %v2501 = vmul.f32 %v2121, %v2437
  %v2502 = vmul.f32 %v2123, %v2438
  %v2503 = vmul.f32 %v2125, %v2439
  %v2504 = vmul.f32 %v2127, %v2440
  %v2505 = vmul.f32 %v2129, %v2441
  %v2506 = vmul.f32 %v2131, %v2442
  %v2507 = vmul.f32 %v2133, %v2443
  %v2508 = vmul.f32 %v2135, %v2444
  %v2509 = vmul.f32 %v2137, %v2445
  %v2510 = vmul.f32 %v2139, %v2446
  %v2511 = vmul.f32 %v2141, %v2447
  %v2512 = vmul.f32 %v2143, %v2448
  %v2513 = vmul.f32 %v2145, %v2449
  %v2514 = vmul.f32 %v2147, %v2450
  %v2515 = vmul.f32 %v2149, %v2451
  %v2516 = vmul.f32 %v2151, %v2452
  %v2517 = vmul.f32 %v2153, %v2453
  %v2518 = vmul.f32 %v2155, %v2454
  %v2519 = vmul.f32 %v2157, %v2455
  %v2520 = vmul.f32 %v2159, %v2456
  %v2521 = vmul.f32 %v2161, %v2457
  %v2522 = vmul.f32 %v2163, %v2458
  %v2523 = vmul.f32 %v2165, %v2459
  %v2524 = vmul.f32 %v2167, %v2460
  %v2525 = vmul.f32 %v2169, %v2461
  %v2526 = vmul.f32 %v2171, %v2462
  %v2527 = vmul.f32 %v2173, %v2463
  %v2528 = vmul.f32 %v2175, %v2464
  %v2529 = vmul.f32 %v2177, %v2465
  %v2530 = vmul.f32 %v2179, %v2466
  %v2531 = vmul.f32 %v2181, %v2467
  %v2532 = vmul.f32 %v2183, %v2468
  %v2533 = vmul.f32 %v2185, %v2469
  %v2534 = vmul.f32 %v2187, %v2470
  %v2535 = vmul.f32 %v2189, %v2471
  %v2536 = vmul.f32 %v2191, %v2472
  %v2537 = vmul.f32 %v2193, %v2473
  %v2538 = vmul.f32 %v2195, %v2474
  %v2539 = vmul.f32 %v2197, %v2475
  %v2540 = vmul.f32 %v2199, %v2476
  %v2541 = vmul.f32 %v2201, %v2477
  %v2542 = vmul.f32 %v2203, %v2478
  %v2543 = vmul.f32 %v2205, %v2479
  %v2544 = vmul.f32 %v2207, %v2480
  %v2545 = vmul.f32 %v2209, %v2481
  %v2546 = vmul.f32 %v2211, %v2482
  %v2547 = vmul.f32 %v2213, %v2483
  %v2548 = vmul.f32 %v2215, %v2484
  %v2549 = vmul.f32 %v2217, %v2485
  %v2550 = vmul.f32 %v2219, %v2486
  %v2551 = vmul.f32 %v2221, %v2487
  %v2552 = vmul.f32 %v2223, %v2488
  %v2553 = vmul.f32 %v2225, %v2489
  %v2554 = vmul.f32 %v2227, %v2490
  %v2555 = vmul.f32 %v2229, %v2491
  %v2556 = vmul.f32 %v2231, %v2492
  %v2557 = vmul.f32 %v2233, %v2493
  %v2558 = vmul.f32 %v2235, %v2494
  %v2559 = vmul.f32 %v2237, %v2495
  %v2560 = vmul.f32 %v2239, %v2496
  %v2561 = vmul.f32 %v2241, %v2497
  %2562 = vrot.lane.b32.xlu0 %v442, 64
  %v2563 = vpop.permute.xlu0 %2562
  %2564 = vrot.lane.b32.xlu0 %v447, 64
  %v2565 = vpop.permute.xlu0 %2564
  %2566 = vrot.lane.b32.xlu0 %v452, 64
  %v2567 = vpop.permute.xlu0 %2566
  %2568 = vrot.lane.b32.xlu0 %v457, 64
  %v2569 = vpop.permute.xlu0 %2568
  %2570 = vrot.lane.b32.xlu0 %v462, 64
  %v2571 = vpop.permute.xlu0 %2570
  %2572 = vrot.lane.b32.xlu0 %v467, 64
  %v2573 = vpop.permute.xlu0 %2572
  %2574 = vrot.lane.b32.xlu0 %v472, 64
  %v2575 = vpop.permute.xlu0 %2574
  %2576 = vrot.lane.b32.xlu0 %v477, 64
  %v2577 = vpop.permute.xlu0 %2576
  %v2587 = vsel %vm1857, %v2498, 0
  %v2590 = vsel %vm1857, %v2499, 0
  %v2593 = vsel %vm1857, %v2500, 0
  %v2596 = vsel %vm1857, %v2501, 0
  %v2599 = vsel %vm1857, %v2502, 0
  %v2602 = vsel %vm1857, %v2503, 0
  %v2605 = vsel %vm1857, %v2504, 0
  %v2608 = vsel %vm1857, %v2505, 0
  %2610 = vmatprep.subr.mxu0 0.0
  %2611 = vmatpush1.msra.mxu0 %v2563
  %2612 = vmatprep.subr.mxu0 0.0
  %2613 = vmatpush1.msra.mxu0 %v2565
  %2614 = vmatprep.subr.mxu0 0.0
  %2615 = vmatpush1.msra.mxu0 %v2567
  %2616 = vmatprep.subr.mxu0 0.0
  %2617 = vmatpush1.msra.mxu0 %v2569
  %2618 = vmatprep.subr.mxu0 0.0
  %2619 = vmatpush1.msra.mxu0 %v2571
  %2620 = vmatprep.subr.mxu0 0.0
  %2621 = vmatpush1.msra.mxu0 %v2573
  %2622 = vmatprep.subr.mxu0 0.0
  %2623 = vmatpush1.msra.mxu0 %v2575
  %2624 = vmatprep.subr.mxu0 0.0
  %2625 = vmatpush1.msra.mxu0 %v2577
  %2626 = vmatprep.subr.mxu0 0.0
  %2627 = vmatpush1.msra.mxu0 0.0
  %2628 = vmatprep.subr.mxu0 0.0
  %2629 = vmatpush1.msra.mxu0 0.0
  %2630 = vmatprep.subr.mxu0 0.0
  %2631 = vmatpush1.msra.mxu0 0.0
  %2632 = vmatprep.subr.mxu0 0.0
  %2633 = vmatpush1.msra.mxu0 0.0
  %2634 = vmatprep.subr.mxu0 0.0
  %2635 = vmatpush1.msra.mxu0 0.0
  %2636 = vmatprep.subr.mxu0 0.0
  %2637 = vmatpush1.msra.mxu0 0.0
  %2638 = vmatprep.subr.mxu0 0.0
  %2639 = vmatpush1.msra.mxu0 0.0
  %2640 = vmatprep.subr.mxu0 0.0
  %2641 = vmatpush1.msra.mxu0 0.0
  %2642 = vmatprep.subr.mxu0 0.0
  %2643 = vmatpush1.msra.mxu0 0.0
  %2644 = vmatprep.subr.mxu0 0.0
  %2645 = vmatpush1.msra.mxu0 0.0
  %2646 = vmatprep.subr.mxu0 0.0
  %2647 = vmatpush1.msra.mxu0 0.0
  %2648 = vmatprep.subr.mxu0 0.0
  %2649 = vmatpush1.msra.mxu0 0.0
  %2650 = vmatprep.subr.mxu0 0.0
  %2651 = vmatpush1.msra.mxu0 0.0
  %2652 = vmatprep.subr.mxu0 0.0
  %2653 = vmatpush1.msra.mxu0 0.0
  %2654 = vmatprep.subr.mxu0 0.0
  %2655 = vmatpush1.msra.mxu0 0.0
  %2656 = vmatprep.subr.mxu0 0.0
  %2657 = vmatpush1.msra.mxu0 0.0
  %2658 = vmatprep.subr.mxu0 0.0
  %2659 = vmatpush1.msra.mxu0 0.0
  %2660 = vmatprep.subr.mxu0 0.0
  %2661 = vmatpush1.msra.mxu0 0.0
  %2662 = vmatprep.subr.mxu0 0.0
  %2663 = vmatpush1.msra.mxu0 0.0
  %2664 = vmatprep.subr.mxu0 0.0
  %2665 = vmatpush1.msra.mxu0 0.0
  %2666 = vmatprep.subr.mxu0 0.0
  %2667 = vmatpush1.msra.mxu0 0.0
  %2668 = vmatprep.subr.mxu0 0.0
  %2669 = vmatpush1.msra.mxu0 0.0
  %2670 = vmatprep.subr.mxu0 0.0
  %2671 = vmatpush1.msra.mxu0 0.0
  %2672 = vmatprep.subr.mxu0 0.0
  %2673 = vmatpush1.msra.mxu0 0.0
  %2674 = vmatprep.mubr.f32.mxu0 0.0
  %2675 = vmatmul.mubr.f32.gmra.mrb[0].mxu0 %v2587
  %v2676 = vpop.f32.mrb[0].mxu0
  %v2677 = vadd.f32 0.0, %v2676
  %v2678 = vpop.f32.mrb[0].mxu0
  %2679 = vmatprep.mubr.f32.mxu0 0.0
  %2680 = vmatmul.mubr.f32.gmra.mrb[0].mxu0 %v2590
  %v2681 = vpop.f32.mrb[0].mxu0
  %v2682 = vadd.f32 0.0, %v2681
  %v2683 = vpop.f32.mrb[0].mxu0
  %2684 = vmatprep.mubr.f32.mxu0 0.0
  %2685 = vmatmul.mubr.f32.gmra.mrb[0].mxu0 %v2593
  %v2686 = vpop.f32.mrb[0].mxu0
  %v2687 = vadd.f32 0.0, %v2686
  %v2688 = vpop.f32.mrb[0].mxu0
  %2689 = vmatprep.mubr.f32.mxu0 0.0
  %2690 = vmatmul.mubr.f32.gmra.mrb[0].mxu0 %v2596
  %v2691 = vpop.f32.mrb[0].mxu0
  %v2692 = vadd.f32 0.0, %v2691
  %v2693 = vpop.f32.mrb[0].mxu0
  %2694 = vmatprep.mubr.f32.mxu0 0.0
  %2695 = vmatmul.mubr.f32.gmra.mrb[0].mxu0 %v2599
  %v2696 = vpop.f32.mrb[0].mxu0
  %v2697 = vadd.f32 0.0, %v2696
  %v2698 = vpop.f32.mrb[0].mxu0
  %2699 = vmatprep.mubr.f32.mxu0 0.0
  %2700 = vmatmul.mubr.f32.gmra.mrb[0].mxu0 %v2602
  %v2701 = vpop.f32.mrb[0].mxu0
  %v2702 = vadd.f32 0.0, %v2701
  %v2703 = vpop.f32.mrb[0].mxu0
  %2704 = vmatprep.mubr.f32.mxu0 0.0
  %2705 = vmatmul.mubr.f32.gmra.mrb[0].mxu0 %v2605
  %v2706 = vpop.f32.mrb[0].mxu0
  %v2707 = vadd.f32 0.0, %v2706
  %v2708 = vpop.f32.mrb[0].mxu0
  %2709 = vmatprep.mubr.f32.mxu0 0.0
  %2710 = vmatmul.mubr.f32.gmra.mrb[0].mxu0 %v2608
  %v2711 = vpop.f32.mrb[0].mxu0
  %v2712 = vadd.f32 0.0, %v2711
  %v2713 = vpop.f32.mrb[0].mxu0
  %2714 = vdwg.mxu0
  %2715 = vrot.lane.b32.xlu0 %v482, 64
  %v2716 = vpop.permute.xlu0 %2715
  %2717 = vrot.lane.b32.xlu0 %v487, 64
  %v2718 = vpop.permute.xlu0 %2717
  %2719 = vrot.lane.b32.xlu0 %v492, 64
  %v2720 = vpop.permute.xlu0 %2719
  %2721 = vrot.lane.b32.xlu0 %v497, 64
  %v2722 = vpop.permute.xlu0 %2721
  %2723 = vrot.lane.b32.xlu0 %v502, 64
  %v2724 = vpop.permute.xlu0 %2723
  %2725 = vrot.lane.b32.xlu0 %v507, 64
  %v2726 = vpop.permute.xlu0 %2725
  %2727 = vrot.lane.b32.xlu0 %v512, 64
  %v2728 = vpop.permute.xlu0 %2727
  %2729 = vrot.lane.b32.xlu0 %v517, 64
  %v2730 = vpop.permute.xlu0 %2729
  %v2740 = vsel %vm1857, %v2506, 0
  %v2743 = vsel %vm1857, %v2507, 0
  %v2746 = vsel %vm1857, %v2508, 0
  %v2749 = vsel %vm1857, %v2509, 0
  %v2752 = vsel %vm1857, %v2510, 0
  %v2755 = vsel %vm1857, %v2511, 0
  %v2758 = vsel %vm1857, %v2512, 0
  %v2761 = vsel %vm1857, %v2513, 0
  %2763 = vmatprep.subr.mxu0 0.0
  %2764 = vmatpush1.msra.mxu0 %v2716
  %2765 = vmatprep.subr.mxu0 0.0
  %2766 = vmatpush1.msra.mxu0 %v2718
  %2767 = vmatprep.subr.mxu0 0.0
  %2768 = vmatpush1.msra.mxu0 %v2720
  %2769 = vmatprep.subr.mxu0 0.0
  %2770 = vmatpush1.msra.mxu0 %v2722
  %2771 = vmatprep.subr.mxu0 0.0
  %2772 = vmatpush1.msra.mxu0 %v2724
  %2773 = vmatprep.subr.mxu0 0.0
  %2774 = vmatpush1.msra.mxu0 %v2726
  %2775 = vmatprep.subr.mxu0 0.0
  %2776 = vmatpush1.msra.mxu0 %v2728
  %2777 = vmatprep.subr.mxu0 0.0
  %2778 = vmatpush1.msra.mxu0 %v2730
  %2779 = vmatprep.subr.mxu0 0.0
  %2780 = vmatpush1.msra.mxu0 0.0
  %2781 = vmatprep.subr.mxu0 0.0
  %2782 = vmatpush1.msra.mxu0 0.0
  %2783 = vmatprep.subr.mxu0 0.0
  %2784 = vmatpush1.msra.mxu0 0.0
  %2785 = vmatprep.subr.mxu0 0.0
  %2786 = vmatpush1.msra.mxu0 0.0
  %2787 = vmatprep.subr.mxu0 0.0
  %2788 = vmatpush1.msra.mxu0 0.0
  %2789 = vmatprep.subr.mxu0 0.0
  %2790 = vmatpush1.msra.mxu0 0.0
  %2791 = vmatprep.subr.mxu0 0.0
  %2792 = vmatpush1.msra.mxu0 0.0
  %2793 = vmatprep.subr.mxu0 0.0
  %2794 = vmatpush1.msra.mxu0 0.0
  %2795 = vmatprep.subr.mxu0 0.0
  %2796 = vmatpush1.msra.mxu0 0.0
  %2797 = vmatprep.subr.mxu0 0.0
  %2798 = vmatpush1.msra.mxu0 0.0
  %2799 = vmatprep.subr.mxu0 0.0
  %2800 = vmatpush1.msra.mxu0 0.0
  %2801 = vmatprep.subr.mxu0 0.0
  %2802 = vmatpush1.msra.mxu0 0.0
  %2803 = vmatprep.subr.mxu0 0.0
  %2804 = vmatpush1.msra.mxu0 0.0
  %2805 = vmatprep.subr.mxu0 0.0
  %2806 = vmatpush1.msra.mxu0 0.0
  %2807 = vmatprep.subr.mxu0 0.0
  %2808 = vmatpush1.msra.mxu0 0.0
  %2809 = vmatprep.subr.mxu0 0.0
  %2810 = vmatpush1.msra.mxu0 0.0
  %2811 = vmatprep.subr.mxu0 0.0
  %2812 = vmatpush1.msra.mxu0 0.0
  %2813 = vmatprep.subr.mxu0 0.0
  %2814 = vmatpush1.msra.mxu0 0.0
  %2815 = vmatprep.subr.mxu0 0.0
  %2816 = vmatpush1.msra.mxu0 0.0
  %2817 = vmatprep.subr.mxu0 0.0
  %2818 = vmatpush1.msra.mxu0 0.0
  %2819 = vmatprep.subr.mxu0 0.0
  %2820 = vmatpush1.msra.mxu0 0.0
  %2821 = vmatprep.subr.mxu0 0.0
  %2822 = vmatpush1.msra.mxu0 0.0
  %2823 = vmatprep.subr.mxu0 0.0
  %2824 = vmatpush1.msra.mxu0 0.0
  %2825 = vmatprep.subr.mxu0 0.0
  %2826 = vmatpush1.msra.mxu0 0.0
  %2827 = vmatprep.mubr.f32.mxu0 0.0
  %2828 = vmatmul.mubr.f32.gmra.mrb[0].mxu0 %v2740
  %v2829 = vpop.f32.mrb[0].mxu0
  %v2830 = vadd.f32 0.0, %v2829
  %v2831 = vpop.f32.mrb[0].mxu0
  %2832 = vmatprep.mubr.f32.mxu0 0.0
  %2833 = vmatmul.mubr.f32.gmra.mrb[0].mxu0 %v2743
  %v2834 = vpop.f32.mrb[0].mxu0
  %v2835 = vadd.f32 0.0, %v2834
  %v2836 = vpop.f32.mrb[0].mxu0
  %2837 = vmatprep.mubr.f32.mxu0 0.0
  %2838 = vmatmul.mubr.f32.gmra.mrb[0].mxu0 %v2746
  %v2839 = vpop.f32.mrb[0].mxu0
  %v2840 = vadd.f32 0.0, %v2839
  %v2841 = vpop.f32.mrb[0].mxu0
  %2842 = vmatprep.mubr.f32.mxu0 0.0
  %2843 = vmatmul.mubr.f32.gmra.mrb[0].mxu0 %v2749
  %v2844 = vpop.f32.mrb[0].mxu0
  %v2845 = vadd.f32 0.0, %v2844
  %v2846 = vpop.f32.mrb[0].mxu0
  %2847 = vmatprep.mubr.f32.mxu0 0.0
  %2848 = vmatmul.mubr.f32.gmra.mrb[0].mxu0 %v2752
  %v2849 = vpop.f32.mrb[0].mxu0
  %v2850 = vadd.f32 0.0, %v2849
  %v2851 = vpop.f32.mrb[0].mxu0
  %2852 = vmatprep.mubr.f32.mxu0 0.0
  %2853 = vmatmul.mubr.f32.gmra.mrb[0].mxu0 %v2755
  %v2854 = vpop.f32.mrb[0].mxu0
  %v2855 = vadd.f32 0.0, %v2854
  %v2856 = vpop.f32.mrb[0].mxu0
  %2857 = vmatprep.mubr.f32.mxu0 0.0
  %2858 = vmatmul.mubr.f32.gmra.mrb[0].mxu0 %v2758
  %v2859 = vpop.f32.mrb[0].mxu0
  %v2860 = vadd.f32 0.0, %v2859
  %v2861 = vpop.f32.mrb[0].mxu0
  %2862 = vmatprep.mubr.f32.mxu0 0.0
  %2863 = vmatmul.mubr.f32.gmra.mrb[0].mxu0 %v2761
  %v2864 = vpop.f32.mrb[0].mxu0
  %v2865 = vadd.f32 0.0, %v2864
  %v2866 = vpop.f32.mrb[0].mxu0
  %2867 = vdwg.mxu0
  %2868 = vrot.lane.b32.xlu0 %v537, 64
  %v2869 = vpop.permute.xlu0 %2868
  %2870 = vrot.lane.b32.xlu0 %v539, 64
  %v2871 = vpop.permute.xlu0 %2870
  %2872 = vrot.lane.b32.xlu0 %v541, 64
  %v2873 = vpop.permute.xlu0 %2872
  %2874 = vrot.lane.b32.xlu0 %v543, 64
  %v2875 = vpop.permute.xlu0 %2874
  %2876 = vrot.lane.b32.xlu0 %v545, 64
  %v2877 = vpop.permute.xlu0 %2876
  %2878 = vrot.lane.b32.xlu0 %v547, 64
  %v2879 = vpop.permute.xlu0 %2878
  %2880 = vrot.lane.b32.xlu0 %v549, 64
  %v2881 = vpop.permute.xlu0 %2880
  %2882 = vrot.lane.b32.xlu0 %v551, 64
  %v2883 = vpop.permute.xlu0 %2882
  %v2893 = vsel %vm1857, %v2514, 0
  %v2896 = vsel %vm1857, %v2515, 0
  %v2899 = vsel %vm1857, %v2516, 0
  %v2902 = vsel %vm1857, %v2517, 0
  %v2905 = vsel %vm1857, %v2518, 0
  %v2908 = vsel %vm1857, %v2519, 0
  %v2911 = vsel %vm1857, %v2520, 0
  %v2914 = vsel %vm1857, %v2521, 0
  %2916 = vmatprep.subr.mxu0 0.0
  %2917 = vmatpush1.msra.mxu0 %v2869
  %2918 = vmatprep.subr.mxu0 0.0
  %2919 = vmatpush1.msra.mxu0 %v2871
  %2920 = vmatprep.subr.mxu0 0.0
  %2921 = vmatpush1.msra.mxu0 %v2873
  %2922 = vmatprep.subr.mxu0 0.0
  %2923 = vmatpush1.msra.mxu0 %v2875
  %2924 = vmatprep.subr.mxu0 0.0
  %2925 = vmatpush1.msra.mxu0 %v2877
  %2926 = vmatprep.subr.mxu0 0.0
  %2927 = vmatpush1.msra.mxu0 %v2879
  %2928 = vmatprep.subr.mxu0 0.0
  %2929 = vmatpush1.msra.mxu0 %v2881
  %2930 = vmatprep.subr.mxu0 0.0
  %2931 = vmatpush1.msra.mxu0 %v2883
  %2932 = vmatprep.subr.mxu0 0.0
  %2933 = vmatpush1.msra.mxu0 0.0
  %2934 = vmatprep.subr.mxu0 0.0
  %2935 = vmatpush1.msra.mxu0 0.0
  %2936 = vmatprep.subr.mxu0 0.0
  %2937 = vmatpush1.msra.mxu0 0.0
  %2938 = vmatprep.subr.mxu0 0.0
  %2939 = vmatpush1.msra.mxu0 0.0
  %2940 = vmatprep.subr.mxu0 0.0
  %2941 = vmatpush1.msra.mxu0 0.0
  %2942 = vmatprep.subr.mxu0 0.0
  %2943 = vmatpush1.msra.mxu0 0.0
  %2944 = vmatprep.subr.mxu0 0.0
  %2945 = vmatpush1.msra.mxu0 0.0
  %2946 = vmatprep.subr.mxu0 0.0
  %2947 = vmatpush1.msra.mxu0 0.0
  %2948 = vmatprep.subr.mxu0 0.0
  %2949 = vmatpush1.msra.mxu0 0.0
  %2950 = vmatprep.subr.mxu0 0.0
  %2951 = vmatpush1.msra.mxu0 0.0
  %2952 = vmatprep.subr.mxu0 0.0
  %2953 = vmatpush1.msra.mxu0 0.0
  %2954 = vmatprep.subr.mxu0 0.0
  %2955 = vmatpush1.msra.mxu0 0.0
  %2956 = vmatprep.subr.mxu0 0.0
  %2957 = vmatpush1.msra.mxu0 0.0
  %2958 = vmatprep.subr.mxu0 0.0
  %2959 = vmatpush1.msra.mxu0 0.0
  %2960 = vmatprep.subr.mxu0 0.0
  %2961 = vmatpush1.msra.mxu0 0.0
  %2962 = vmatprep.subr.mxu0 0.0
  %2963 = vmatpush1.msra.mxu0 0.0
  %2964 = vmatprep.subr.mxu0 0.0
  %2965 = vmatpush1.msra.mxu0 0.0
  %2966 = vmatprep.subr.mxu0 0.0
  %2967 = vmatpush1.msra.mxu0 0.0
  %2968 = vmatprep.subr.mxu0 0.0
  %2969 = vmatpush1.msra.mxu0 0.0
  %2970 = vmatprep.subr.mxu0 0.0
  %2971 = vmatpush1.msra.mxu0 0.0
  %2972 = vmatprep.subr.mxu0 0.0
  %2973 = vmatpush1.msra.mxu0 0.0
  %2974 = vmatprep.subr.mxu0 0.0
  %2975 = vmatpush1.msra.mxu0 0.0
  %2976 = vmatprep.subr.mxu0 0.0
  %2977 = vmatpush1.msra.mxu0 0.0
  %2978 = vmatprep.subr.mxu0 0.0
  %2979 = vmatpush1.msra.mxu0 0.0
  %2980 = vmatprep.mubr.f32.mxu0 0.0
  %2981 = vmatmul.mubr.f32.gmra.mrb[0].mxu0 %v2893
  %v2982 = vpop.f32.mrb[0].mxu0
  %v2983 = vadd.f32 0.0, %v2982
  %v2984 = vpop.f32.mrb[0].mxu0
  %2985 = vmatprep.mubr.f32.mxu0 0.0
  %2986 = vmatmul.mubr.f32.gmra.mrb[0].mxu0 %v2896
  %v2987 = vpop.f32.mrb[0].mxu0
  %v2988 = vadd.f32 0.0, %v2987
  %v2989 = vpop.f32.mrb[0].mxu0
  %2990 = vmatprep.mubr.f32.mxu0 0.0
  %2991 = vmatmul.mubr.f32.gmra.mrb[0].mxu0 %v2899
  %v2992 = vpop.f32.mrb[0].mxu0
  %v2993 = vadd.f32 0.0, %v2992
  %v2994 = vpop.f32.mrb[0].mxu0
  %2995 = vmatprep.mubr.f32.mxu0 0.0
  %2996 = vmatmul.mubr.f32.gmra.mrb[0].mxu0 %v2902
  %v2997 = vpop.f32.mrb[0].mxu0
  %v2998 = vadd.f32 0.0, %v2997
  %v2999 = vpop.f32.mrb[0].mxu0
  %3000 = vmatprep.mubr.f32.mxu0 0.0
  %3001 = vmatmul.mubr.f32.gmra.mrb[0].mxu0 %v2905
  %v3002 = vpop.f32.mrb[0].mxu0
  %v3003 = vadd.f32 0.0, %v3002
  %v3004 = vpop.f32.mrb[0].mxu0
  %3005 = vmatprep.mubr.f32.mxu0 0.0
  %3006 = vmatmul.mubr.f32.gmra.mrb[0].mxu0 %v2908
  %v3007 = vpop.f32.mrb[0].mxu0
  %v3008 = vadd.f32 0.0, %v3007
  %v3009 = vpop.f32.mrb[0].mxu0
  %3010 = vmatprep.mubr.f32.mxu0 0.0
  %3011 = vmatmul.mubr.f32.gmra.mrb[0].mxu0 %v2911
  %v3012 = vpop.f32.mrb[0].mxu0
  %v3013 = vadd.f32 0.0, %v3012
  %v3014 = vpop.f32.mrb[0].mxu0
  %3015 = vmatprep.mubr.f32.mxu0 0.0
  %3016 = vmatmul.mubr.f32.gmra.mrb[0].mxu0 %v2914
  %v3017 = vpop.f32.mrb[0].mxu0
  %v3018 = vadd.f32 0.0, %v3017
  %v3019 = vpop.f32.mrb[0].mxu0
  %3020 = vdwg.mxu0
  %3021 = vrot.lane.b32.xlu0 %v553, 64
  %v3022 = vpop.permute.xlu0 %3021
  %3023 = vrot.lane.b32.xlu0 %v555, 64
  %v3024 = vpop.permute.xlu0 %3023
  %3025 = vrot.lane.b32.xlu0 %v557, 64
  %v3026 = vpop.permute.xlu0 %3025
  %3027 = vrot.lane.b32.xlu0 %v559, 64
  %v3028 = vpop.permute.xlu0 %3027
  %3029 = vrot.lane.b32.xlu0 %v561, 64
  %v3030 = vpop.permute.xlu0 %3029
  %3031 = vrot.lane.b32.xlu0 %v563, 64
  %v3032 = vpop.permute.xlu0 %3031
  %3033 = vrot.lane.b32.xlu0 %v565, 64
  %v3034 = vpop.permute.xlu0 %3033
  %3035 = vrot.lane.b32.xlu0 %v567, 64
  %v3036 = vpop.permute.xlu0 %3035
  %v3046 = vsel %vm1857, %v2522, 0
  %v3049 = vsel %vm1857, %v2523, 0
  %v3052 = vsel %vm1857, %v2524, 0
  %v3055 = vsel %vm1857, %v2525, 0
  %v3058 = vsel %vm1857, %v2526, 0
  %v3061 = vsel %vm1857, %v2527, 0
  %v3064 = vsel %vm1857, %v2528, 0
  %v3067 = vsel %vm1857, %v2529, 0
  %3069 = vmatprep.subr.mxu0 0.0
  %3070 = vmatpush1.msra.mxu0 %v3022
  %3071 = vmatprep.subr.mxu0 0.0
  %3072 = vmatpush1.msra.mxu0 %v3024
  %3073 = vmatprep.subr.mxu0 0.0
  %3074 = vmatpush1.msra.mxu0 %v3026
  %3075 = vmatprep.subr.mxu0 0.0
  %3076 = vmatpush1.msra.mxu0 %v3028
  %3077 = vmatprep.subr.mxu0 0.0
  %3078 = vmatpush1.msra.mxu0 %v3030
  %3079 = vmatprep.subr.mxu0 0.0
  %3080 = vmatpush1.msra.mxu0 %v3032
  %3081 = vmatprep.subr.mxu0 0.0
  %3082 = vmatpush1.msra.mxu0 %v3034
  %3083 = vmatprep.subr.mxu0 0.0
  %3084 = vmatpush1.msra.mxu0 %v3036
  %3085 = vmatprep.subr.mxu0 0.0
  %3086 = vmatpush1.msra.mxu0 0.0
  %3087 = vmatprep.subr.mxu0 0.0
  %3088 = vmatpush1.msra.mxu0 0.0
  %3089 = vmatprep.subr.mxu0 0.0
  %3090 = vmatpush1.msra.mxu0 0.0
  %3091 = vmatprep.subr.mxu0 0.0
  %3092 = vmatpush1.msra.mxu0 0.0
  %3093 = vmatprep.subr.mxu0 0.0
  %3094 = vmatpush1.msra.mxu0 0.0
  %3095 = vmatprep.subr.mxu0 0.0
  %3096 = vmatpush1.msra.mxu0 0.0
  %3097 = vmatprep.subr.mxu0 0.0
  %3098 = vmatpush1.msra.mxu0 0.0
  %3099 = vmatprep.subr.mxu0 0.0
  %3100 = vmatpush1.msra.mxu0 0.0
  %3101 = vmatprep.subr.mxu0 0.0
  %3102 = vmatpush1.msra.mxu0 0.0
  %3103 = vmatprep.subr.mxu0 0.0
  %3104 = vmatpush1.msra.mxu0 0.0
  %3105 = vmatprep.subr.mxu0 0.0
  %3106 = vmatpush1.msra.mxu0 0.0
  %3107 = vmatprep.subr.mxu0 0.0
  %3108 = vmatpush1.msra.mxu0 0.0
  %3109 = vmatprep.subr.mxu0 0.0
  %3110 = vmatpush1.msra.mxu0 0.0
  %3111 = vmatprep.subr.mxu0 0.0
  %3112 = vmatpush1.msra.mxu0 0.0
  %3113 = vmatprep.subr.mxu0 0.0
  %3114 = vmatpush1.msra.mxu0 0.0
  %3115 = vmatprep.subr.mxu0 0.0
  %3116 = vmatpush1.msra.mxu0 0.0
  %3117 = vmatprep.subr.mxu0 0.0
  %3118 = vmatpush1.msra.mxu0 0.0
  %3119 = vmatprep.subr.mxu0 0.0
  %3120 = vmatpush1.msra.mxu0 0.0
  %3121 = vmatprep.subr.mxu0 0.0
  %3122 = vmatpush1.msra.mxu0 0.0
  %3123 = vmatprep.subr.mxu0 0.0
  %3124 = vmatpush1.msra.mxu0 0.0
  %3125 = vmatprep.subr.mxu0 0.0
  %3126 = vmatpush1.msra.mxu0 0.0
  %3127 = vmatprep.subr.mxu0 0.0
  %3128 = vmatpush1.msra.mxu0 0.0
  %3129 = vmatprep.subr.mxu0 0.0
  %3130 = vmatpush1.msra.mxu0 0.0
  %3131 = vmatprep.subr.mxu0 0.0
  %3132 = vmatpush1.msra.mxu0 0.0
  %3133 = vmatprep.mubr.f32.mxu0 0.0
  %3134 = vmatmul.mubr.f32.gmra.mrb[0].mxu0 %v3046
  %v3135 = vpop.f32.mrb[0].mxu0
  %v3136 = vadd.f32 0.0, %v3135
  %v3137 = vpop.f32.mrb[0].mxu0
  %3138 = vmatprep.mubr.f32.mxu0 0.0
  %3139 = vmatmul.mubr.f32.gmra.mrb[0].mxu0 %v3049
  %v3140 = vpop.f32.mrb[0].mxu0
  %v3141 = vadd.f32 0.0, %v3140
  %v3142 = vpop.f32.mrb[0].mxu0
  %3143 = vmatprep.mubr.f32.mxu0 0.0
  %3144 = vmatmul.mubr.f32.gmra.mrb[0].mxu0 %v3052
  %v3145 = vpop.f32.mrb[0].mxu0
  %v3146 = vadd.f32 0.0, %v3145
  %v3147 = vpop.f32.mrb[0].mxu0
  %3148 = vmatprep.mubr.f32.mxu0 0.0
  %3149 = vmatmul.mubr.f32.gmra.mrb[0].mxu0 %v3055
  %v3150 = vpop.f32.mrb[0].mxu0
  %v3151 = vadd.f32 0.0, %v3150
  %v3152 = vpop.f32.mrb[0].mxu0
  %3153 = vmatprep.mubr.f32.mxu0 0.0
  %3154 = vmatmul.mubr.f32.gmra.mrb[0].mxu0 %v3058
  %v3155 = vpop.f32.mrb[0].mxu0
  %v3156 = vadd.f32 0.0, %v3155
  %v3157 = vpop.f32.mrb[0].mxu0
  %3158 = vmatprep.mubr.f32.mxu0 0.0
  %3159 = vmatmul.mubr.f32.gmra.mrb[0].mxu0 %v3061
  %v3160 = vpop.f32.mrb[0].mxu0
  %v3161 = vadd.f32 0.0, %v3160
  %v3162 = vpop.f32.mrb[0].mxu0
  %3163 = vmatprep.mubr.f32.mxu0 0.0
  %3164 = vmatmul.mubr.f32.gmra.mrb[0].mxu0 %v3064
  %v3165 = vpop.f32.mrb[0].mxu0
  %v3166 = vadd.f32 0.0, %v3165
  %v3167 = vpop.f32.mrb[0].mxu0
  %3168 = vmatprep.mubr.f32.mxu0 0.0
  %3169 = vmatmul.mubr.f32.gmra.mrb[0].mxu0 %v3067
  %v3170 = vpop.f32.mrb[0].mxu0
  %v3171 = vadd.f32 0.0, %v3170
  %v3172 = vpop.f32.mrb[0].mxu0
  %3173 = vdwg.mxu0
  %3174 = vrot.lane.b32.xlu0 %v569, 64
  %v3175 = vpop.permute.xlu0 %3174
  %3176 = vrot.lane.b32.xlu0 %v571, 64
  %v3177 = vpop.permute.xlu0 %3176
  %3178 = vrot.lane.b32.xlu0 %v573, 64
  %v3179 = vpop.permute.xlu0 %3178
  %3180 = vrot.lane.b32.xlu0 %v575, 64
  %v3181 = vpop.permute.xlu0 %3180
  %3182 = vrot.lane.b32.xlu0 %v577, 64
  %v3183 = vpop.permute.xlu0 %3182
  %3184 = vrot.lane.b32.xlu0 %v579, 64
  %v3185 = vpop.permute.xlu0 %3184
  %3186 = vrot.lane.b32.xlu0 %v581, 64
  %v3187 = vpop.permute.xlu0 %3186
  %3188 = vrot.lane.b32.xlu0 %v583, 64
  %v3189 = vpop.permute.xlu0 %3188
  %v3199 = vsel %vm1857, %v2530, 0
  %v3202 = vsel %vm1857, %v2531, 0
  %v3205 = vsel %vm1857, %v2532, 0
  %v3208 = vsel %vm1857, %v2533, 0
  %v3211 = vsel %vm1857, %v2534, 0
  %v3214 = vsel %vm1857, %v2535, 0
  %v3217 = vsel %vm1857, %v2536, 0
  %v3220 = vsel %vm1857, %v2537, 0
  %3222 = vmatprep.subr.mxu0 0.0
  %3223 = vmatpush1.msra.mxu0 %v3175
  %3224 = vmatprep.subr.mxu0 0.0
  %3225 = vmatpush1.msra.mxu0 %v3177
  %3226 = vmatprep.subr.mxu0 0.0
  %3227 = vmatpush1.msra.mxu0 %v3179
  %3228 = vmatprep.subr.mxu0 0.0
  %3229 = vmatpush1.msra.mxu0 %v3181
  %3230 = vmatprep.subr.mxu0 0.0
  %3231 = vmatpush1.msra.mxu0 %v3183
  %3232 = vmatprep.subr.mxu0 0.0
  %3233 = vmatpush1.msra.mxu0 %v3185
  %3234 = vmatprep.subr.mxu0 0.0
  %3235 = vmatpush1.msra.mxu0 %v3187
  %3236 = vmatprep.subr.mxu0 0.0
  %3237 = vmatpush1.msra.mxu0 %v3189
  %3238 = vmatprep.subr.mxu0 0.0
  %3239 = vmatpush1.msra.mxu0 0.0
  %3240 = vmatprep.subr.mxu0 0.0
  %3241 = vmatpush1.msra.mxu0 0.0
  %3242 = vmatprep.subr.mxu0 0.0
  %3243 = vmatpush1.msra.mxu0 0.0
  %3244 = vmatprep.subr.mxu0 0.0
  %3245 = vmatpush1.msra.mxu0 0.0
  %3246 = vmatprep.subr.mxu0 0.0
  %3247 = vmatpush1.msra.mxu0 0.0
  %3248 = vmatprep.subr.mxu0 0.0
  %3249 = vmatpush1.msra.mxu0 0.0
  %3250 = vmatprep.subr.mxu0 0.0
  %3251 = vmatpush1.msra.mxu0 0.0
  %3252 = vmatprep.subr.mxu0 0.0
  %3253 = vmatpush1.msra.mxu0 0.0
  %3254 = vmatprep.subr.mxu0 0.0
  %3255 = vmatpush1.msra.mxu0 0.0
  %3256 = vmatprep.subr.mxu0 0.0
  %3257 = vmatpush1.msra.mxu0 0.0
  %3258 = vmatprep.subr.mxu0 0.0
  %3259 = vmatpush1.msra.mxu0 0.0
  %3260 = vmatprep.subr.mxu0 0.0
  %3261 = vmatpush1.msra.mxu0 0.0
  %3262 = vmatprep.subr.mxu0 0.0
  %3263 = vmatpush1.msra.mxu0 0.0
  %3264 = vmatprep.subr.mxu0 0.0
  %3265 = vmatpush1.msra.mxu0 0.0
  %3266 = vmatprep.subr.mxu0 0.0
  %3267 = vmatpush1.msra.mxu0 0.0
  %3268 = vmatprep.subr.mxu0 0.0
  %3269 = vmatpush1.msra.mxu0 0.0
  %3270 = vmatprep.subr.mxu0 0.0
  %3271 = vmatpush1.msra.mxu0 0.0
  %3272 = vmatprep.subr.mxu0 0.0
  %3273 = vmatpush1.msra.mxu0 0.0
  %3274 = vmatprep.subr.mxu0 0.0
  %3275 = vmatpush1.msra.mxu0 0.0
  %3276 = vmatprep.subr.mxu0 0.0
  %3277 = vmatpush1.msra.mxu0 0.0
  %3278 = vmatprep.subr.mxu0 0.0
  %3279 = vmatpush1.msra.mxu0 0.0
  %3280 = vmatprep.subr.mxu0 0.0
  %3281 = vmatpush1.msra.mxu0 0.0
  %3282 = vmatprep.subr.mxu0 0.0
  %3283 = vmatpush1.msra.mxu0 0.0
  %3284 = vmatprep.subr.mxu0 0.0
  %3285 = vmatpush1.msra.mxu0 0.0
  %3286 = vmatprep.mubr.f32.mxu0 0.0
  %3287 = vmatmul.mubr.f32.gmra.mrb[0].mxu0 %v3199
  %v3288 = vpop.f32.mrb[0].mxu0
  %v3289 = vadd.f32 0.0, %v3288
  %v3290 = vpop.f32.mrb[0].mxu0
  %3291 = vmatprep.mubr.f32.mxu0 0.0
  %3292 = vmatmul.mubr.f32.gmra.mrb[0].mxu0 %v3202
  %v3293 = vpop.f32.mrb[0].mxu0
  %v3294 = vadd.f32 0.0, %v3293
  %v3295 = vpop.f32.mrb[0].mxu0
  %3296 = vmatprep.mubr.f32.mxu0 0.0
  %3297 = vmatmul.mubr.f32.gmra.mrb[0].mxu0 %v3205
  %v3298 = vpop.f32.mrb[0].mxu0
  %v3299 = vadd.f32 0.0, %v3298
  %v3300 = vpop.f32.mrb[0].mxu0
  %3301 = vmatprep.mubr.f32.mxu0 0.0
  %3302 = vmatmul.mubr.f32.gmra.mrb[0].mxu0 %v3208
  %v3303 = vpop.f32.mrb[0].mxu0
  %v3304 = vadd.f32 0.0, %v3303
  %v3305 = vpop.f32.mrb[0].mxu0
  %3306 = vmatprep.mubr.f32.mxu0 0.0
  %3307 = vmatmul.mubr.f32.gmra.mrb[0].mxu0 %v3211
  %v3308 = vpop.f32.mrb[0].mxu0
  %v3309 = vadd.f32 0.0, %v3308
  %v3310 = vpop.f32.mrb[0].mxu0
  %3311 = vmatprep.mubr.f32.mxu0 0.0
  %3312 = vmatmul.mubr.f32.gmra.mrb[0].mxu0 %v3214
  %v3313 = vpop.f32.mrb[0].mxu0
  %v3314 = vadd.f32 0.0, %v3313
  %v3315 = vpop.f32.mrb[0].mxu0
  %3316 = vmatprep.mubr.f32.mxu0 0.0
  %3317 = vmatmul.mubr.f32.gmra.mrb[0].mxu0 %v3217
  %v3318 = vpop.f32.mrb[0].mxu0
  %v3319 = vadd.f32 0.0, %v3318
  %v3320 = vpop.f32.mrb[0].mxu0
  %3321 = vmatprep.mubr.f32.mxu0 0.0
  %3322 = vmatmul.mubr.f32.gmra.mrb[0].mxu0 %v3220
  %v3323 = vpop.f32.mrb[0].mxu0
  %v3324 = vadd.f32 0.0, %v3323
  %v3325 = vpop.f32.mrb[0].mxu0
  %3326 = vdwg.mxu0
  %3327 = vrot.lane.b32.xlu0 %v585, 64
  %v3328 = vpop.permute.xlu0 %3327
  %3329 = vrot.lane.b32.xlu0 %v587, 64
  %v3330 = vpop.permute.xlu0 %3329
  %3331 = vrot.lane.b32.xlu0 %v589, 64
  %v3332 = vpop.permute.xlu0 %3331
  %3333 = vrot.lane.b32.xlu0 %v591, 64
  %v3334 = vpop.permute.xlu0 %3333
  %3335 = vrot.lane.b32.xlu0 %v593, 64
  %v3336 = vpop.permute.xlu0 %3335
  %3337 = vrot.lane.b32.xlu0 %v595, 64
  %v3338 = vpop.permute.xlu0 %3337
  %3339 = vrot.lane.b32.xlu0 %v597, 64
  %v3340 = vpop.permute.xlu0 %3339
  %3341 = vrot.lane.b32.xlu0 %v599, 64
  %v3342 = vpop.permute.xlu0 %3341
  %v3352 = vsel %vm1857, %v2538, 0
  %v3355 = vsel %vm1857, %v2539, 0
  %v3358 = vsel %vm1857, %v2540, 0
  %v3361 = vsel %vm1857, %v2541, 0
  %v3364 = vsel %vm1857, %v2542, 0
  %v3367 = vsel %vm1857, %v2543, 0
  %v3370 = vsel %vm1857, %v2544, 0
  %v3373 = vsel %vm1857, %v2545, 0
  %3375 = vmatprep.subr.mxu0 0.0
  %3376 = vmatpush1.msra.mxu0 %v3328
  %3377 = vmatprep.subr.mxu0 0.0
  %3378 = vmatpush1.msra.mxu0 %v3330
  %3379 = vmatprep.subr.mxu0 0.0
  %3380 = vmatpush1.msra.mxu0 %v3332
  %3381 = vmatprep.subr.mxu0 0.0
  %3382 = vmatpush1.msra.mxu0 %v3334
  %3383 = vmatprep.subr.mxu0 0.0
  %3384 = vmatpush1.msra.mxu0 %v3336
  %3385 = vmatprep.subr.mxu0 0.0
  %3386 = vmatpush1.msra.mxu0 %v3338
  %3387 = vmatprep.subr.mxu0 0.0
  %3388 = vmatpush1.msra.mxu0 %v3340
  %3389 = vmatprep.subr.mxu0 0.0
  %3390 = vmatpush1.msra.mxu0 %v3342
  %3391 = vmatprep.subr.mxu0 0.0
  %3392 = vmatpush1.msra.mxu0 0.0
  %3393 = vmatprep.subr.mxu0 0.0
  %3394 = vmatpush1.msra.mxu0 0.0
  %3395 = vmatprep.subr.mxu0 0.0
  %3396 = vmatpush1.msra.mxu0 0.0
  %3397 = vmatprep.subr.mxu0 0.0
  %3398 = vmatpush1.msra.mxu0 0.0
  %3399 = vmatprep.subr.mxu0 0.0
  %3400 = vmatpush1.msra.mxu0 0.0
  %3401 = vmatprep.subr.mxu0 0.0
  %3402 = vmatpush1.msra.mxu0 0.0
  %3403 = vmatprep.subr.mxu0 0.0
  %3404 = vmatpush1.msra.mxu0 0.0
  %3405 = vmatprep.subr.mxu0 0.0
  %3406 = vmatpush1.msra.mxu0 0.0
  %3407 = vmatprep.subr.mxu0 0.0
  %3408 = vmatpush1.msra.mxu0 0.0
  %3409 = vmatprep.subr.mxu0 0.0
  %3410 = vmatpush1.msra.mxu0 0.0
  %3411 = vmatprep.subr.mxu0 0.0
  %3412 = vmatpush1.msra.mxu0 0.0
  %3413 = vmatprep.subr.mxu0 0.0
  %3414 = vmatpush1.msra.mxu0 0.0
  %3415 = vmatprep.subr.mxu0 0.0
  %3416 = vmatpush1.msra.mxu0 0.0
  %3417 = vmatprep.subr.mxu0 0.0
  %3418 = vmatpush1.msra.mxu0 0.0
  %3419 = vmatprep.subr.mxu0 0.0
  %3420 = vmatpush1.msra.mxu0 0.0
  %3421 = vmatprep.subr.mxu0 0.0
  %3422 = vmatpush1.msra.mxu0 0.0
  %3423 = vmatprep.subr.mxu0 0.0
  %3424 = vmatpush1.msra.mxu0 0.0
  %3425 = vmatprep.subr.mxu0 0.0
  %3426 = vmatpush1.msra.mxu0 0.0
  %3427 = vmatprep.subr.mxu0 0.0
  %3428 = vmatpush1.msra.mxu0 0.0
  %3429 = vmatprep.subr.mxu0 0.0
  %3430 = vmatpush1.msra.mxu0 0.0
  %3431 = vmatprep.subr.mxu0 0.0
  %3432 = vmatpush1.msra.mxu0 0.0
  %3433 = vmatprep.subr.mxu0 0.0
  %3434 = vmatpush1.msra.mxu0 0.0
  %3435 = vmatprep.subr.mxu0 0.0
  %3436 = vmatpush1.msra.mxu0 0.0
  %3437 = vmatprep.subr.mxu0 0.0
  %3438 = vmatpush1.msra.mxu0 0.0
  %3439 = vmatprep.mubr.f32.mxu0 0.0
  %3440 = vmatmul.mubr.f32.gmra.mrb[0].mxu0 %v3352
  %v3441 = vpop.f32.mrb[0].mxu0
  %v3442 = vadd.f32 0.0, %v3441
  %v3443 = vpop.f32.mrb[0].mxu0
  %3444 = vmatprep.mubr.f32.mxu0 0.0
  %3445 = vmatmul.mubr.f32.gmra.mrb[0].mxu0 %v3355
  %v3446 = vpop.f32.mrb[0].mxu0
  %v3447 = vadd.f32 0.0, %v3446
  %v3448 = vpop.f32.mrb[0].mxu0
  %3449 = vmatprep.mubr.f32.mxu0 0.0
  %3450 = vmatmul.mubr.f32.gmra.mrb[0].mxu0 %v3358
  %v3451 = vpop.f32.mrb[0].mxu0
  %v3452 = vadd.f32 0.0, %v3451
  %v3453 = vpop.f32.mrb[0].mxu0
  %3454 = vmatprep.mubr.f32.mxu0 0.0
  %3455 = vmatmul.mubr.f32.gmra.mrb[0].mxu0 %v3361
  %v3456 = vpop.f32.mrb[0].mxu0
  %v3457 = vadd.f32 0.0, %v3456
  %v3458 = vpop.f32.mrb[0].mxu0
  %3459 = vmatprep.mubr.f32.mxu0 0.0
  %3460 = vmatmul.mubr.f32.gmra.mrb[0].mxu0 %v3364
  %v3461 = vpop.f32.mrb[0].mxu0
  %v3462 = vadd.f32 0.0, %v3461
  %v3463 = vpop.f32.mrb[0].mxu0
  %3464 = vmatprep.mubr.f32.mxu0 0.0
  %3465 = vmatmul.mubr.f32.gmra.mrb[0].mxu0 %v3367
  %v3466 = vpop.f32.mrb[0].mxu0
  %v3467 = vadd.f32 0.0, %v3466
  %v3468 = vpop.f32.mrb[0].mxu0
  %3469 = vmatprep.mubr.f32.mxu0 0.0
  %3470 = vmatmul.mubr.f32.gmra.mrb[0].mxu0 %v3370
  %v3471 = vpop.f32.mrb[0].mxu0
  %v3472 = vadd.f32 0.0, %v3471
  %v3473 = vpop.f32.mrb[0].mxu0
  %3474 = vmatprep.mubr.f32.mxu0 0.0
  %3475 = vmatmul.mubr.f32.gmra.mrb[0].mxu0 %v3373
  %v3476 = vpop.f32.mrb[0].mxu0
  %v3477 = vadd.f32 0.0, %v3476
  %v3478 = vpop.f32.mrb[0].mxu0
  %3479 = vdwg.mxu0
  %3480 = vrot.lane.b32.xlu0 %v601, 64
  %v3481 = vpop.permute.xlu0 %3480
  %3482 = vrot.lane.b32.xlu0 %v603, 64
  %v3483 = vpop.permute.xlu0 %3482
  %3484 = vrot.lane.b32.xlu0 %v605, 64
  %v3485 = vpop.permute.xlu0 %3484
  %3486 = vrot.lane.b32.xlu0 %v607, 64
  %v3487 = vpop.permute.xlu0 %3486
  %3488 = vrot.lane.b32.xlu0 %v609, 64
  %v3489 = vpop.permute.xlu0 %3488
  %3490 = vrot.lane.b32.xlu0 %v611, 64
  %v3491 = vpop.permute.xlu0 %3490
  %3492 = vrot.lane.b32.xlu0 %v613, 64
  %v3493 = vpop.permute.xlu0 %3492
  %3494 = vrot.lane.b32.xlu0 %v615, 64
  %v3495 = vpop.permute.xlu0 %3494
  %v3505 = vsel %vm1857, %v2546, 0
  %v3508 = vsel %vm1857, %v2547, 0
  %v3511 = vsel %vm1857, %v2548, 0
  %v3514 = vsel %vm1857, %v2549, 0
  %v3517 = vsel %vm1857, %v2550, 0
  %v3520 = vsel %vm1857, %v2551, 0
  %v3523 = vsel %vm1857, %v2552, 0
  %v3526 = vsel %vm1857, %v2553, 0
  %3528 = vmatprep.subr.mxu0 0.0
  %3529 = vmatpush1.msra.mxu0 %v3481
  %3530 = vmatprep.subr.mxu0 0.0
  %3531 = vmatpush1.msra.mxu0 %v3483
  %3532 = vmatprep.subr.mxu0 0.0
  %3533 = vmatpush1.msra.mxu0 %v3485
  %3534 = vmatprep.subr.mxu0 0.0
  %3535 = vmatpush1.msra.mxu0 %v3487
  %3536 = vmatprep.subr.mxu0 0.0
  %3537 = vmatpush1.msra.mxu0 %v3489
  %3538 = vmatprep.subr.mxu0 0.0
  %3539 = vmatpush1.msra.mxu0 %v3491
  %3540 = vmatprep.subr.mxu0 0.0
  %3541 = vmatpush1.msra.mxu0 %v3493
  %3542 = vmatprep.subr.mxu0 0.0
  %3543 = vmatpush1.msra.mxu0 %v3495
  %3544 = vmatprep.subr.mxu0 0.0
  %3545 = vmatpush1.msra.mxu0 0.0
  %3546 = vmatprep.subr.mxu0 0.0
  %3547 = vmatpush1.msra.mxu0 0.0
  %3548 = vmatprep.subr.mxu0 0.0
  %3549 = vmatpush1.msra.mxu0 0.0
  %3550 = vmatprep.subr.mxu0 0.0
  %3551 = vmatpush1.msra.mxu0 0.0
  %3552 = vmatprep.subr.mxu0 0.0
  %3553 = vmatpush1.msra.mxu0 0.0
  %3554 = vmatprep.subr.mxu0 0.0
  %3555 = vmatpush1.msra.mxu0 0.0
  %3556 = vmatprep.subr.mxu0 0.0
  %3557 = vmatpush1.msra.mxu0 0.0
  %3558 = vmatprep.subr.mxu0 0.0
  %3559 = vmatpush1.msra.mxu0 0.0
  %3560 = vmatprep.subr.mxu0 0.0
  %3561 = vmatpush1.msra.mxu0 0.0
  %3562 = vmatprep.subr.mxu0 0.0
  %3563 = vmatpush1.msra.mxu0 0.0
  %3564 = vmatprep.subr.mxu0 0.0
  %3565 = vmatpush1.msra.mxu0 0.0
  %3566 = vmatprep.subr.mxu0 0.0
  %3567 = vmatpush1.msra.mxu0 0.0
  %3568 = vmatprep.subr.mxu0 0.0
  %3569 = vmatpush1.msra.mxu0 0.0
  %3570 = vmatprep.subr.mxu0 0.0
  %3571 = vmatpush1.msra.mxu0 0.0
  %3572 = vmatprep.subr.mxu0 0.0
  %3573 = vmatpush1.msra.mxu0 0.0
  %3574 = vmatprep.subr.mxu0 0.0
  %3575 = vmatpush1.msra.mxu0 0.0
  %3576 = vmatprep.subr.mxu0 0.0
  %3577 = vmatpush1.msra.mxu0 0.0
  %3578 = vmatprep.subr.mxu0 0.0
  %3579 = vmatpush1.msra.mxu0 0.0
  %3580 = vmatprep.subr.mxu0 0.0
  %3581 = vmatpush1.msra.mxu0 0.0
  %3582 = vmatprep.subr.mxu0 0.0
  %3583 = vmatpush1.msra.mxu0 0.0
  %3584 = vmatprep.subr.mxu0 0.0
  %3585 = vmatpush1.msra.mxu0 0.0
  %3586 = vmatprep.subr.mxu0 0.0
  %3587 = vmatpush1.msra.mxu0 0.0
  %3588 = vmatprep.subr.mxu0 0.0
  %3589 = vmatpush1.msra.mxu0 0.0
  %3590 = vmatprep.subr.mxu0 0.0
  %3591 = vmatpush1.msra.mxu0 0.0
  %3592 = vmatprep.mubr.f32.mxu0 0.0
  %3593 = vmatmul.mubr.f32.gmra.mrb[0].mxu0 %v3505
  %v3594 = vpop.f32.mrb[0].mxu0
  %v3595 = vadd.f32 0.0, %v3594
  %v3596 = vpop.f32.mrb[0].mxu0
  %3597 = vmatprep.mubr.f32.mxu0 0.0
  %3598 = vmatmul.mubr.f32.gmra.mrb[0].mxu0 %v3508
  %v3599 = vpop.f32.mrb[0].mxu0
  %v3600 = vadd.f32 0.0, %v3599
  %v3601 = vpop.f32.mrb[0].mxu0
  %3602 = vmatprep.mubr.f32.mxu0 0.0
  %3603 = vmatmul.mubr.f32.gmra.mrb[0].mxu0 %v3511
  %v3604 = vpop.f32.mrb[0].mxu0
  %v3605 = vadd.f32 0.0, %v3604
  %v3606 = vpop.f32.mrb[0].mxu0
  %3607 = vmatprep.mubr.f32.mxu0 0.0
  %3608 = vmatmul.mubr.f32.gmra.mrb[0].mxu0 %v3514
  %v3609 = vpop.f32.mrb[0].mxu0
  %v3610 = vadd.f32 0.0, %v3609
  %v3611 = vpop.f32.mrb[0].mxu0
  %3612 = vmatprep.mubr.f32.mxu0 0.0
  %3613 = vmatmul.mubr.f32.gmra.mrb[0].mxu0 %v3517
  %v3614 = vpop.f32.mrb[0].mxu0
  %v3615 = vadd.f32 0.0, %v3614
  %v3616 = vpop.f32.mrb[0].mxu0
  %3617 = vmatprep.mubr.f32.mxu0 0.0
  %3618 = vmatmul.mubr.f32.gmra.mrb[0].mxu0 %v3520
  %v3619 = vpop.f32.mrb[0].mxu0
  %v3620 = vadd.f32 0.0, %v3619
  %v3621 = vpop.f32.mrb[0].mxu0
  %3622 = vmatprep.mubr.f32.mxu0 0.0
  %3623 = vmatmul.mubr.f32.gmra.mrb[0].mxu0 %v3523
  %v3624 = vpop.f32.mrb[0].mxu0
  %v3625 = vadd.f32 0.0, %v3624
  %v3626 = vpop.f32.mrb[0].mxu0
  %3627 = vmatprep.mubr.f32.mxu0 0.0
  %3628 = vmatmul.mubr.f32.gmra.mrb[0].mxu0 %v3526
  %v3629 = vpop.f32.mrb[0].mxu0
  %v3630 = vadd.f32 0.0, %v3629
  %v3631 = vpop.f32.mrb[0].mxu0
  %3632 = vdwg.mxu0
  %3633 = vrot.lane.b32.xlu0 %v617, 64
  %v3634 = vpop.permute.xlu0 %3633
  %3635 = vrot.lane.b32.xlu0 %v619, 64
  %v3636 = vpop.permute.xlu0 %3635
  %3637 = vrot.lane.b32.xlu0 %v621, 64
  %v3638 = vpop.permute.xlu0 %3637
  %3639 = vrot.lane.b32.xlu0 %v623, 64
  %v3640 = vpop.permute.xlu0 %3639
  %3641 = vrot.lane.b32.xlu0 %v625, 64
  %v3642 = vpop.permute.xlu0 %3641
  %3643 = vrot.lane.b32.xlu0 %v627, 64
  %v3644 = vpop.permute.xlu0 %3643
  %3645 = vrot.lane.b32.xlu0 %v629, 64
  %v3646 = vpop.permute.xlu0 %3645
  %3647 = vrot.lane.b32.xlu0 %v631, 64
  %v3648 = vpop.permute.xlu0 %3647
  %v3658 = vsel %vm1857, %v2554, 0
  %v3661 = vsel %vm1857, %v2555, 0
  %v3664 = vsel %vm1857, %v2556, 0
  %v3667 = vsel %vm1857, %v2557, 0
  %v3670 = vsel %vm1857, %v2558, 0
  %v3673 = vsel %vm1857, %v2559, 0
  %v3676 = vsel %vm1857, %v2560, 0
  %v3679 = vsel %vm1857, %v2561, 0
  %3681 = vmatprep.subr.mxu0 0.0
  %3682 = vmatpush1.msra.mxu0 %v3634
  %3683 = vmatprep.subr.mxu0 0.0
  %3684 = vmatpush1.msra.mxu0 %v3636
  %3685 = vmatprep.subr.mxu0 0.0
  %3686 = vmatpush1.msra.mxu0 %v3638
  %3687 = vmatprep.subr.mxu0 0.0
  %3688 = vmatpush1.msra.mxu0 %v3640
  %3689 = vmatprep.subr.mxu0 0.0
  %3690 = vmatpush1.msra.mxu0 %v3642
  %3691 = vmatprep.subr.mxu0 0.0
  %3692 = vmatpush1.msra.mxu0 %v3644
  %3693 = vmatprep.subr.mxu0 0.0
  %3694 = vmatpush1.msra.mxu0 %v3646
  %3695 = vmatprep.subr.mxu0 0.0
  %3696 = vmatpush1.msra.mxu0 %v3648
  %3697 = vmatprep.subr.mxu0 0.0
  %3698 = vmatpush1.msra.mxu0 0.0
  %3699 = vmatprep.subr.mxu0 0.0
  %3700 = vmatpush1.msra.mxu0 0.0
  %3701 = vmatprep.subr.mxu0 0.0
  %3702 = vmatpush1.msra.mxu0 0.0
  %3703 = vmatprep.subr.mxu0 0.0
  %3704 = vmatpush1.msra.mxu0 0.0
  %3705 = vmatprep.subr.mxu0 0.0
  %3706 = vmatpush1.msra.mxu0 0.0
  %3707 = vmatprep.subr.mxu0 0.0
  %3708 = vmatpush1.msra.mxu0 0.0
  %3709 = vmatprep.subr.mxu0 0.0
  %3710 = vmatpush1.msra.mxu0 0.0
  %3711 = vmatprep.subr.mxu0 0.0
  %3712 = vmatpush1.msra.mxu0 0.0
  %3713 = vmatprep.subr.mxu0 0.0
  %3714 = vmatpush1.msra.mxu0 0.0
  %3715 = vmatprep.subr.mxu0 0.0
  %3716 = vmatpush1.msra.mxu0 0.0
  %3717 = vmatprep.subr.mxu0 0.0
  %3718 = vmatpush1.msra.mxu0 0.0
  %3719 = vmatprep.subr.mxu0 0.0
  %3720 = vmatpush1.msra.mxu0 0.0
  %3721 = vmatprep.subr.mxu0 0.0
  %3722 = vmatpush1.msra.mxu0 0.0
  %3723 = vmatprep.subr.mxu0 0.0
  %3724 = vmatpush1.msra.mxu0 0.0
  %3725 = vmatprep.subr.mxu0 0.0
  %3726 = vmatpush1.msra.mxu0 0.0
  %3727 = vmatprep.subr.mxu0 0.0
  %3728 = vmatpush1.msra.mxu0 0.0
  %3729 = vmatprep.subr.mxu0 0.0
  %3730 = vmatpush1.msra.mxu0 0.0
  %3731 = vmatprep.subr.mxu0 0.0
  %3732 = vmatpush1.msra.mxu0 0.0
  %3733 = vmatprep.subr.mxu0 0.0
  %3734 = vmatpush1.msra.mxu0 0.0
  %3735 = vmatprep.subr.mxu0 0.0
  %3736 = vmatpush1.msra.mxu0 0.0
  %3737 = vmatprep.subr.mxu0 0.0
  %3738 = vmatpush1.msra.mxu0 0.0
  %3739 = vmatprep.subr.mxu0 0.0
  %3740 = vmatpush1.msra.mxu0 0.0
  %3741 = vmatprep.subr.mxu0 0.0
  %3742 = vmatpush1.msra.mxu0 0.0
  %3743 = vmatprep.subr.mxu0 0.0
  %3744 = vmatpush1.msra.mxu0 0.0
  %3745 = vmatprep.mubr.f32.mxu0 0.0
  %3746 = vmatmul.mubr.f32.gmra.mrb[0].mxu0 %v3658
  %v3747 = vpop.f32.mrb[0].mxu0
  %v3748 = vadd.f32 0.0, %v3747
  %v3749 = vpop.f32.mrb[0].mxu0
  %3750 = vmatprep.mubr.f32.mxu0 0.0
  %3751 = vmatmul.mubr.f32.gmra.mrb[0].mxu0 %v3661
  %v3752 = vpop.f32.mrb[0].mxu0
  %v3753 = vadd.f32 0.0, %v3752
  %v3754 = vpop.f32.mrb[0].mxu0
  %3755 = vmatprep.mubr.f32.mxu0 0.0
  %3756 = vmatmul.mubr.f32.gmra.mrb[0].mxu0 %v3664
  %v3757 = vpop.f32.mrb[0].mxu0
  %v3758 = vadd.f32 0.0, %v3757
  %v3759 = vpop.f32.mrb[0].mxu0
  %3760 = vmatprep.mubr.f32.mxu0 0.0
  %3761 = vmatmul.mubr.f32.gmra.mrb[0].mxu0 %v3667
  %v3762 = vpop.f32.mrb[0].mxu0
  %v3763 = vadd.f32 0.0, %v3762
  %v3764 = vpop.f32.mrb[0].mxu0
  %3765 = vmatprep.mubr.f32.mxu0 0.0
  %3766 = vmatmul.mubr.f32.gmra.mrb[0].mxu0 %v3670
  %v3767 = vpop.f32.mrb[0].mxu0
  %v3768 = vadd.f32 0.0, %v3767
  %v3769 = vpop.f32.mrb[0].mxu0
  %3770 = vmatprep.mubr.f32.mxu0 0.0
  %3771 = vmatmul.mubr.f32.gmra.mrb[0].mxu0 %v3673
  %v3772 = vpop.f32.mrb[0].mxu0
  %v3773 = vadd.f32 0.0, %v3772
  %v3774 = vpop.f32.mrb[0].mxu0
  %3775 = vmatprep.mubr.f32.mxu0 0.0
  %3776 = vmatmul.mubr.f32.gmra.mrb[0].mxu0 %v3676
  %v3777 = vpop.f32.mrb[0].mxu0
  %v3778 = vadd.f32 0.0, %v3777
  %v3779 = vpop.f32.mrb[0].mxu0
  %3780 = vmatprep.mubr.f32.mxu0 0.0
  %3781 = vmatmul.mubr.f32.gmra.mrb[0].mxu0 %v3679
  %v3782 = vpop.f32.mrb[0].mxu0
  %v3783 = vadd.f32 0.0, %v3782
  %v3784 = vpop.f32.mrb[0].mxu0
  %3785 = vdwg.mxu0
  %3802 = vrot.lane.b32.xlu0 %v2983, 8
  %v3803 = vpop.permute.xlu0 %3802
  %3804 = vrot.lane.b32.xlu0 %v2988, 8
  %v3805 = vpop.permute.xlu0 %3804
  %3806 = vrot.lane.b32.xlu0 %v2993, 8
  %v3807 = vpop.permute.xlu0 %3806
  %3808 = vrot.lane.b32.xlu0 %v2998, 8
  %v3809 = vpop.permute.xlu0 %3808
  %3810 = vrot.lane.b32.xlu0 %v3003, 8
  %v3811 = vpop.permute.xlu0 %3810
  %3812 = vrot.lane.b32.xlu0 %v3008, 8
  %v3813 = vpop.permute.xlu0 %3812
  %3814 = vrot.lane.b32.xlu0 %v3013, 8
  %v3815 = vpop.permute.xlu0 %3814
  %3816 = vrot.lane.b32.xlu0 %v3018, 8
  %v3817 = vpop.permute.xlu0 %3816
  %3818 = vrot.lane.b32.xlu0 %v3136, 8
  %v3819 = vpop.permute.xlu0 %3818
  %3820 = vrot.lane.b32.xlu0 %v3141, 8
  %v3821 = vpop.permute.xlu0 %3820
  %3822 = vrot.lane.b32.xlu0 %v3146, 8
  %v3823 = vpop.permute.xlu0 %3822
  %3824 = vrot.lane.b32.xlu0 %v3151, 8
  %v3825 = vpop.permute.xlu0 %3824
  %3826 = vrot.lane.b32.xlu0 %v3156, 8
  %v3827 = vpop.permute.xlu0 %3826
  %3828 = vrot.lane.b32.xlu0 %v3161, 8
  %v3829 = vpop.permute.xlu0 %3828
  %3830 = vrot.lane.b32.xlu0 %v3166, 8
  %v3831 = vpop.permute.xlu0 %3830
  %3832 = vrot.lane.b32.xlu0 %v3171, 8
  %v3833 = vpop.permute.xlu0 %3832
  %3866 = vrot.lane.b32.xlu0 %v3289, 16
  %v3867 = vpop.permute.xlu0 %3866
  %3868 = vrot.lane.b32.xlu0 %v3294, 16
  %v3869 = vpop.permute.xlu0 %3868
  %3870 = vrot.lane.b32.xlu0 %v3299, 16
  %v3871 = vpop.permute.xlu0 %3870
  %3872 = vrot.lane.b32.xlu0 %v3304, 16
  %v3873 = vpop.permute.xlu0 %3872
  %3874 = vrot.lane.b32.xlu0 %v3309, 16
  %v3875 = vpop.permute.xlu0 %3874
  %3876 = vrot.lane.b32.xlu0 %v3314, 16
  %v3877 = vpop.permute.xlu0 %3876
  %3878 = vrot.lane.b32.xlu0 %v3319, 16
  %v3879 = vpop.permute.xlu0 %3878
  %3880 = vrot.lane.b32.xlu0 %v3324, 16
  %v3881 = vpop.permute.xlu0 %3880
  %3882 = vrot.lane.b32.xlu0 %v3442, 16
  %v3883 = vpop.permute.xlu0 %3882
  %3884 = vrot.lane.b32.xlu0 %v3447, 16
  %v3885 = vpop.permute.xlu0 %3884
  %3886 = vrot.lane.b32.xlu0 %v3452, 16
  %v3887 = vpop.permute.xlu0 %3886
  %3888 = vrot.lane.b32.xlu0 %v3457, 16
  %v3889 = vpop.permute.xlu0 %3888
  %3890 = vrot.lane.b32.xlu0 %v3462, 16
  %v3891 = vpop.permute.xlu0 %3890
  %3892 = vrot.lane.b32.xlu0 %v3467, 16
  %v3893 = vpop.permute.xlu0 %3892
  %3894 = vrot.lane.b32.xlu0 %v3472, 16
  %v3895 = vpop.permute.xlu0 %3894
  %3896 = vrot.lane.b32.xlu0 %v3477, 16
  %v3897 = vpop.permute.xlu0 %3896
  %3930 = vrot.lane.b32.xlu0 %v3595, 24
  %v3931 = vpop.permute.xlu0 %3930
  %3932 = vrot.lane.b32.xlu0 %v3600, 24
  %v3933 = vpop.permute.xlu0 %3932
  %3934 = vrot.lane.b32.xlu0 %v3605, 24
  %v3935 = vpop.permute.xlu0 %3934
  %3936 = vrot.lane.b32.xlu0 %v3610, 24
  %v3937 = vpop.permute.xlu0 %3936
  %3938 = vrot.lane.b32.xlu0 %v3615, 24
  %v3939 = vpop.permute.xlu0 %3938
  %3940 = vrot.lane.b32.xlu0 %v3620, 24
  %v3941 = vpop.permute.xlu0 %3940
  %3942 = vrot.lane.b32.xlu0 %v3625, 24
  %v3943 = vpop.permute.xlu0 %3942
  %3944 = vrot.lane.b32.xlu0 %v3630, 24
  %v3945 = vpop.permute.xlu0 %3944
  %3946 = vrot.lane.b32.xlu0 %v3748, 24
  %v3947 = vpop.permute.xlu0 %3946
  %3948 = vrot.lane.b32.xlu0 %v3753, 24
  %v3949 = vpop.permute.xlu0 %3948
  %3950 = vrot.lane.b32.xlu0 %v3758, 24
  %v3951 = vpop.permute.xlu0 %3950
  %3952 = vrot.lane.b32.xlu0 %v3763, 24
  %v3953 = vpop.permute.xlu0 %3952
  %3954 = vrot.lane.b32.xlu0 %v3768, 24
  %v3955 = vpop.permute.xlu0 %3954
  %3956 = vrot.lane.b32.xlu0 %v3773, 24
  %v3957 = vpop.permute.xlu0 %3956
  %3958 = vrot.lane.b32.xlu0 %v3778, 24
  %v3959 = vpop.permute.xlu0 %3958
  %3960 = vrot.lane.b32.xlu0 %v3783, 24
  %v3961 = vpop.permute.xlu0 %3960
  %v3978 = vsel %vm648, %v2677, %v3803
  %v3979 = vsel %vm648, %v2682, %v3805
  %v3980 = vsel %vm648, %v2687, %v3807
  %v3981 = vsel %vm648, %v2692, %v3809
  %v3982 = vsel %vm648, %v2697, %v3811
  %v3983 = vsel %vm648, %v2702, %v3813
  %v3984 = vsel %vm648, %v2707, %v3815
  %v3985 = vsel %vm648, %v2712, %v3817
  %v3986 = vsel %vm648, %v2830, %v3819
  %v3987 = vsel %vm648, %v2835, %v3821
  %v3988 = vsel %vm648, %v2840, %v3823
  %v3989 = vsel %vm648, %v2845, %v3825
  %v3990 = vsel %vm648, %v2850, %v3827
  %v3991 = vsel %vm648, %v2855, %v3829
  %v3992 = vsel %vm648, %v2860, %v3831
  %v3993 = vsel %vm648, %v2865, %v3833
  %vm3994 = vcmask 130048
  %v3995 = vsel %vm3994, %v3978, %v3867
  %v3996 = vsel %vm3994, %v3979, %v3869
  %v3997 = vsel %vm3994, %v3980, %v3871
  %v3998 = vsel %vm3994, %v3981, %v3873
  %v3999 = vsel %vm3994, %v3982, %v3875
  %v4000 = vsel %vm3994, %v3983, %v3877
  %v4001 = vsel %vm3994, %v3984, %v3879
  %v4002 = vsel %vm3994, %v3985, %v3881
  %v4003 = vsel %vm3994, %v3986, %v3883
  %v4004 = vsel %vm3994, %v3987, %v3885
  %v4005 = vsel %vm3994, %v3988, %v3887
  %v4006 = vsel %vm3994, %v3989, %v3889
  %v4007 = vsel %vm3994, %v3990, %v3891
  %v4008 = vsel %vm3994, %v3991, %v3893
  %v4009 = vsel %vm3994, %v3992, %v3895
  %v4010 = vsel %vm3994, %v3993, %v3897
  %vm4011 = vcmask 195584
  %v4012 = vsel %vm4011, %v3995, %v3931
  %v4013 = vsel %vm4011, %v3996, %v3933
  %v4014 = vsel %vm4011, %v3997, %v3935
  %v4015 = vsel %vm4011, %v3998, %v3937
  %v4016 = vsel %vm4011, %v3999, %v3939
  %v4017 = vsel %vm4011, %v4000, %v3941
  %v4018 = vsel %vm4011, %v4001, %v3943
  %v4019 = vsel %vm4011, %v4002, %v3945
  %v4020 = vsel %vm4011, %v4003, %v3947
  %v4021 = vsel %vm4011, %v4004, %v3949
  %v4022 = vsel %vm4011, %v4005, %v3951
  %v4023 = vsel %vm4011, %v4006, %v3953
  %v4024 = vsel %vm4011, %v4007, %v3955
  %v4025 = vsel %vm4011, %v4008, %v3957
  %v4026 = vsel %vm4011, %v4009, %v3959
  %v4027 = vsel %vm4011, %v4010, %v3961
  %v4028 = vld [vmem:[%s5] sm:$0xff]
  %v4029 = vld [vmem:[%s5 + $0x8] sm:$0xff]
  %v4030 = vld [vmem:[%s5 + $0x10] sm:$0xff]
  %v4031 = vld [vmem:[%s5 + $0x18] sm:$0xff]
  %v4032 = vld [vmem:[%s6] sm:$0x1]
  %v4034 = vlaneseq
  %v4035 = vshrl.u32 %v4034, 7
  %v4036 = vsub.s32 0, %v4035
  %v4037 = vrot.slane %v4032, %v4036
  %v4040 = vsel %vm62, %v4012, 0
  %v4043 = vsel %vm62, %v4013, 0
  %v4046 = vsel %vm62, %v4014, 0
  %v4049 = vsel %vm62, %v4015, 0
  %v4052 = vsel %vm62, %v4016, 0
  %v4055 = vsel %vm62, %v4017, 0
  %v4058 = vsel %vm62, %v4018, 0
  %v4061 = vsel %vm62, %v4019, 0
  %v4064 = vsel %vm62, %v4020, 0
  %v4067 = vsel %vm62, %v4021, 0
  %v4070 = vsel %vm62, %v4022, 0
  %v4073 = vsel %vm62, %v4023, 0
  %v4076 = vsel %vm62, %v4024, 0
  %v4079 = vsel %vm62, %v4025, 0
  %v4082 = vsel %vm62, %v4026, 0
  %v4085 = vsel %vm62, %v4027, 0
  %4087 = vmatprep.subr.mxu0 0.0
  %4088 = vmatpush1.msra.mxu0 %v4028
  %4089 = vmatprep.subr.mxu0 0.0
  %4090 = vmatpush1.msra.mxu0 %v4029
  %4091 = vmatprep.subr.mxu0 0.0
  %4092 = vmatpush1.msra.mxu0 %v4030
  %4093 = vmatprep.subr.mxu0 0.0
  %4094 = vmatpush1.msra.mxu0 %v4031
  %4095 = vmatprep.subr.mxu0 0.0
  %4096 = vmatpush1.msra.mxu0 0.0
  %4097 = vmatprep.subr.mxu0 0.0
  %4098 = vmatpush1.msra.mxu0 0.0
  %4099 = vmatprep.subr.mxu0 0.0
  %4100 = vmatpush1.msra.mxu0 0.0
  %4101 = vmatprep.subr.mxu0 0.0
  %4102 = vmatpush1.msra.mxu0 0.0
  %4103 = vmatprep.subr.mxu0 0.0
  %4104 = vmatpush1.msra.mxu0 0.0
  %4105 = vmatprep.subr.mxu0 0.0
  %4106 = vmatpush1.msra.mxu0 0.0
  %4107 = vmatprep.subr.mxu0 0.0
  %4108 = vmatpush1.msra.mxu0 0.0
  %4109 = vmatprep.subr.mxu0 0.0
  %4110 = vmatpush1.msra.mxu0 0.0
  %4111 = vmatprep.subr.mxu0 0.0
  %4112 = vmatpush1.msra.mxu0 0.0
  %4113 = vmatprep.subr.mxu0 0.0
  %4114 = vmatpush1.msra.mxu0 0.0
  %4115 = vmatprep.subr.mxu0 0.0
  %4116 = vmatpush1.msra.mxu0 0.0
  %4117 = vmatprep.subr.mxu0 0.0
  %4118 = vmatpush1.msra.mxu0 0.0
  %4119 = vmatprep.subr.mxu0 0.0
  %4120 = vmatpush1.msra.mxu0 0.0
  %4121 = vmatprep.subr.mxu0 0.0
  %4122 = vmatpush1.msra.mxu0 0.0
  %4123 = vmatprep.subr.mxu0 0.0
  %4124 = vmatpush1.msra.mxu0 0.0
  %4125 = vmatprep.subr.mxu0 0.0
  %4126 = vmatpush1.msra.mxu0 0.0
  %4127 = vmatprep.subr.mxu0 0.0
  %4128 = vmatpush1.msra.mxu0 0.0
  %4129 = vmatprep.subr.mxu0 0.0
  %4130 = vmatpush1.msra.mxu0 0.0
  %4131 = vmatprep.subr.mxu0 0.0
  %4132 = vmatpush1.msra.mxu0 0.0
  %4133 = vmatprep.subr.mxu0 0.0
  %4134 = vmatpush1.msra.mxu0 0.0
  %4135 = vmatprep.subr.mxu0 0.0
  %4136 = vmatpush1.msra.mxu0 0.0
  %4137 = vmatprep.subr.mxu0 0.0
  %4138 = vmatpush1.msra.mxu0 0.0
  %4139 = vmatprep.subr.mxu0 0.0
  %4140 = vmatpush1.msra.mxu0 0.0
  %4141 = vmatprep.subr.mxu0 0.0
  %4142 = vmatpush1.msra.mxu0 0.0
  %4143 = vmatprep.subr.mxu0 0.0
  %4144 = vmatpush1.msra.mxu0 0.0
  %4145 = vmatprep.subr.mxu0 0.0
  %4146 = vmatpush1.msra.mxu0 0.0
  %4147 = vmatprep.subr.mxu0 0.0
  %4148 = vmatpush1.msra.mxu0 0.0
  %4149 = vmatprep.subr.mxu0 0.0
  %4150 = vmatpush1.msra.mxu0 0.0
  %4151 = vmatprep.mubr.f32.mxu0 0.0
  %4152 = vmatmul.mubr.f32.gmra.mrb[0].mxu0 %v4040
  %v4153 = vpop.f32.mrb[0].mxu0
  %v4154 = vadd.f32 %v4037, %v4153
  %v4155 = vpop.f32.mrb[0].mxu0
  %4156 = vmatprep.mubr.f32.mxu0 0.0
  %4157 = vmatmul.mubr.f32.gmra.mrb[0].mxu0 %v4043
  %v4158 = vpop.f32.mrb[0].mxu0
  %v4159 = vadd.f32 %v4037, %v4158
  %v4160 = vpop.f32.mrb[0].mxu0
  %4161 = vmatprep.mubr.f32.mxu0 0.0
  %4162 = vmatmul.mubr.f32.gmra.mrb[0].mxu0 %v4046
  %v4163 = vpop.f32.mrb[0].mxu0
  %v4164 = vadd.f32 %v4037, %v4163
  %v4165 = vpop.f32.mrb[0].mxu0
  %4166 = vmatprep.mubr.f32.mxu0 0.0
  %4167 = vmatmul.mubr.f32.gmra.mrb[0].mxu0 %v4049
  %v4168 = vpop.f32.mrb[0].mxu0
  %v4169 = vadd.f32 %v4037, %v4168
  %v4170 = vpop.f32.mrb[0].mxu0
  %4171 = vmatprep.mubr.f32.mxu0 0.0
  %4172 = vmatmul.mubr.f32.gmra.mrb[0].mxu0 %v4052
  %v4173 = vpop.f32.mrb[0].mxu0
  %v4174 = vadd.f32 %v4037, %v4173
  %v4175 = vpop.f32.mrb[0].mxu0
  %4176 = vmatprep.mubr.f32.mxu0 0.0
  %4177 = vmatmul.mubr.f32.gmra.mrb[0].mxu0 %v4055
  %v4178 = vpop.f32.mrb[0].mxu0
  %v4179 = vadd.f32 %v4037, %v4178
  %v4180 = vpop.f32.mrb[0].mxu0
  %4181 = vmatprep.mubr.f32.mxu0 0.0
  %4182 = vmatmul.mubr.f32.gmra.mrb[0].mxu0 %v4058
  %v4183 = vpop.f32.mrb[0].mxu0
  %v4184 = vadd.f32 %v4037, %v4183
  %v4185 = vpop.f32.mrb[0].mxu0
  %4186 = vmatprep.mubr.f32.mxu0 0.0
  %4187 = vmatmul.mubr.f32.gmra.mrb[0].mxu0 %v4061
  %v4188 = vpop.f32.mrb[0].mxu0
  %v4189 = vadd.f32 %v4037, %v4188
  %v4190 = vpop.f32.mrb[0].mxu0
  %4191 = vmatprep.mubr.f32.mxu0 0.0
  %4192 = vmatmul.mubr.f32.gmra.mrb[0].mxu0 %v4064
  %v4193 = vpop.f32.mrb[0].mxu0
  %v4194 = vadd.f32 %v4037, %v4193
  %v4195 = vpop.f32.mrb[0].mxu0
  %4196 = vmatprep.mubr.f32.mxu0 0.0
  %4197 = vmatmul.mubr.f32.gmra.mrb[0].mxu0 %v4067
  %v4198 = vpop.f32.mrb[0].mxu0
  %v4199 = vadd.f32 %v4037, %v4198
  %v4200 = vpop.f32.mrb[0].mxu0
  %4201 = vmatprep.mubr.f32.mxu0 0.0
  %4202 = vmatmul.mubr.f32.gmra.mrb[0].mxu0 %v4070
  %v4203 = vpop.f32.mrb[0].mxu0
  %v4204 = vadd.f32 %v4037, %v4203
  %v4205 = vpop.f32.mrb[0].mxu0
  %4206 = vmatprep.mubr.f32.mxu0 0.0
  %4207 = vmatmul.mubr.f32.gmra.mrb[0].mxu0 %v4073
  %v4208 = vpop.f32.mrb[0].mxu0
  %v4209 = vadd.f32 %v4037, %v4208
  %v4210 = vpop.f32.mrb[0].mxu0
  %4211 = vmatprep.mubr.f32.mxu0 0.0
  %4212 = vmatmul.mubr.f32.gmra.mrb[0].mxu0 %v4076
  %v4213 = vpop.f32.mrb[0].mxu0
  %v4214 = vadd.f32 %v4037, %v4213
  %v4215 = vpop.f32.mrb[0].mxu0
  %4216 = vmatprep.mubr.f32.mxu0 0.0
  %4217 = vmatmul.mubr.f32.gmra.mrb[0].mxu0 %v4079
  %v4218 = vpop.f32.mrb[0].mxu0
  %v4219 = vadd.f32 %v4037, %v4218
  %v4220 = vpop.f32.mrb[0].mxu0
  %4221 = vmatprep.mubr.f32.mxu0 0.0
  %4222 = vmatmul.mubr.f32.gmra.mrb[0].mxu0 %v4082
  %v4223 = vpop.f32.mrb[0].mxu0
  %v4224 = vadd.f32 %v4037, %v4223
  %v4225 = vpop.f32.mrb[0].mxu0
  %4226 = vmatprep.mubr.f32.mxu0 0.0
  %4227 = vmatmul.mubr.f32.gmra.mrb[0].mxu0 %v4085
  %v4228 = vpop.f32.mrb[0].mxu0
  %v4229 = vadd.f32 %v4037, %v4228
  %v4230 = vpop.f32.mrb[0].mxu0
  %4231 = vdwg.mxu0
  %v4232 = vadd.f32 %v4154, %v44
  %v4233 = vadd.f32 %v4159, %v45
  %v4234 = vadd.f32 %v4164, %v46
  %v4235 = vadd.f32 %v4169, %v47
  %v4236 = vadd.f32 %v4174, %v48
  %v4237 = vadd.f32 %v4179, %v49
  %v4238 = vadd.f32 %v4184, %v50
  %v4239 = vadd.f32 %v4189, %v51
  %v4240 = vadd.f32 %v4194, %v52
  %v4241 = vadd.f32 %v4199, %v53
  %v4242 = vadd.f32 %v4204, %v54
  %v4243 = vadd.f32 %v4209, %v55
  %v4244 = vadd.f32 %v4214, %v56
  %v4245 = vadd.f32 %v4219, %v57
  %v4246 = vadd.f32 %v4224, %v58
  %v4247 = vadd.f32 %v4229, %v59
  %v4248 = vld [vmem:[%s7] sm:$0x1]
  %v4249 = vld [vmem:[%s8] sm:$0x1]
  %v4250 = vsel %vm62, %v4232, 0.0
  %4251 = vadd.xlane.f32.xlu0 %v4250
  %v4252 = vpop.xlane.xlu0 %4251
  %v4253 = vsel %vm62, %v4233, 0.0
  %4254 = vadd.xlane.f32.xlu0 %v4253
  %v4255 = vpop.xlane.xlu0 %4254
  %v4256 = vsel %vm62, %v4234, 0.0
  %4257 = vadd.xlane.f32.xlu0 %v4256
  %v4258 = vpop.xlane.xlu0 %4257
  %v4259 = vsel %vm62, %v4235, 0.0
  %4260 = vadd.xlane.f32.xlu0 %v4259
  %v4261 = vpop.xlane.xlu0 %4260
  %v4262 = vsel %vm62, %v4236, 0.0
  %4263 = vadd.xlane.f32.xlu0 %v4262
  %v4264 = vpop.xlane.xlu0 %4263
  %v4265 = vsel %vm62, %v4237, 0.0
  %4266 = vadd.xlane.f32.xlu0 %v4265
  %v4267 = vpop.xlane.xlu0 %4266
  %v4268 = vsel %vm62, %v4238, 0.0
  %4269 = vadd.xlane.f32.xlu0 %v4268
  %v4270 = vpop.xlane.xlu0 %4269
  %v4271 = vsel %vm62, %v4239, 0.0
  %4272 = vadd.xlane.f32.xlu0 %v4271
  %v4273 = vpop.xlane.xlu0 %4272
  %v4274 = vsel %vm62, %v4240, 0.0
  %4275 = vadd.xlane.f32.xlu0 %v4274
  %v4276 = vpop.xlane.xlu0 %4275
  %v4277 = vsel %vm62, %v4241, 0.0
  %4278 = vadd.xlane.f32.xlu0 %v4277
  %v4279 = vpop.xlane.xlu0 %4278
  %v4280 = vsel %vm62, %v4242, 0.0
  %4281 = vadd.xlane.f32.xlu0 %v4280
  %v4282 = vpop.xlane.xlu0 %4281
  %v4283 = vsel %vm62, %v4243, 0.0
  %4284 = vadd.xlane.f32.xlu0 %v4283
  %v4285 = vpop.xlane.xlu0 %4284
  %v4286 = vsel %vm62, %v4244, 0.0
  %4287 = vadd.xlane.f32.xlu0 %v4286
  %v4288 = vpop.xlane.xlu0 %4287
  %v4289 = vsel %vm62, %v4245, 0.0
  %4290 = vadd.xlane.f32.xlu0 %v4289
  %v4291 = vpop.xlane.xlu0 %4290
  %v4292 = vsel %vm62, %v4246, 0.0
  %4293 = vadd.xlane.f32.xlu0 %v4292
  %v4294 = vpop.xlane.xlu0 %4293
  %v4295 = vsel %vm62, %v4247, 0.0
  %4296 = vadd.xlane.f32.xlu0 %v4295
  %v4297 = vpop.xlane.xlu0 %4296
  %v4298 = vmul.f32 %v4252, %v111
  %v4299 = vmul.f32 %v4255, %v111
  %v4300 = vmul.f32 %v4258, %v111
  %v4301 = vmul.f32 %v4261, %v111
  %v4302 = vmul.f32 %v4264, %v111
  %v4303 = vmul.f32 %v4267, %v111
  %v4304 = vmul.f32 %v4270, %v111
  %v4305 = vmul.f32 %v4273, %v111
  %v4306 = vmul.f32 %v4276, %v111
  %v4307 = vmul.f32 %v4279, %v111
  %v4308 = vmul.f32 %v4282, %v111
  %v4309 = vmul.f32 %v4285, %v111
  %v4310 = vmul.f32 %v4288, %v111
  %v4311 = vmul.f32 %v4291, %v111
  %v4312 = vmul.f32 %v4294, %v111
  %v4313 = vmul.f32 %v4297, %v111
  %v4314 = vsub.f32 %v4232, %v4298
  %v4315 = vsub.f32 %v4233, %v4299
  %v4316 = vsub.f32 %v4234, %v4300
  %v4317 = vsub.f32 %v4235, %v4301
  %v4318 = vsub.f32 %v4236, %v4302
  %v4319 = vsub.f32 %v4237, %v4303
  %v4320 = vsub.f32 %v4238, %v4304
  %v4321 = vsub.f32 %v4239, %v4305
  %v4322 = vsub.f32 %v4240, %v4306
  %v4323 = vsub.f32 %v4241, %v4307
  %v4324 = vsub.f32 %v4242, %v4308
  %v4325 = vsub.f32 %v4243, %v4309
  %v4326 = vsub.f32 %v4244, %v4310
  %v4327 = vsub.f32 %v4245, %v4311
  %v4328 = vsub.f32 %v4246, %v4312
  %v4329 = vsub.f32 %v4247, %v4313
  %v4330 = vmul.f32 %v4314, %v4314
  %v4331 = vmul.f32 %v4315, %v4315
  %v4332 = vmul.f32 %v4316, %v4316
  %v4333 = vmul.f32 %v4317, %v4317
  %v4334 = vmul.f32 %v4318, %v4318
  %v4335 = vmul.f32 %v4319, %v4319
  %v4336 = vmul.f32 %v4320, %v4320
  %v4337 = vmul.f32 %v4321, %v4321
  %v4338 = vmul.f32 %v4322, %v4322
  %v4339 = vmul.f32 %v4323, %v4323
  %v4340 = vmul.f32 %v4324, %v4324
  %v4341 = vmul.f32 %v4325, %v4325
  %v4342 = vmul.f32 %v4326, %v4326
  %v4343 = vmul.f32 %v4327, %v4327
  %v4344 = vmul.f32 %v4328, %v4328
  %v4345 = vmul.f32 %v4329, %v4329
  %v4346 = vsel %vm62, %v4330, 0.0
  %4347 = vadd.xlane.f32.xlu0 %v4346
  %v4348 = vpop.xlane.xlu0 %4347
  %v4349 = vsel %vm62, %v4331, 0.0
  %4350 = vadd.xlane.f32.xlu0 %v4349
  %v4351 = vpop.xlane.xlu0 %4350
  %v4352 = vsel %vm62, %v4332, 0.0
  %4353 = vadd.xlane.f32.xlu0 %v4352
  %v4354 = vpop.xlane.xlu0 %4353
  %v4355 = vsel %vm62, %v4333, 0.0
  %4356 = vadd.xlane.f32.xlu0 %v4355
  %v4357 = vpop.xlane.xlu0 %4356
  %v4358 = vsel %vm62, %v4334, 0.0
  %4359 = vadd.xlane.f32.xlu0 %v4358
  %v4360 = vpop.xlane.xlu0 %4359
  %v4361 = vsel %vm62, %v4335, 0.0
  %4362 = vadd.xlane.f32.xlu0 %v4361
  %v4363 = vpop.xlane.xlu0 %4362
  %v4364 = vsel %vm62, %v4336, 0.0
  %4365 = vadd.xlane.f32.xlu0 %v4364
  %v4366 = vpop.xlane.xlu0 %4365
  %v4367 = vsel %vm62, %v4337, 0.0
  %4368 = vadd.xlane.f32.xlu0 %v4367
  %v4369 = vpop.xlane.xlu0 %4368
  %v4370 = vsel %vm62, %v4338, 0.0
  %4371 = vadd.xlane.f32.xlu0 %v4370
  %v4372 = vpop.xlane.xlu0 %4371
  %v4373 = vsel %vm62, %v4339, 0.0
  %4374 = vadd.xlane.f32.xlu0 %v4373
  %v4375 = vpop.xlane.xlu0 %4374
  %v4376 = vsel %vm62, %v4340, 0.0
  %4377 = vadd.xlane.f32.xlu0 %v4376
  %v4378 = vpop.xlane.xlu0 %4377
  %v4379 = vsel %vm62, %v4341, 0.0
  %4380 = vadd.xlane.f32.xlu0 %v4379
  %v4381 = vpop.xlane.xlu0 %4380
  %v4382 = vsel %vm62, %v4342, 0.0
  %4383 = vadd.xlane.f32.xlu0 %v4382
  %v4384 = vpop.xlane.xlu0 %4383
  %v4385 = vsel %vm62, %v4343, 0.0
  %4386 = vadd.xlane.f32.xlu0 %v4385
  %v4387 = vpop.xlane.xlu0 %4386
  %v4388 = vsel %vm62, %v4344, 0.0
  %4389 = vadd.xlane.f32.xlu0 %v4388
  %v4390 = vpop.xlane.xlu0 %4389
  %v4391 = vsel %vm62, %v4345, 0.0
  %4392 = vadd.xlane.f32.xlu0 %v4391
  %v4393 = vpop.xlane.xlu0 %4392
  %v4394 = vmul.f32 %v4348, %v111
  %v4395 = vmul.f32 %v4351, %v111
  %v4396 = vmul.f32 %v4354, %v111
  %v4397 = vmul.f32 %v4357, %v111
  %v4398 = vmul.f32 %v4360, %v111
  %v4399 = vmul.f32 %v4363, %v111
  %v4400 = vmul.f32 %v4366, %v111
  %v4401 = vmul.f32 %v4369, %v111
  %v4402 = vmul.f32 %v4372, %v111
  %v4403 = vmul.f32 %v4375, %v111
  %v4404 = vmul.f32 %v4378, %v111
  %v4405 = vmul.f32 %v4381, %v111
  %v4406 = vmul.f32 %v4384, %v111
  %v4407 = vmul.f32 %v4387, %v111
  %v4408 = vmul.f32 %v4390, %v111
  %v4409 = vmul.f32 %v4393, %v111
  %v4410 = vadd.f32 %v4394, 1e-05
  %v4411 = vadd.f32 %v4395, 1e-05
  %v4412 = vadd.f32 %v4396, 1e-05
  %v4413 = vadd.f32 %v4397, 1e-05
  %v4414 = vadd.f32 %v4398, 1e-05
  %v4415 = vadd.f32 %v4399, 1e-05
  %v4416 = vadd.f32 %v4400, 1e-05
  %v4417 = vadd.f32 %v4401, 1e-05
  %v4418 = vadd.f32 %v4402, 1e-05
  %v4419 = vadd.f32 %v4403, 1e-05
  %v4420 = vadd.f32 %v4404, 1e-05
  %v4421 = vadd.f32 %v4405, 1e-05
  %v4422 = vadd.f32 %v4406, 1e-05
  %v4423 = vadd.f32 %v4407, 1e-05
  %v4424 = vadd.f32 %v4408, 1e-05
  %v4425 = vadd.f32 %v4409, 1e-05
  %v4426 = vrsqrt.pop %v4410
  %v4427 = vrsqrt.pop %v4411
  %v4428 = vrsqrt.pop %v4412
  %v4429 = vrsqrt.pop %v4413
  %v4430 = vrsqrt.pop %v4414
  %v4431 = vrsqrt.pop %v4415
  %v4432 = vrsqrt.pop %v4416
  %v4433 = vrsqrt.pop %v4417
  %v4434 = vrsqrt.pop %v4418
  %v4435 = vrsqrt.pop %v4419
  %v4436 = vrsqrt.pop %v4420
  %v4437 = vrsqrt.pop %v4421
  %v4438 = vrsqrt.pop %v4422
  %v4439 = vrsqrt.pop %v4423
  %v4440 = vrsqrt.pop %v4424
  %v4441 = vrsqrt.pop %v4425
  %v4442 = vmul.f32 %v4314, %v4426
  %v4443 = vmul.f32 %v4315, %v4427
  %v4444 = vmul.f32 %v4316, %v4428
  %v4445 = vmul.f32 %v4317, %v4429
  %v4446 = vmul.f32 %v4318, %v4430
  %v4447 = vmul.f32 %v4319, %v4431
  %v4448 = vmul.f32 %v4320, %v4432
  %v4449 = vmul.f32 %v4321, %v4433
  %v4450 = vmul.f32 %v4322, %v4434
  %v4451 = vmul.f32 %v4323, %v4435
  %v4452 = vmul.f32 %v4324, %v4436
  %v4453 = vmul.f32 %v4325, %v4437
  %v4454 = vmul.f32 %v4326, %v4438
  %v4455 = vmul.f32 %v4327, %v4439
  %v4456 = vmul.f32 %v4328, %v4440
  %v4457 = vmul.f32 %v4329, %v4441
  %v4459 = vlaneseq
  %v4460 = vshrl.u32 %v4459, 7
  %v4461 = vsub.s32 0, %v4460
  %v4462 = vrot.slane %v4248, %v4461
  %v4464 = vmul.f32 %v4442, %v4462
  %v4465 = vmul.f32 %v4443, %v4462
  %v4466 = vmul.f32 %v4444, %v4462
  %v4467 = vmul.f32 %v4445, %v4462
  %v4468 = vmul.f32 %v4446, %v4462
  %v4469 = vmul.f32 %v4447, %v4462
  %v4470 = vmul.f32 %v4448, %v4462
  %v4471 = vmul.f32 %v4449, %v4462
  %v4472 = vmul.f32 %v4450, %v4462
  %v4473 = vmul.f32 %v4451, %v4462
  %v4474 = vmul.f32 %v4452, %v4462
  %v4475 = vmul.f32 %v4453, %v4462
  %v4476 = vmul.f32 %v4454, %v4462
  %v4477 = vmul.f32 %v4455, %v4462
  %v4478 = vmul.f32 %v4456, %v4462
  %v4479 = vmul.f32 %v4457, %v4462
  %v4481 = vlaneseq
  %v4482 = vshrl.u32 %v4481, 7
  %v4483 = vsub.s32 0, %v4482
  %v4484 = vrot.slane %v4249, %v4483
  %v4486 = vadd.f32 %v4464, %v4484
  %v4487 = vadd.f32 %v4465, %v4484
  %v4488 = vadd.f32 %v4466, %v4484
  %v4489 = vadd.f32 %v4467, %v4484
  %v4490 = vadd.f32 %v4468, %v4484
  %v4491 = vadd.f32 %v4469, %v4484
  %v4492 = vadd.f32 %v4470, %v4484
  %v4493 = vadd.f32 %v4471, %v4484
  %v4494 = vadd.f32 %v4472, %v4484
  %v4495 = vadd.f32 %v4473, %v4484
  %v4496 = vadd.f32 %v4474, %v4484
  %v4497 = vadd.f32 %v4475, %v4484
  %v4498 = vadd.f32 %v4476, %v4484
  %v4499 = vadd.f32 %v4477, %v4484
  %v4500 = vadd.f32 %v4478, %v4484
  %v4501 = vadd.f32 %v4479, %v4484
  %v4502 = vld [vmem:[%s9] sm:$0xff]
  %v4503 = vld [vmem:[%s9 + $0x8] sm:$0xff]
  %v4504 = vld [vmem:[%s9 + $0x10] sm:$0xff]
  %v4505 = vld [vmem:[%s9 + $0x18] sm:$0xff]
  %v4506 = vld [vmem:[%s10] sm:$0x1]
  %v4508 = vlaneseq
  %v4509 = vshrl.u32 %v4508, 7
  %v4510 = vsub.s32 0, %v4509
  %v4511 = vrot.slane %v4506, %v4510
  %v4514 = vsel %vm62, %v4486, 0
  %v4517 = vsel %vm62, %v4487, 0
  %v4520 = vsel %vm62, %v4488, 0
  %v4523 = vsel %vm62, %v4489, 0
  %v4526 = vsel %vm62, %v4490, 0
  %v4529 = vsel %vm62, %v4491, 0
  %v4532 = vsel %vm62, %v4492, 0
  %v4535 = vsel %vm62, %v4493, 0
  %v4538 = vsel %vm62, %v4494, 0
  %v4541 = vsel %vm62, %v4495, 0
  %v4544 = vsel %vm62, %v4496, 0
  %v4547 = vsel %vm62, %v4497, 0
  %v4550 = vsel %vm62, %v4498, 0
  %v4553 = vsel %vm62, %v4499, 0
  %v4556 = vsel %vm62, %v4500, 0
  %v4559 = vsel %vm62, %v4501, 0
  %4561 = vmatprep.subr.mxu0 0.0
  %4562 = vmatpush1.msra.mxu0 %v4502
  %4563 = vmatprep.subr.mxu0 0.0
  %4564 = vmatpush1.msra.mxu0 %v4503
  %4565 = vmatprep.subr.mxu0 0.0
  %4566 = vmatpush1.msra.mxu0 %v4504
  %4567 = vmatprep.subr.mxu0 0.0
  %4568 = vmatpush1.msra.mxu0 %v4505
  %4569 = vmatprep.subr.mxu0 0.0
  %4570 = vmatpush1.msra.mxu0 0.0
  %4571 = vmatprep.subr.mxu0 0.0
  %4572 = vmatpush1.msra.mxu0 0.0
  %4573 = vmatprep.subr.mxu0 0.0
  %4574 = vmatpush1.msra.mxu0 0.0
  %4575 = vmatprep.subr.mxu0 0.0
  %4576 = vmatpush1.msra.mxu0 0.0
  %4577 = vmatprep.subr.mxu0 0.0
  %4578 = vmatpush1.msra.mxu0 0.0
  %4579 = vmatprep.subr.mxu0 0.0
  %4580 = vmatpush1.msra.mxu0 0.0
  %4581 = vmatprep.subr.mxu0 0.0
  %4582 = vmatpush1.msra.mxu0 0.0
  %4583 = vmatprep.subr.mxu0 0.0
  %4584 = vmatpush1.msra.mxu0 0.0
  %4585 = vmatprep.subr.mxu0 0.0
  %4586 = vmatpush1.msra.mxu0 0.0
  %4587 = vmatprep.subr.mxu0 0.0
  %4588 = vmatpush1.msra.mxu0 0.0
  %4589 = vmatprep.subr.mxu0 0.0
  %4590 = vmatpush1.msra.mxu0 0.0
  %4591 = vmatprep.subr.mxu0 0.0
  %4592 = vmatpush1.msra.mxu0 0.0
  %4593 = vmatprep.subr.mxu0 0.0
  %4594 = vmatpush1.msra.mxu0 0.0
  %4595 = vmatprep.subr.mxu0 0.0
  %4596 = vmatpush1.msra.mxu0 0.0
  %4597 = vmatprep.subr.mxu0 0.0
  %4598 = vmatpush1.msra.mxu0 0.0
  %4599 = vmatprep.subr.mxu0 0.0
  %4600 = vmatpush1.msra.mxu0 0.0
  %4601 = vmatprep.subr.mxu0 0.0
  %4602 = vmatpush1.msra.mxu0 0.0
  %4603 = vmatprep.subr.mxu0 0.0
  %4604 = vmatpush1.msra.mxu0 0.0
  %4605 = vmatprep.subr.mxu0 0.0
  %4606 = vmatpush1.msra.mxu0 0.0
  %4607 = vmatprep.subr.mxu0 0.0
  %4608 = vmatpush1.msra.mxu0 0.0
  %4609 = vmatprep.subr.mxu0 0.0
  %4610 = vmatpush1.msra.mxu0 0.0
  %4611 = vmatprep.subr.mxu0 0.0
  %4612 = vmatpush1.msra.mxu0 0.0
  %4613 = vmatprep.subr.mxu0 0.0
  %4614 = vmatpush1.msra.mxu0 0.0
  %4615 = vmatprep.subr.mxu0 0.0
  %4616 = vmatpush1.msra.mxu0 0.0
  %4617 = vmatprep.subr.mxu0 0.0
  %4618 = vmatpush1.msra.mxu0 0.0
  %4619 = vmatprep.subr.mxu0 0.0
  %4620 = vmatpush1.msra.mxu0 0.0
  %4621 = vmatprep.subr.mxu0 0.0
  %4622 = vmatpush1.msra.mxu0 0.0
  %4623 = vmatprep.subr.mxu0 0.0
  %4624 = vmatpush1.msra.mxu0 0.0
  %4625 = vmatprep.mubr.f32.mxu0 0.0
  %4626 = vmatmul.mubr.f32.gmra.mrb[0].mxu0 %v4514
  %v4627 = vpop.f32.mrb[0].mxu0
  %v4628 = vadd.f32 %v4511, %v4627
  %v4629 = vpop.f32.mrb[0].mxu0
  %4630 = vmatprep.mubr.f32.mxu0 0.0
  %4631 = vmatmul.mubr.f32.gmra.mrb[0].mxu0 %v4517
  %v4632 = vpop.f32.mrb[0].mxu0
  %v4633 = vadd.f32 %v4511, %v4632
  %v4634 = vpop.f32.mrb[0].mxu0
  %4635 = vmatprep.mubr.f32.mxu0 0.0
  %4636 = vmatmul.mubr.f32.gmra.mrb[0].mxu0 %v4520
  %v4637 = vpop.f32.mrb[0].mxu0
  %v4638 = vadd.f32 %v4511, %v4637
  %v4639 = vpop.f32.mrb[0].mxu0
  %4640 = vmatprep.mubr.f32.mxu0 0.0
  %4641 = vmatmul.mubr.f32.gmra.mrb[0].mxu0 %v4523
  %v4642 = vpop.f32.mrb[0].mxu0
  %v4643 = vadd.f32 %v4511, %v4642
  %v4644 = vpop.f32.mrb[0].mxu0
  %4645 = vmatprep.mubr.f32.mxu0 0.0
  %4646 = vmatmul.mubr.f32.gmra.mrb[0].mxu0 %v4526
  %v4647 = vpop.f32.mrb[0].mxu0
  %v4648 = vadd.f32 %v4511, %v4647
  %v4649 = vpop.f32.mrb[0].mxu0
  %4650 = vmatprep.mubr.f32.mxu0 0.0
  %4651 = vmatmul.mubr.f32.gmra.mrb[0].mxu0 %v4529
  %v4652 = vpop.f32.mrb[0].mxu0
  %v4653 = vadd.f32 %v4511, %v4652
  %v4654 = vpop.f32.mrb[0].mxu0
  %4655 = vmatprep.mubr.f32.mxu0 0.0
  %4656 = vmatmul.mubr.f32.gmra.mrb[0].mxu0 %v4532
  %v4657 = vpop.f32.mrb[0].mxu0
  %v4658 = vadd.f32 %v4511, %v4657
  %v4659 = vpop.f32.mrb[0].mxu0
  %4660 = vmatprep.mubr.f32.mxu0 0.0
  %4661 = vmatmul.mubr.f32.gmra.mrb[0].mxu0 %v4535
  %v4662 = vpop.f32.mrb[0].mxu0
  %v4663 = vadd.f32 %v4511, %v4662
  %v4664 = vpop.f32.mrb[0].mxu0
  %4665 = vmatprep.mubr.f32.mxu0 0.0
  %4666 = vmatmul.mubr.f32.gmra.mrb[0].mxu0 %v4538
  %v4667 = vpop.f32.mrb[0].mxu0
  %v4668 = vadd.f32 %v4511, %v4667
  %v4669 = vpop.f32.mrb[0].mxu0
  %4670 = vmatprep.mubr.f32.mxu0 0.0
  %4671 = vmatmul.mubr.f32.gmra.mrb[0].mxu0 %v4541
  %v4672 = vpop.f32.mrb[0].mxu0
  %v4673 = vadd.f32 %v4511, %v4672
  %v4674 = vpop.f32.mrb[0].mxu0
  %4675 = vmatprep.mubr.f32.mxu0 0.0
  %4676 = vmatmul.mubr.f32.gmra.mrb[0].mxu0 %v4544
  %v4677 = vpop.f32.mrb[0].mxu0
  %v4678 = vadd.f32 %v4511, %v4677
  %v4679 = vpop.f32.mrb[0].mxu0
  %4680 = vmatprep.mubr.f32.mxu0 0.0
  %4681 = vmatmul.mubr.f32.gmra.mrb[0].mxu0 %v4547
  %v4682 = vpop.f32.mrb[0].mxu0
  %v4683 = vadd.f32 %v4511, %v4682
  %v4684 = vpop.f32.mrb[0].mxu0
  %4685 = vmatprep.mubr.f32.mxu0 0.0
  %4686 = vmatmul.mubr.f32.gmra.mrb[0].mxu0 %v4550
  %v4687 = vpop.f32.mrb[0].mxu0
  %v4688 = vadd.f32 %v4511, %v4687
  %v4689 = vpop.f32.mrb[0].mxu0
  %4690 = vmatprep.mubr.f32.mxu0 0.0
  %4691 = vmatmul.mubr.f32.gmra.mrb[0].mxu0 %v4553
  %v4692 = vpop.f32.mrb[0].mxu0
  %v4693 = vadd.f32 %v4511, %v4692
  %v4694 = vpop.f32.mrb[0].mxu0
  %4695 = vmatprep.mubr.f32.mxu0 0.0
  %4696 = vmatmul.mubr.f32.gmra.mrb[0].mxu0 %v4556
  %v4697 = vpop.f32.mrb[0].mxu0
  %v4698 = vadd.f32 %v4511, %v4697
  %v4699 = vpop.f32.mrb[0].mxu0
  %4700 = vmatprep.mubr.f32.mxu0 0.0
  %4701 = vmatmul.mubr.f32.gmra.mrb[0].mxu0 %v4559
  %v4702 = vpop.f32.mrb[0].mxu0
  %v4703 = vadd.f32 %v4511, %v4702
  %v4704 = vpop.f32.mrb[0].mxu0
  %4705 = vdwg.mxu0
  %v4706 = vmul.f32 %v4628, 0.5
  %v4707 = vmul.f32 %v4633, 0.5
  %v4708 = vmul.f32 %v4638, 0.5
  %v4709 = vmul.f32 %v4643, 0.5
  %v4710 = vmul.f32 %v4648, 0.5
  %v4711 = vmul.f32 %v4653, 0.5
  %v4712 = vmul.f32 %v4658, 0.5
  %v4713 = vmul.f32 %v4663, 0.5
  %v4714 = vmul.f32 %v4668, 0.5
  %v4715 = vmul.f32 %v4673, 0.5
  %v4716 = vmul.f32 %v4678, 0.5
  %v4717 = vmul.f32 %v4683, 0.5
  %v4718 = vmul.f32 %v4688, 0.5
  %v4719 = vmul.f32 %v4693, 0.5
  %v4720 = vmul.f32 %v4698, 0.5
  %v4721 = vmul.f32 %v4703, 0.5
  %v4722 = vmul.f32 %v4628, 0.70710677
  %v4723 = vmul.f32 %v4633, 0.70710677
  %v4724 = vmul.f32 %v4638, 0.70710677
  %v4725 = vmul.f32 %v4643, 0.70710677
  %v4726 = vmul.f32 %v4648, 0.70710677
  %v4727 = vmul.f32 %v4653, 0.70710677
  %v4728 = vmul.f32 %v4658, 0.70710677
  %v4729 = vmul.f32 %v4663, 0.70710677
  %v4730 = vmul.f32 %v4668, 0.70710677
  %v4731 = vmul.f32 %v4673, 0.70710677
  %v4732 = vmul.f32 %v4678, 0.70710677
  %v4733 = vmul.f32 %v4683, 0.70710677
  %v4734 = vmul.f32 %v4688, 0.70710677
  %v4735 = vmul.f32 %v4693, 0.70710677
  %v4736 = vmul.f32 %v4698, 0.70710677
  %v4737 = vmul.f32 %v4703, 0.70710677
  %v4738 = verf.f32.pop %v4722
  %v4739 = verf.f32.pop %v4723
  %v4740 = verf.f32.pop %v4724
  %v4741 = verf.f32.pop %v4725
  %v4742 = verf.f32.pop %v4726
  %v4743 = verf.f32.pop %v4727
  %v4744 = verf.f32.pop %v4728
  %v4745 = verf.f32.pop %v4729
  %v4746 = verf.f32.pop %v4730
  %v4747 = verf.f32.pop %v4731
  %v4748 = verf.f32.pop %v4732
  %v4749 = verf.f32.pop %v4733
  %v4750 = verf.f32.pop %v4734
  %v4751 = verf.f32.pop %v4735
  %v4752 = verf.f32.pop %v4736
  %v4753 = verf.f32.pop %v4737
  %v4754 = vadd.f32 %v4738, 1.0
  %v4755 = vadd.f32 %v4739, 1.0
  %v4756 = vadd.f32 %v4740, 1.0
  %v4757 = vadd.f32 %v4741, 1.0
  %v4758 = vadd.f32 %v4742, 1.0
  %v4759 = vadd.f32 %v4743, 1.0
  %v4760 = vadd.f32 %v4744, 1.0
  %v4761 = vadd.f32 %v4745, 1.0
  %v4762 = vadd.f32 %v4746, 1.0
  %v4763 = vadd.f32 %v4747, 1.0
  %v4764 = vadd.f32 %v4748, 1.0
  %v4765 = vadd.f32 %v4749, 1.0
  %v4766 = vadd.f32 %v4750, 1.0
  %v4767 = vadd.f32 %v4751, 1.0
  %v4768 = vadd.f32 %v4752, 1.0
  %v4769 = vadd.f32 %v4753, 1.0
  %v4770 = vmul.f32 %v4706, %v4754
  %v4771 = vmul.f32 %v4707, %v4755
  %v4772 = vmul.f32 %v4708, %v4756
  %v4773 = vmul.f32 %v4709, %v4757
  %v4774 = vmul.f32 %v4710, %v4758
  %v4775 = vmul.f32 %v4711, %v4759
  %v4776 = vmul.f32 %v4712, %v4760
  %v4777 = vmul.f32 %v4713, %v4761
  %v4778 = vmul.f32 %v4714, %v4762
  %v4779 = vmul.f32 %v4715, %v4763
  %v4780 = vmul.f32 %v4716, %v4764
  %v4781 = vmul.f32 %v4717, %v4765
  %v4782 = vmul.f32 %v4718, %v4766
  %v4783 = vmul.f32 %v4719, %v4767
  %v4784 = vmul.f32 %v4720, %v4768
  %v4785 = vmul.f32 %v4721, %v4769
  %v4786 = vld [vmem:[%s11] sm:$0xff]
  %v4787 = vld [vmem:[%s11 + $0x8] sm:$0xff]
  %v4788 = vld [vmem:[%s11 + $0x10] sm:$0xff]
  %v4789 = vld [vmem:[%s11 + $0x18] sm:$0xff]
  %v4790 = vld [vmem:[%s12] sm:$0x1]
  %v4792 = vlaneseq
  %v4793 = vshrl.u32 %v4792, 7
  %v4794 = vsub.s32 0, %v4793
  %v4795 = vrot.slane %v4790, %v4794
  %v4798 = vsel %vm62, %v4770, 0
  %v4801 = vsel %vm62, %v4771, 0
  %v4804 = vsel %vm62, %v4772, 0
  %v4807 = vsel %vm62, %v4773, 0
  %v4810 = vsel %vm62, %v4774, 0
  %v4813 = vsel %vm62, %v4775, 0
  %v4816 = vsel %vm62, %v4776, 0
  %v4819 = vsel %vm62, %v4777, 0
  %v4822 = vsel %vm62, %v4778, 0
  %v4825 = vsel %vm62, %v4779, 0
  %v4828 = vsel %vm62, %v4780, 0
  %v4831 = vsel %vm62, %v4781, 0
  %v4834 = vsel %vm62, %v4782, 0
  %v4837 = vsel %vm62, %v4783, 0
  %v4840 = vsel %vm62, %v4784, 0
  %v4843 = vsel %vm62, %v4785, 0
  %4845 = vmatprep.subr.mxu0 0.0
  %4846 = vmatpush1.msra.mxu0 %v4786
  %4847 = vmatprep.subr.mxu0 0.0
  %4848 = vmatpush1.msra.mxu0 %v4787
  %4849 = vmatprep.subr.mxu0 0.0
  %4850 = vmatpush1.msra.mxu0 %v4788
  %4851 = vmatprep.subr.mxu0 0.0
  %4852 = vmatpush1.msra.mxu0 %v4789
  %4853 = vmatprep.subr.mxu0 0.0
  %4854 = vmatpush1.msra.mxu0 0.0
  %4855 = vmatprep.subr.mxu0 0.0
  %4856 = vmatpush1.msra.mxu0 0.0
  %4857 = vmatprep.subr.mxu0 0.0
  %4858 = vmatpush1.msra.mxu0 0.0
  %4859 = vmatprep.subr.mxu0 0.0
  %4860 = vmatpush1.msra.mxu0 0.0
  %4861 = vmatprep.subr.mxu0 0.0
  %4862 = vmatpush1.msra.mxu0 0.0
  %4863 = vmatprep.subr.mxu0 0.0
  %4864 = vmatpush1.msra.mxu0 0.0
  %4865 = vmatprep.subr.mxu0 0.0
  %4866 = vmatpush1.msra.mxu0 0.0
  %4867 = vmatprep.subr.mxu0 0.0
  %4868 = vmatpush1.msra.mxu0 0.0
  %4869 = vmatprep.subr.mxu0 0.0
  %4870 = vmatpush1.msra.mxu0 0.0
  %4871 = vmatprep.subr.mxu0 0.0
  %4872 = vmatpush1.msra.mxu0 0.0
  %4873 = vmatprep.subr.mxu0 0.0
  %4874 = vmatpush1.msra.mxu0 0.0
  %4875 = vmatprep.subr.mxu0 0.0
  %4876 = vmatpush1.msra.mxu0 0.0
  %4877 = vmatprep.subr.mxu0 0.0
  %4878 = vmatpush1.msra.mxu0 0.0
  %4879 = vmatprep.subr.mxu0 0.0
  %4880 = vmatpush1.msra.mxu0 0.0
  %4881 = vmatprep.subr.mxu0 0.0
  %4882 = vmatpush1.msra.mxu0 0.0
  %4883 = vmatprep.subr.mxu0 0.0
  %4884 = vmatpush1.msra.mxu0 0.0
  %4885 = vmatprep.subr.mxu0 0.0
  %4886 = vmatpush1.msra.mxu0 0.0
  %4887 = vmatprep.subr.mxu0 0.0
  %4888 = vmatpush1.msra.mxu0 0.0
  %4889 = vmatprep.subr.mxu0 0.0
  %4890 = vmatpush1.msra.mxu0 0.0
  %4891 = vmatprep.subr.mxu0 0.0
  %4892 = vmatpush1.msra.mxu0 0.0
  %4893 = vmatprep.subr.mxu0 0.0
  %4894 = vmatpush1.msra.mxu0 0.0
  %4895 = vmatprep.subr.mxu0 0.0
  %4896 = vmatpush1.msra.mxu0 0.0
  %4897 = vmatprep.subr.mxu0 0.0
  %4898 = vmatpush1.msra.mxu0 0.0
  %4899 = vmatprep.subr.mxu0 0.0
  %4900 = vmatpush1.msra.mxu0 0.0
  %4901 = vmatprep.subr.mxu0 0.0
  %4902 = vmatpush1.msra.mxu0 0.0
  %4903 = vmatprep.subr.mxu0 0.0
  %4904 = vmatpush1.msra.mxu0 0.0
  %4905 = vmatprep.subr.mxu0 0.0
  %4906 = vmatpush1.msra.mxu0 0.0
  %4907 = vmatprep.subr.mxu0 0.0
  %4908 = vmatpush1.msra.mxu0 0.0
  %4909 = vmatprep.mubr.f32.mxu0 0.0
  %4910 = vmatmul.mubr.f32.gmra.mrb[0].mxu0 %v4798
  %v4911 = vpop.f32.mrb[0].mxu0
  %v4912 = vadd.f32 %v4795, %v4911
  %v4913 = vpop.f32.mrb[0].mxu0
  %4914 = vmatprep.mubr.f32.mxu0 0.0
  %4915 = vmatmul.mubr.f32.gmra.mrb[0].mxu0 %v4801
  %v4916 = vpop.f32.mrb[0].mxu0
  %v4917 = vadd.f32 %v4795, %v4916
  %v4918 = vpop.f32.mrb[0].mxu0
  %4919 = vmatprep.mubr.f32.mxu0 0.0
  %4920 = vmatmul.mubr.f32.gmra.mrb[0].mxu0 %v4804
  %v4921 = vpop.f32.mrb[0].mxu0
  %v4922 = vadd.f32 %v4795, %v4921
  %v4923 = vpop.f32.mrb[0].mxu0
  %4924 = vmatprep.mubr.f32.mxu0 0.0
  %4925 = vmatmul.mubr.f32.gmra.mrb[0].mxu0 %v4807
  %v4926 = vpop.f32.mrb[0].mxu0
  %v4927 = vadd.f32 %v4795, %v4926
  %v4928 = vpop.f32.mrb[0].mxu0
  %4929 = vmatprep.mubr.f32.mxu0 0.0
  %4930 = vmatmul.mubr.f32.gmra.mrb[0].mxu0 %v4810
  %v4931 = vpop.f32.mrb[0].mxu0
  %v4932 = vadd.f32 %v4795, %v4931
  %v4933 = vpop.f32.mrb[0].mxu0
  %4934 = vmatprep.mubr.f32.mxu0 0.0
  %4935 = vmatmul.mubr.f32.gmra.mrb[0].mxu0 %v4813
  %v4936 = vpop.f32.mrb[0].mxu0
  %v4937 = vadd.f32 %v4795, %v4936
  %v4938 = vpop.f32.mrb[0].mxu0
  %4939 = vmatprep.mubr.f32.mxu0 0.0
  %4940 = vmatmul.mubr.f32.gmra.mrb[0].mxu0 %v4816
  %v4941 = vpop.f32.mrb[0].mxu0
  %v4942 = vadd.f32 %v4795, %v4941
  %v4943 = vpop.f32.mrb[0].mxu0
  %4944 = vmatprep.mubr.f32.mxu0 0.0
  %4945 = vmatmul.mubr.f32.gmra.mrb[0].mxu0 %v4819
  %v4946 = vpop.f32.mrb[0].mxu0
  %v4947 = vadd.f32 %v4795, %v4946
  %v4948 = vpop.f32.mrb[0].mxu0
  %4949 = vmatprep.mubr.f32.mxu0 0.0
  %4950 = vmatmul.mubr.f32.gmra.mrb[0].mxu0 %v4822
  %v4951 = vpop.f32.mrb[0].mxu0
  %v4952 = vadd.f32 %v4795, %v4951
  %v4953 = vpop.f32.mrb[0].mxu0
  %4954 = vmatprep.mubr.f32.mxu0 0.0
  %4955 = vmatmul.mubr.f32.gmra.mrb[0].mxu0 %v4825
  %v4956 = vpop.f32.mrb[0].mxu0
  %v4957 = vadd.f32 %v4795, %v4956
  %v4958 = vpop.f32.mrb[0].mxu0
  %4959 = vmatprep.mubr.f32.mxu0 0.0
  %4960 = vmatmul.mubr.f32.gmra.mrb[0].mxu0 %v4828
  %v4961 = vpop.f32.mrb[0].mxu0
  %v4962 = vadd.f32 %v4795, %v4961
  %v4963 = vpop.f32.mrb[0].mxu0
  %4964 = vmatprep.mubr.f32.mxu0 0.0
  %4965 = vmatmul.mubr.f32.gmra.mrb[0].mxu0 %v4831
  %v4966 = vpop.f32.mrb[0].mxu0
  %v4967 = vadd.f32 %v4795, %v4966
  %v4968 = vpop.f32.mrb[0].mxu0
  %4969 = vmatprep.mubr.f32.mxu0 0.0
  %4970 = vmatmul.mubr.f32.gmra.mrb[0].mxu0 %v4834
  %v4971 = vpop.f32.mrb[0].mxu0
  %v4972 = vadd.f32 %v4795, %v4971
  %v4973 = vpop.f32.mrb[0].mxu0
  %4974 = vmatprep.mubr.f32.mxu0 0.0
  %4975 = vmatmul.mubr.f32.gmra.mrb[0].mxu0 %v4837
  %v4976 = vpop.f32.mrb[0].mxu0
  %v4977 = vadd.f32 %v4795, %v4976
  %v4978 = vpop.f32.mrb[0].mxu0
  %4979 = vmatprep.mubr.f32.mxu0 0.0
  %4980 = vmatmul.mubr.f32.gmra.mrb[0].mxu0 %v4840
  %v4981 = vpop.f32.mrb[0].mxu0
  %v4982 = vadd.f32 %v4795, %v4981
  %v4983 = vpop.f32.mrb[0].mxu0
  %4984 = vmatprep.mubr.f32.mxu0 0.0
  %4985 = vmatmul.mubr.f32.gmra.mrb[0].mxu0 %v4843
  %v4986 = vpop.f32.mrb[0].mxu0
  %v4987 = vadd.f32 %v4795, %v4986
  %v4988 = vpop.f32.mrb[0].mxu0
  %4989 = vdwg.mxu0
  %v4990 = vadd.f32 %v4912, %v4232
  %v4991 = vadd.f32 %v4917, %v4233
  %v4992 = vadd.f32 %v4922, %v4234
  %v4993 = vadd.f32 %v4927, %v4235
  %v4994 = vadd.f32 %v4932, %v4236
  %v4995 = vadd.f32 %v4937, %v4237
  %v4996 = vadd.f32 %v4942, %v4238
  %v4997 = vadd.f32 %v4947, %v4239
  %v4998 = vadd.f32 %v4952, %v4240
  %v4999 = vadd.f32 %v4957, %v4241
  %v5000 = vadd.f32 %v4962, %v4242
  %v5001 = vadd.f32 %v4967, %v4243
  %v5002 = vadd.f32 %v4972, %v4244
  %v5003 = vadd.f32 %v4977, %v4245
  %v5004 = vadd.f32 %v4982, %v4246
  %v5005 = vadd.f32 %v4987, %v4247
  %5006 = vst.msk [vmem:[%s13] sm:$0xff] %vm62, %v4990
  %5007 = vst.msk [vmem:[%s13 + $0x8] sm:$0xff] %vm62, %v4991
  %5008 = vst.msk [vmem:[%s13 + $0x10] sm:$0xff] %vm62, %v4992
  %5009 = vst.msk [vmem:[%s13 + $0x18] sm:$0xff] %vm62, %v4993
  %5010 = vst.msk [vmem:[%s13 + $0x20] sm:$0xff] %vm62, %v4994
  %5011 = vst.msk [vmem:[%s13 + $0x28] sm:$0xff] %vm62, %v4995
  %5012 = vst.msk [vmem:[%s13 + $0x30] sm:$0xff] %vm62, %v4996
  %5013 = vst.msk [vmem:[%s13 + $0x38] sm:$0xff] %vm62, %v4997
  %5014 = vst.msk [vmem:[%s13 + $0x40] sm:$0xff] %vm62, %v4998
  %5015 = vst.msk [vmem:[%s13 + $0x48] sm:$0xff] %vm62, %v4999
  %5016 = vst.msk [vmem:[%s13 + $0x50] sm:$0xff] %vm62, %v5000
  %5017 = vst.msk [vmem:[%s13 + $0x58] sm:$0xff] %vm62, %v5001
  %5018 = vst.msk [vmem:[%s13 + $0x60] sm:$0xff] %vm62, %v5002
  %5019 = vst.msk [vmem:[%s13 + $0x68] sm:$0xff] %vm62, %v5003
  %5020 = vst.msk [vmem:[%s13 + $0x70] sm:$0xff] %vm62, %v5004
  %5021 = vst.msk [vmem:[%s13 + $0x78] sm:$0xff] %vm62, %v5005
  // Predicated region
  $region54: #{tpu_custom_call.1} parent=0 // pred_check
    _
  $region55: #{tpu_custom_call.1} parent=0 // pred_check_branch
    %5023 = sbr.rel (0) target = $region57
  $region56: #{tpu_custom_call.1} parent=0 // pred_region
    _
  $region57: #{tpu_custom_call.1} parent=0 // pred_fallthru
    _
  // Predicated region
  $region58: #{tpu_custom_call.1} parent=0 // pred_check
    _
  $region59: #{tpu_custom_call.1} parent=0 // pred_check_branch
    %5025 = sbr.rel (0) target = $region61
  $region60: #{tpu_custom_call.1} parent=0 // pred_region
    _
  $region61: #{tpu_custom_call.1} parent=0 // pred_fallthru
    _

</llo_original>
